<compile_context>
chip_gen: v7x
topology: tpu7x:2x2x1
jax: 0.10.0
libtpu: 0.0.40
codegen_flags: <defaults>
</compile_context>

<pallas_src>
from functools import partial

import jax
import jax.numpy as jnp
from jax import lax
from jax.experimental import pallas as pl
from jax.experimental.pallas import tpu as pltpu


def _round_up(a, b):
    return ((a + b - 1) // b) * b


def dcn_kernel(x_ref, aux_ref, regw_ref, regb_ref, o_ref, def_col,
               *, Ci, Ci_pad, KK, Hp_pad, Wp, TP):
    """One grid step: sample KK modulated deformable taps for TP output pixels and
    apply the stationary (Co, KK*Ci_pad) weight with a single MXU matmul."""
    x2 = x_ref[0]                 # (Ci*Hp_pad, Wp)  flattened padded image (free view)
    aux = aux_ref[0]              # (3*KK, TP)       rows: [sy_k | sx_k | mod_k]

    # float pixel-coordinate grids, hoisted out of the tap loop
    yi = lax.broadcasted_iota(jnp.int32, (Hp_pad, TP), 0).astype(jnp.float32)
    xi = lax.broadcasted_iota(jnp.int32, (Wp, TP), 0).astype(jnp.float32)

    if Ci_pad != Ci:
        # Padding rows of the im2col scratch are never written below; the matching
        # reg_w columns are zero, but stale VMEM could hold NaN -> clear once per step.
        def_col[...] = jnp.zeros_like(def_col)

    for k in range(KK):
        py = aux[k:k + 1, :]                       # (1, TP) absolute y sample coord
        px = aux[KK + k:KK + k + 1, :]             # (1, TP) absolute x sample coord
        m = aux[2 * KK + k:2 * KK + k + 1, :]      # (1, TP) modulator

        # tent weights == bilinear weights incl. zero padding outside the image
        wy = jnp.maximum(0.0, 1.0 - jnp.abs(yi - py))      # (Hp_pad, TP)
        wx = jnp.maximum(0.0, 1.0 - jnp.abs(xi - px))      # (Wp,     TP)

        t = jnp.dot(x2, wx, preferred_element_type=jnp.float32)   # (Ci*Hp_pad, TP) MXU
        t = t.reshape(Ci, Hp_pad, TP)                              # sublane-aligned view
        s = jnp.sum(t * wy[None, :, :], axis=1)                    # (Ci, TP)
        def_col[k * Ci_pad:k * Ci_pad + Ci, :] = s * m

    # single stationary-weight matmul: (Co, KK*Ci_pad) @ (KK*Ci_pad, TP)
    out = jnp.dot(regw_ref[...], def_col[...],
                  preferred_element_type=jnp.float32) + regb_ref[...]
    o_ref[0] = out.astype(o_ref.dtype)                             # lane-dense (Co, TP)


def deformable_conv2d(x, off_w, off_b, mod_w, mod_b, reg_w, reg_b,
                      *, stride=(1, 1), padding=(1, 1), p_tile=512):
    N, Ci, H, W = x.shape
    Co, Ci2, Kh, Kw = reg_w.shape
    assert Ci2 == Ci
    sh, sw = stride
    ph, pw = padding
    KK = Kh * Kw
    Hp, Wp = H + 2 * ph, W + 2 * pw
    Hout = (Hp - Kh) // sh + 1
    Wout = (Wp - Kw) // sw + 1
    P = Hout * Wout

    # lane-dense output-pixel tile
    TP = min(p_tile, _round_up(P, 128))
    if N == 1:                   # keep >= 2 grid points so both v7x TCs get work
        TP = min(TP, _round_up(-(-P // 2), 128))
    n_tiles = -(-P // TP)
    P_pad = n_tiles * TP

    f32 = jnp.float32
    hp_prec = lax.Precision.HIGHEST
    dn = ('NCHW', 'OIHW', 'NCHW')

    # ---- dense offset / modulator convs stay in XLA (nothing deformable here) ----
    offset = lax.conv_general_dilated(x, off_w, (sh, sw), [(ph, ph), (pw, pw)],
                                      dimension_numbers=dn, precision=hp_prec) \
        + off_b.reshape(1, -1, 1, 1)                              # (N, 2KK, Ho, Wo)
    mod = 2.0 * jax.nn.sigmoid(
        lax.conv_general_dilated(x, mod_w, (sh, sw), [(ph, ph), (pw, pw)],
                                 dimension_numbers=dn, precision=hp_prec)
        + mod_b.reshape(1, -1, 1, 1))                             # (N, KK, Ho, Wo)

    # absolute fractional sample coordinates per tap, flattened to lane-dense pixels
    ky = jnp.asarray([kh for kh in range(Kh) for _ in range(Kw)], f32)
    kx = jnp.asarray([kw for _ in range(Kh) for kw in range(Kw)], f32)
    gy = (jnp.arange(Hout, dtype=f32) * sh)[:, None]
    gx = (jnp.arange(Wout, dtype=f32) * sw)[None, :]
    sy = offset[:, 0::2] + ky[None, :, None, None] + gy[None, None, :, :]
    sx = offset[:, 1::2] + kx[None, :, None, None] + gx[None, None, :, :]
    aux = jnp.concatenate([sy, sx, mod], axis=1).astype(f32).reshape(N, 3 * KK, P)
    aux = jnp.pad(aux, ((0, 0), (0, 0), (0, P_pad - P)))

    # zero-padded image, H padded to a sublane multiple, pre-flattened (free in-kernel)
    Hp_pad = _round_up(Hp, 8)
    x_pad = jnp.pad(x.astype(f32),
                    ((0, 0), (0, 0), (ph, ph + Hp_pad - Hp), (pw, pw)))
    x_flat = x_pad.reshape(N, Ci * Hp_pad, Wp)

    # stationary regular-conv weight: columns ordered (k, ci), ci padded to Ci_pad
    Ci_pad = _round_up(Ci, 8)
    w = jnp.transpose(reg_w.astype(f32), (0, 2, 3, 1))            # (Co, Kh, Kw, Ci)
    w = jnp.pad(w, ((0, 0), (0, 0), (0, 0), (0, Ci_pad - Ci)))
    reg_w2 = w.reshape(Co, KK * Ci_pad)
    reg_b2 = reg_b.reshape(Co, 1).astype(f32)

    kernel = partial(dcn_kernel, Ci=Ci, Ci_pad=Ci_pad, KK=KK,
                     Hp_pad=Hp_pad, Wp=Wp, TP=TP)
    const = lambda n, t: (0, 0)

    # VMEM budget from actual (8,128)-padded block bytes (double-buffered I/O + scratch)
    def _p2(r, c):
        return _round_up(r, 8) * _round_up(c, 128) * 4
    need = (2 * (Ci * Hp_pad * _round_up(Wp, 128) * 4             # x block
                 + _p2(3 * KK, TP)                                # aux block
                 + _p2(Co, KK * Ci_pad) + _p2(Co, 1)              # weights / bias
                 + _p2(Co, TP))                                   # output block
            + _p2(KK * Ci_pad, TP))                               # im2col scratch
    vmem_limit = int(min(max(need + (4 << 20), 16 << 20), 100 << 20))

    out_pad = pl.pallas_call(
        kernel,
        out_shape=jax.ShapeDtypeStruct((N, Co, P_pad), jnp.float32),
        grid_spec=pltpu.PrefetchScalarGridSpec(
            num_scalar_prefetch=0,
            grid=(N, n_tiles),
            in_specs=[
                pl.BlockSpec((1, Ci * Hp_pad, Wp), lambda n, t: (n, 0, 0)),
                pl.BlockSpec((1, 3 * KK, TP), lambda n, t: (n, 0, t)),
                pl.BlockSpec((Co, KK * Ci_pad), const),
                pl.BlockSpec((Co, 1), const),
            ],
            out_specs=pl.BlockSpec((1, Co, TP), lambda n, t: (n, 0, t)),
            scratch_shapes=[pltpu.VMEM((KK * Ci_pad, TP), jnp.float32)],
        ),
        compiler_params=pltpu.CompilerParams(
            dimension_semantics=("parallel", "parallel"),
            vmem_limit_bytes=vmem_limit),
    )(x_flat, aux, reg_w2, reg_b2)

    return out_pad[:, :, :P].reshape(N, Co, Hout, Wout)


def ref_forward(x, off_w, off_b, mod_w, mod_b, reg_w, reg_b, *, stride, padding):
    """Pure-JAX reference mirroring the PyTorch module (torchvision deform_conv2d v2)."""
    N, Ci, H, W = x.shape
    Co, _, Kh, Kw = reg_w.shape
    sh, sw = stride
    ph, pw = padding
    dn = ('NCHW', 'OIHW', 'NCHW')
    hp = lax.Precision.HIGHEST

    offset = lax.conv_general_dilated(x, off_w, (sh, sw), [(ph, ph), (pw, pw)],
                                      dimension_numbers=dn, precision=hp) \
        + off_b.reshape(1, -1, 1, 1)
    mask = 2.0 * jax.nn.sigmoid(
        lax.conv_general_dilated(x, mod_w, (sh, sw), [(ph, ph), (pw, pw)],
                                 dimension_numbers=dn, precision=hp)
        + mod_b.reshape(1, -1, 1, 1))

    Hp, Wp = H + 2 * ph, W + 2 * pw
    Hout = (Hp - Kh) // sh + 1
    Wout = (Wp - Kw) // sw + 1
    xp = jnp.pad(x, ((0, 0), (0, 0), (ph, ph), (pw, pw)))

    n_idx = jnp.arange(N)[:, None, None, None]
    c_idx = jnp.arange(Ci)[None, :, None, None]
    ho = jnp.arange(Hout, dtype=jnp.float32)[:, None]
    wo = jnp.arange(Wout, dtype=jnp.float32)[None, :]

    def gather(yc, xc):
        valid = (yc >= 0) & (yc < Hp) & (xc >= 0) & (xc < Wp)
        y = jnp.clip(yc, 0, Hp - 1).astype(jnp.int32)
        xx = jnp.clip(xc, 0, Wp - 1).astype(jnp.int32)
        v = xp[n_idx, c_idx, y[:, None], xx[:, None]]        # (N, Ci, Hout, Wout)
        return v * valid[:, None].astype(xp.dtype)

    cols = []
    for kh in range(Kh):
        for kw in range(Kw):
            k = kh * Kw + kw
            py = ho * sh + kh + offset[:, 2 * k]
            px = wo * sw + kw + offset[:, 2 * k + 1]
            y0 = jnp.floor(py)
            x0 = jnp.floor(px)
            ly = py - y0
            lx = px - x0
            v = (((1 - ly) * (1 - lx))[:, None] * gather(y0, x0)
                 + ((1 - ly) * lx)[:, None] * gather(y0, x0 + 1)
                 + (ly * (1 - lx))[:, None] * gather(y0 + 1, x0)
                 + (ly * lx)[:, None] * gather(y0 + 1, x0 + 1))
            cols.append(v * mask[:, k][:, None])
    col = jnp.stack(cols, axis=1)                            # (N, KK, Ci, Hout, Wout)
    w_r = reg_w.reshape(Co, Ci, Kh * Kw)
    out = jnp.einsum('oik,nkihw->nohw', w_r, col, precision=hp)
    return out + reg_b.reshape(1, -1, 1, 1)


if __name__ == "__main__":
    N, Cin, Cout, H, W, K = 2, 4, 8, 16, 16, 3
    stride, padding = (1, 1), (1, 1)
    KK = K * K

    key = jax.random.PRNGKey(0)
    k1, k2, k3, k4, k5 = jax.random.split(key, 5)
    x = jax.random.normal(k1, (N, Cin, H, W), jnp.float32)
    # Small random offset/modulator conv params so the deformable path
    # (fractional bilinear sampling + modulation) is actually exercised.
    off_w = 0.05 * jax.random.normal(k2, (2 * KK, Cin, K, K), jnp.float32)
    off_b = 0.05 * jax.random.normal(k3, (2 * KK,), jnp.float32)
    mod_w = 0.05 * jax.random.normal(k4, (KK, Cin, K, K), jnp.float32)
    mod_b = jnp.zeros((KK,), jnp.float32)
    reg_w = 0.2 * jax.random.normal(k5, (Cout, Cin, K, K), jnp.float32)
    reg_b = jnp.zeros((Cout,), jnp.float32)      # regular_conv has bias=False by default

    out = deformable_conv2d(x, off_w, off_b, mod_w, mod_b, reg_w, reg_b,
                            stride=stride, padding=padding)
    out = jax.block_until_ready(out)

    ref = ref_forward(x, off_w, off_b, mod_w, mod_b, reg_w, reg_b,
                      stride=stride, padding=padding)
    assert out.shape == ref.shape == (N, Cout, H, W), (out.shape, ref.shape)
    max_err = float(jnp.max(jnp.abs(out - ref)))
    assert jnp.allclose(out, ref, atol=2e-3, rtol=2e-3), max_err
    print("KERNEL_OK")
</pallas_src>

<mosaic_0001>
module attributes {stable_mosaic.version = 11 : i64} {
  func.func @dcn_kernel(%arg0: i32, %arg1: i32, %arg2: memref<1x96x18xf32, #tpu.memory_space<vmem>>, %arg3: memref<1x27x256xf32, #tpu.memory_space<vmem>>, %arg4: memref<8x72xf32, #tpu.memory_space<vmem>>, %arg5: memref<8x1xf32, #tpu.memory_space<vmem>>, %arg6: memref<1x8x256xf32, #tpu.memory_space<vmem>>, %arg7: memref<72x256xf32, #tpu.memory_space<vmem>>) attributes {dimension_semantics = [#tpu.dimension_semantics<parallel>, #tpu.dimension_semantics<parallel>], iteration_bounds = array<i64: 2, 1>, scalar_prefetch = 0 : i64, scratch_operands = 1 : i64, tpu.core_type = #tpu.core_type<tc>, window_params = [{transform_indices = @transform_0, window_bounds = array<i64: 1, 96, 18>}, {transform_indices = @transform_1, window_bounds = array<i64: 1, 27, 256>}, {pipeline_mode = #tpu.pipeline_mode<synchronous>, transform_indices = @transform_2, window_bounds = array<i64: 8, 72>}, {pipeline_mode = #tpu.pipeline_mode<synchronous>, transform_indices = @transform_3, window_bounds = array<i64: 8, 1>}, {transform_indices = @transform_4, window_bounds = array<i64: 1, 8, 256>}]} {
    %c0 = arith.constant 0 : index
    %c0_0 = arith.constant 0 : index
    %c0_1 = arith.constant 0 : index
    %0 = vector.load %arg2[%c0, %c0_0, %c0_1] : memref<1x96x18xf32, #tpu.memory_space<vmem>>, vector<1x96x18xf32>
    %1 = vector.shape_cast %0 : vector<1x96x18xf32> to vector<96x18xf32>
    %c0_2 = arith.constant 0 : index
    %c0_3 = arith.constant 0 : index
    %c0_4 = arith.constant 0 : index
    %2 = vector.load %arg3[%c0_2, %c0_3, %c0_4] : memref<1x27x256xf32, #tpu.memory_space<vmem>>, vector<1x27x256xf32>
    %3 = vector.shape_cast %2 : vector<1x27x256xf32> to vector<27x256xf32>
    %4 = tpu.iota {dimensions = array<i32: 0>} : vector<24x256xi32>
    %5 = arith.sitofp %4 : vector<24x256xi32> to vector<24x256xf32>
    %6 = tpu.iota {dimensions = array<i32: 0>} : vector<18x256xi32>
    %7 = arith.sitofp %6 : vector<18x256xi32> to vector<18x256xf32>
    %cst = arith.constant 0.000000e+00 : f32
    %8 = vector.broadcast %cst : f32 to vector<72x256xf32>
    %c0_5 = arith.constant 0 : index
    %c0_6 = arith.constant 0 : index
    %9 = vector.load %arg7[%c0_5, %c0_6] : memref<72x256xf32, #tpu.memory_space<vmem>>, vector<72x256xf32>
    tpu.vector_store %arg7[%c0_5, %c0_6], %8 {strides = array<i32>} : memref<72x256xf32, #tpu.memory_space<vmem>>, vector<72x256xf32>,
    %10 = vector.extract_strided_slice %3 {offsets = [0, 0], sizes = [1, 256], strides = [1, 1]} : vector<27x256xf32> to vector<1x256xf32>
    %11 = vector.extract_strided_slice %3 {offsets = [9, 0], sizes = [1, 256], strides = [1, 1]} : vector<27x256xf32> to vector<1x256xf32>
    %12 = vector.extract_strided_slice %3 {offsets = [18, 0], sizes = [1, 256], strides = [1, 1]} : vector<27x256xf32> to vector<1x256xf32>
    %13 = vector.broadcast %10 : vector<1x256xf32> to vector<24x256xf32>
    %14 = arith.subf %5, %13 : vector<24x256xf32>
    %15 = math.absf %14 : vector<24x256xf32>
    %cst_7 = arith.constant 1.000000e+00 : f32
    %16 = vector.broadcast %cst_7 : f32 to vector<24x256xf32>
    %17 = arith.subf %16, %15 : vector<24x256xf32>
    %cst_8 = arith.constant 0.000000e+00 : f32
    %18 = vector.broadcast %cst_8 : f32 to vector<24x256xf32>
    %19 = arith.maximumf %18, %17 : vector<24x256xf32>
    %20 = vector.broadcast %11 : vector<1x256xf32> to vector<18x256xf32>
    %21 = arith.subf %7, %20 : vector<18x256xf32>
    %22 = math.absf %21 : vector<18x256xf32>
    %cst_9 = arith.constant 1.000000e+00 : f32
    %23 = vector.broadcast %cst_9 : f32 to vector<18x256xf32>
    %24 = arith.subf %23, %22 : vector<18x256xf32>
    %cst_10 = arith.constant 0.000000e+00 : f32
    %25 = vector.broadcast %cst_10 : f32 to vector<18x256xf32>
    %26 = arith.maximumf %25, %24 : vector<18x256xf32>
    %cst_11 = arith.constant dense<0.000000e+00> : vector<96x256xf32>
    %27 = tpu.matmul %1, %26, %cst_11 {dimension_numbers = #tpu.dot_dimension_numbers<[1], [0], [0], [1], [0, 0, 1, 1], [], []>} : vector<96x18xf32>, vector<18x256xf32>, vector<96x256xf32> -> vector<96x256xf32>
    %28 = vector.shape_cast %27 : vector<96x256xf32> to vector<4x24x256xf32>
    %29 = vector.shape_cast %19 : vector<24x256xf32> to vector<1x24x256xf32>
    %30 = vector.broadcast %29 : vector<1x24x256xf32> to vector<4x24x256xf32>
    %31 = arith.mulf %28, %30 : vector<4x24x256xf32>
    %cst_12 = arith.constant dense<0.000000e+00> : vector<4x256xf32>
    %32 = vector.multi_reduction <add>, %31, %cst_12 [1] : vector<4x24x256xf32> to vector<4x256xf32>
    %33 = vector.broadcast %12 : vector<1x256xf32> to vector<4x256xf32>
    %34 = arith.mulf %32, %33 : vector<4x256xf32>
    %c0_13 = arith.constant 0 : index
    %c0_14 = arith.constant 0 : index
    %35 = vector.load %arg7[%c0_13, %c0_14] : memref<72x256xf32, #tpu.memory_space<vmem>>, vector<4x256xf32>
    tpu.vector_store %arg7[%c0_13, %c0_14], %34 {strides = array<i32>} : memref<72x256xf32, #tpu.memory_space<vmem>>, vector<4x256xf32>,
    %36 = vector.extract_strided_slice %3 {offsets = [1, 0], sizes = [1, 256], strides = [1, 1]} : vector<27x256xf32> to vector<1x256xf32>
    %37 = vector.extract_strided_slice %3 {offsets = [10, 0], sizes = [1, 256], strides = [1, 1]} : vector<27x256xf32> to vector<1x256xf32>
    %38 = vector.extract_strided_slice %3 {offsets = [19, 0], sizes = [1, 256], strides = [1, 1]} : vector<27x256xf32> to vector<1x256xf32>
    %39 = vector.broadcast %36 : vector<1x256xf32> to vector<24x256xf32>
    %40 = arith.subf %5, %39 : vector<24x256xf32>
    %41 = math.absf %40 : vector<24x256xf32>
    %cst_15 = arith.constant 1.000000e+00 : f32
    %42 = vector.broadcast %cst_15 : f32 to vector<24x256xf32>
    %43 = arith.subf %42, %41 : vector<24x256xf32>
    %cst_16 = arith.constant 0.000000e+00 : f32
    %44 = vector.broadcast %cst_16 : f32 to vector<24x256xf32>
    %45 = arith.maximumf %44, %43 : vector<24x256xf32>
    %46 = vector.broadcast %37 : vector<1x256xf32> to vector<18x256xf32>
    %47 = arith.subf %7, %46 : vector<18x256xf32>
    %48 = math.absf %47 : vector<18x256xf32>
    %cst_17 = arith.constant 1.000000e+00 : f32
    %49 = vector.broadcast %cst_17 : f32 to vector<18x256xf32>
    %50 = arith.subf %49, %48 : vector<18x256xf32>
    %cst_18 = arith.constant 0.000000e+00 : f32
    %51 = vector.broadcast %cst_18 : f32 to vector<18x256xf32>
    %52 = arith.maximumf %51, %50 : vector<18x256xf32>
    %cst_19 = arith.constant dense<0.000000e+00> : vector<96x256xf32>
    %53 = tpu.matmul %1, %52, %cst_19 {dimension_numbers = #tpu.dot_dimension_numbers<[1], [0], [0], [1], [0, 0, 1, 1], [], []>} : vector<96x18xf32>, vector<18x256xf32>, vector<96x256xf32> -> vector<96x256xf32>
    %54 = vector.shape_cast %53 : vector<96x256xf32> to vector<4x24x256xf32>
    %55 = vector.shape_cast %45 : vector<24x256xf32> to vector<1x24x256xf32>
    %56 = vector.broadcast %55 : vector<1x24x256xf32> to vector<4x24x256xf32>
    %57 = arith.mulf %54, %56 : vector<4x24x256xf32>
    %cst_20 = arith.constant dense<0.000000e+00> : vector<4x256xf32>
    %58 = vector.multi_reduction <add>, %57, %cst_20 [1] : vector<4x24x256xf32> to vector<4x256xf32>
    %59 = vector.broadcast %38 : vector<1x256xf32> to vector<4x256xf32>
    %60 = arith.mulf %58, %59 : vector<4x256xf32>
    %c8 = arith.constant 8 : index
    %c0_21 = arith.constant 0 : index
    %61 = vector.load %arg7[%c8, %c0_21] : memref<72x256xf32, #tpu.memory_space<vmem>>, vector<4x256xf32>
    tpu.vector_store %arg7[%c8, %c0_21], %60 {strides = array<i32>} : memref<72x256xf32, #tpu.memory_space<vmem>>, vector<4x256xf32>,
    %62 = vector.extract_strided_slice %3 {offsets = [2, 0], sizes = [1, 256], strides = [1, 1]} : vector<27x256xf32> to vector<1x256xf32>
    %63 = vector.extract_strided_slice %3 {offsets = [11, 0], sizes = [1, 256], strides = [1, 1]} : vector<27x256xf32> to vector<1x256xf32>
    %64 = vector.extract_strided_slice %3 {offsets = [20, 0], sizes = [1, 256], strides = [1, 1]} : vector<27x256xf32> to vector<1x256xf32>
    %65 = vector.broadcast %62 : vector<1x256xf32> to vector<24x256xf32>
    %66 = arith.subf %5, %65 : vector<24x256xf32>
    %67 = math.absf %66 : vector<24x256xf32>
    %cst_22 = arith.constant 1.000000e+00 : f32
    %68 = vector.broadcast %cst_22 : f32 to vector<24x256xf32>
    %69 = arith.subf %68, %67 : vector<24x256xf32>
    %cst_23 = arith.constant 0.000000e+00 : f32
    %70 = vector.broadcast %cst_23 : f32 to vector<24x256xf32>
    %71 = arith.maximumf %70, %69 : vector<24x256xf32>
    %72 = vector.broadcast %63 : vector<1x256xf32> to vector<18x256xf32>
    %73 = arith.subf %7, %72 : vector<18x256xf32>
    %74 = math.absf %73 : vector<18x256xf32>
    %cst_24 = arith.constant 1.000000e+00 : f32
    %75 = vector.broadcast %cst_24 : f32 to vector<18x256xf32>
    %76 = arith.subf %75, %74 : vector<18x256xf32>
    %cst_25 = arith.constant 0.000000e+00 : f32
    %77 = vector.broadcast %cst_25 : f32 to vector<18x256xf32>
    %78 = arith.maximumf %77, %76 : vector<18x256xf32>
    %cst_26 = arith.constant dense<0.000000e+00> : vector<96x256xf32>
    %79 = tpu.matmul %1, %78, %cst_26 {dimension_numbers = #tpu.dot_dimension_numbers<[1], [0], [0], [1], [0, 0, 1, 1], [], []>} : vector<96x18xf32>, vector<18x256xf32>, vector<96x256xf32> -> vector<96x256xf32>
    %80 = vector.shape_cast %79 : vector<96x256xf32> to vector<4x24x256xf32>
    %81 = vector.shape_cast %71 : vector<24x256xf32> to vector<1x24x256xf32>
    %82 = vector.broadcast %81 : vector<1x24x256xf32> to vector<4x24x256xf32>
    %83 = arith.mulf %80, %82 : vector<4x24x256xf32>
    %cst_27 = arith.constant dense<0.000000e+00> : vector<4x256xf32>
    %84 = vector.multi_reduction <add>, %83, %cst_27 [1] : vector<4x24x256xf32> to vector<4x256xf32>
    %85 = vector.broadcast %64 : vector<1x256xf32> to vector<4x256xf32>
    %86 = arith.mulf %84, %85 : vector<4x256xf32>
    %c16 = arith.constant 16 : index
    %c0_28 = arith.constant 0 : index
    %87 = vector.load %arg7[%c16, %c0_28] : memref<72x256xf32, #tpu.memory_space<vmem>>, vector<4x256xf32>
    tpu.vector_store %arg7[%c16, %c0_28], %86 {strides = array<i32>} : memref<72x256xf32, #tpu.memory_space<vmem>>, vector<4x256xf32>,
    %88 = vector.extract_strided_slice %3 {offsets = [3, 0], sizes = [1, 256], strides = [1, 1]} : vector<27x256xf32> to vector<1x256xf32>
    %89 = vector.extract_strided_slice %3 {offsets = [12, 0], sizes = [1, 256], strides = [1, 1]} : vector<27x256xf32> to vector<1x256xf32>
    %90 = vector.extract_strided_slice %3 {offsets = [21, 0], sizes = [1, 256], strides = [1, 1]} : vector<27x256xf32> to vector<1x256xf32>
    %91 = vector.broadcast %88 : vector<1x256xf32> to vector<24x256xf32>
    %92 = arith.subf %5, %91 : vector<24x256xf32>
    %93 = math.absf %92 : vector<24x256xf32>
    %cst_29 = arith.constant 1.000000e+00 : f32
    %94 = vector.broadcast %cst_29 : f32 to vector<24x256xf32>
    %95 = arith.subf %94, %93 : vector<24x256xf32>
    %cst_30 = arith.constant 0.000000e+00 : f32
    %96 = vector.broadcast %cst_30 : f32 to vector<24x256xf32>
    %97 = arith.maximumf %96, %95 : vector<24x256xf32>
    %98 = vector.broadcast %89 : vector<1x256xf32> to vector<18x256xf32>
    %99 = arith.subf %7, %98 : vector<18x256xf32>
    %100 = math.absf %99 : vector<18x256xf32>
    %cst_31 = arith.constant 1.000000e+00 : f32
    %101 = vector.broadcast %cst_31 : f32 to vector<18x256xf32>
    %102 = arith.subf %101, %100 : vector<18x256xf32>
    %cst_32 = arith.constant 0.000000e+00 : f32
    %103 = vector.broadcast %cst_32 : f32 to vector<18x256xf32>
    %104 = arith.maximumf %103, %102 : vector<18x256xf32>
    %cst_33 = arith.constant dense<0.000000e+00> : vector<96x256xf32>
    %105 = tpu.matmul %1, %104, %cst_33 {dimension_numbers = #tpu.dot_dimension_numbers<[1], [0], [0], [1], [0, 0, 1, 1], [], []>} : vector<96x18xf32>, vector<18x256xf32>, vector<96x256xf32> -> vector<96x256xf32>
    %106 = vector.shape_cast %105 : vector<96x256xf32> to vector<4x24x256xf32>
    %107 = vector.shape_cast %97 : vector<24x256xf32> to vector<1x24x256xf32>
    %108 = vector.broadcast %107 : vector<1x24x256xf32> to vector<4x24x256xf32>
    %109 = arith.mulf %106, %108 : vector<4x24x256xf32>
    %cst_34 = arith.constant dense<0.000000e+00> : vector<4x256xf32>
    %110 = vector.multi_reduction <add>, %109, %cst_34 [1] : vector<4x24x256xf32> to vector<4x256xf32>
    %111 = vector.broadcast %90 : vector<1x256xf32> to vector<4x256xf32>
    %112 = arith.mulf %110, %111 : vector<4x256xf32>
    %c24 = arith.constant 24 : index
    %c0_35 = arith.constant 0 : index
    %113 = vector.load %arg7[%c24, %c0_35] : memref<72x256xf32, #tpu.memory_space<vmem>>, vector<4x256xf32>
    tpu.vector_store %arg7[%c24, %c0_35], %112 {strides = array<i32>} : memref<72x256xf32, #tpu.memory_space<vmem>>, vector<4x256xf32>,
    %114 = vector.extract_strided_slice %3 {offsets = [4, 0], sizes = [1, 256], strides = [1, 1]} : vector<27x256xf32> to vector<1x256xf32>
    %115 = vector.extract_strided_slice %3 {offsets = [13, 0], sizes = [1, 256], strides = [1, 1]} : vector<27x256xf32> to vector<1x256xf32>
    %116 = vector.extract_strided_slice %3 {offsets = [22, 0], sizes = [1, 256], strides = [1, 1]} : vector<27x256xf32> to vector<1x256xf32>
    %117 = vector.broadcast %114 : vector<1x256xf32> to vector<24x256xf32>
    %118 = arith.subf %5, %117 : vector<24x256xf32>
    %119 = math.absf %118 : vector<24x256xf32>
    %cst_36 = arith.constant 1.000000e+00 : f32
    %120 = vector.broadcast %cst_36 : f32 to vector<24x256xf32>
    %121 = arith.subf %120, %119 : vector<24x256xf32>
    %cst_37 = arith.constant 0.000000e+00 : f32
    %122 = vector.broadcast %cst_37 : f32 to vector<24x256xf32>
    %123 = arith.maximumf %122, %121 : vector<24x256xf32>
    %124 = vector.broadcast %115 : vector<1x256xf32> to vector<18x256xf32>
    %125 = arith.subf %7, %124 : vector<18x256xf32>
    %126 = math.absf %125 : vector<18x256xf32>
    %cst_38 = arith.constant 1.000000e+00 : f32
    %127 = vector.broadcast %cst_38 : f32 to vector<18x256xf32>
    %128 = arith.subf %127, %126 : vector<18x256xf32>
    %cst_39 = arith.constant 0.000000e+00 : f32
    %129 = vector.broadcast %cst_39 : f32 to vector<18x256xf32>
    %130 = arith.maximumf %129, %128 : vector<18x256xf32>
    %cst_40 = arith.constant dense<0.000000e+00> : vector<96x256xf32>
    %131 = tpu.matmul %1, %130, %cst_40 {dimension_numbers = #tpu.dot_dimension_numbers<[1], [0], [0], [1], [0, 0, 1, 1], [], []>} : vector<96x18xf32>, vector<18x256xf32>, vector<96x256xf32> -> vector<96x256xf32>
    %132 = vector.shape_cast %131 : vector<96x256xf32> to vector<4x24x256xf32>
    %133 = vector.shape_cast %123 : vector<24x256xf32> to vector<1x24x256xf32>
    %134 = vector.broadcast %133 : vector<1x24x256xf32> to vector<4x24x256xf32>
    %135 = arith.mulf %132, %134 : vector<4x24x256xf32>
    %cst_41 = arith.constant dense<0.000000e+00> : vector<4x256xf32>
    %136 = vector.multi_reduction <add>, %135, %cst_41 [1] : vector<4x24x256xf32> to vector<4x256xf32>
    %137 = vector.broadcast %116 : vector<1x256xf32> to vector<4x256xf32>
    %138 = arith.mulf %136, %137 : vector<4x256xf32>
    %c32 = arith.constant 32 : index
    %c0_42 = arith.constant 0 : index
    %139 = vector.load %arg7[%c32, %c0_42] : memref<72x256xf32, #tpu.memory_space<vmem>>, vector<4x256xf32>
    tpu.vector_store %arg7[%c32, %c0_42], %138 {strides = array<i32>} : memref<72x256xf32, #tpu.memory_space<vmem>>, vector<4x256xf32>,
    %140 = vector.extract_strided_slice %3 {offsets = [5, 0], sizes = [1, 256], strides = [1, 1]} : vector<27x256xf32> to vector<1x256xf32>
    %141 = vector.extract_strided_slice %3 {offsets = [14, 0], sizes = [1, 256], strides = [1, 1]} : vector<27x256xf32> to vector<1x256xf32>
    %142 = vector.extract_strided_slice %3 {offsets = [23, 0], sizes = [1, 256], strides = [1, 1]} : vector<27x256xf32> to vector<1x256xf32>
    %143 = vector.broadcast %140 : vector<1x256xf32> to vector<24x256xf32>
    %144 = arith.subf %5, %143 : vector<24x256xf32>
    %145 = math.absf %144 : vector<24x256xf32>
    %cst_43 = arith.constant 1.000000e+00 : f32
    %146 = vector.broadcast %cst_43 : f32 to vector<24x256xf32>
    %147 = arith.subf %146, %145 : vector<24x256xf32>
    %cst_44 = arith.constant 0.000000e+00 : f32
    %148 = vector.broadcast %cst_44 : f32 to vector<24x256xf32>
    %149 = arith.maximumf %148, %147 : vector<24x256xf32>
    %150 = vector.broadcast %141 : vector<1x256xf32> to vector<18x256xf32>
    %151 = arith.subf %7, %150 : vector<18x256xf32>
    %152 = math.absf %151 : vector<18x256xf32>
    %cst_45 = arith.constant 1.000000e+00 : f32
    %153 = vector.broadcast %cst_45 : f32 to vector<18x256xf32>
    %154 = arith.subf %153, %152 : vector<18x256xf32>
    %cst_46 = arith.constant 0.000000e+00 : f32
    %155 = vector.broadcast %cst_46 : f32 to vector<18x256xf32>
    %156 = arith.maximumf %155, %154 : vector<18x256xf32>
    %cst_47 = arith.constant dense<0.000000e+00> : vector<96x256xf32>
    %157 = tpu.matmul %1, %156, %cst_47 {dimension_numbers = #tpu.dot_dimension_numbers<[1], [0], [0], [1], [0, 0, 1, 1], [], []>} : vector<96x18xf32>, vector<18x256xf32>, vector<96x256xf32> -> vector<96x256xf32>
    %158 = vector.shape_cast %157 : vector<96x256xf32> to vector<4x24x256xf32>
    %159 = vector.shape_cast %149 : vector<24x256xf32> to vector<1x24x256xf32>
    %160 = vector.broadcast %159 : vector<1x24x256xf32> to vector<4x24x256xf32>
    %161 = arith.mulf %158, %160 : vector<4x24x256xf32>
    %cst_48 = arith.constant dense<0.000000e+00> : vector<4x256xf32>
    %162 = vector.multi_reduction <add>, %161, %cst_48 [1] : vector<4x24x256xf32> to vector<4x256xf32>
    %163 = vector.broadcast %142 : vector<1x256xf32> to vector<4x256xf32>
    %164 = arith.mulf %162, %163 : vector<4x256xf32>
    %c40 = arith.constant 40 : index
    %c0_49 = arith.constant 0 : index
    %165 = vector.load %arg7[%c40, %c0_49] : memref<72x256xf32, #tpu.memory_space<vmem>>, vector<4x256xf32>
    tpu.vector_store %arg7[%c40, %c0_49], %164 {strides = array<i32>} : memref<72x256xf32, #tpu.memory_space<vmem>>, vector<4x256xf32>,
    %166 = vector.extract_strided_slice %3 {offsets = [6, 0], sizes = [1, 256], strides = [1, 1]} : vector<27x256xf32> to vector<1x256xf32>
    %167 = vector.extract_strided_slice %3 {offsets = [15, 0], sizes = [1, 256], strides = [1, 1]} : vector<27x256xf32> to vector<1x256xf32>
    %168 = vector.extract_strided_slice %3 {offsets = [24, 0], sizes = [1, 256], strides = [1, 1]} : vector<27x256xf32> to vector<1x256xf32>
    %169 = vector.broadcast %166 : vector<1x256xf32> to vector<24x256xf32>
    %170 = arith.subf %5, %169 : vector<24x256xf32>
    %171 = math.absf %170 : vector<24x256xf32>
    %cst_50 = arith.constant 1.000000e+00 : f32
    %172 = vector.broadcast %cst_50 : f32 to vector<24x256xf32>
    %173 = arith.subf %172, %171 : vector<24x256xf32>
    %cst_51 = arith.constant 0.000000e+00 : f32
    %174 = vector.broadcast %cst_51 : f32 to vector<24x256xf32>
    %175 = arith.maximumf %174, %173 : vector<24x256xf32>
    %176 = vector.broadcast %167 : vector<1x256xf32> to vector<18x256xf32>
    %177 = arith.subf %7, %176 : vector<18x256xf32>
    %178 = math.absf %177 : vector<18x256xf32>
    %cst_52 = arith.constant 1.000000e+00 : f32
    %179 = vector.broadcast %cst_52 : f32 to vector<18x256xf32>
    %180 = arith.subf %179, %178 : vector<18x256xf32>
    %cst_53 = arith.constant 0.000000e+00 : f32
    %181 = vector.broadcast %cst_53 : f32 to vector<18x256xf32>
    %182 = arith.maximumf %181, %180 : vector<18x256xf32>
    %cst_54 = arith.constant dense<0.000000e+00> : vector<96x256xf32>
    %183 = tpu.matmul %1, %182, %cst_54 {dimension_numbers = #tpu.dot_dimension_numbers<[1], [0], [0], [1], [0, 0, 1, 1], [], []>} : vector<96x18xf32>, vector<18x256xf32>, vector<96x256xf32> -> vector<96x256xf32>
    %184 = vector.shape_cast %183 : vector<96x256xf32> to vector<4x24x256xf32>
    %185 = vector.shape_cast %175 : vector<24x256xf32> to vector<1x24x256xf32>
    %186 = vector.broadcast %185 : vector<1x24x256xf32> to vector<4x24x256xf32>
    %187 = arith.mulf %184, %186 : vector<4x24x256xf32>
    %cst_55 = arith.constant dense<0.000000e+00> : vector<4x256xf32>
    %188 = vector.multi_reduction <add>, %187, %cst_55 [1] : vector<4x24x256xf32> to vector<4x256xf32>
    %189 = vector.broadcast %168 : vector<1x256xf32> to vector<4x256xf32>
    %190 = arith.mulf %188, %189 : vector<4x256xf32>
    %c48 = arith.constant 48 : index
    %c0_56 = arith.constant 0 : index
    %191 = vector.load %arg7[%c48, %c0_56] : memref<72x256xf32, #tpu.memory_space<vmem>>, vector<4x256xf32>
    tpu.vector_store %arg7[%c48, %c0_56], %190 {strides = array<i32>} : memref<72x256xf32, #tpu.memory_space<vmem>>, vector<4x256xf32>,
    %192 = vector.extract_strided_slice %3 {offsets = [7, 0], sizes = [1, 256], strides = [1, 1]} : vector<27x256xf32> to vector<1x256xf32>
    %193 = vector.extract_strided_slice %3 {offsets = [16, 0], sizes = [1, 256], strides = [1, 1]} : vector<27x256xf32> to vector<1x256xf32>
    %194 = vector.extract_strided_slice %3 {offsets = [25, 0], sizes = [1, 256], strides = [1, 1]} : vector<27x256xf32> to vector<1x256xf32>
    %195 = vector.broadcast %192 : vector<1x256xf32> to vector<24x256xf32>
    %196 = arith.subf %5, %195 : vector<24x256xf32>
    %197 = math.absf %196 : vector<24x256xf32>
    %cst_57 = arith.constant 1.000000e+00 : f32
    %198 = vector.broadcast %cst_57 : f32 to vector<24x256xf32>
    %199 = arith.subf %198, %197 : vector<24x256xf32>
    %cst_58 = arith.constant 0.000000e+00 : f32
    %200 = vector.broadcast %cst_58 : f32 to vector<24x256xf32>
    %201 = arith.maximumf %200, %199 : vector<24x256xf32>
    %202 = vector.broadcast %193 : vector<1x256xf32> to vector<18x256xf32>
    %203 = arith.subf %7, %202 : vector<18x256xf32>
    %204 = math.absf %203 : vector<18x256xf32>
    %cst_59 = arith.constant 1.000000e+00 : f32
    %205 = vector.broadcast %cst_59 : f32 to vector<18x256xf32>
    %206 = arith.subf %205, %204 : vector<18x256xf32>
    %cst_60 = arith.constant 0.000000e+00 : f32
    %207 = vector.broadcast %cst_60 : f32 to vector<18x256xf32>
    %208 = arith.maximumf %207, %206 : vector<18x256xf32>
    %cst_61 = arith.constant dense<0.000000e+00> : vector<96x256xf32>
    %209 = tpu.matmul %1, %208, %cst_61 {dimension_numbers = #tpu.dot_dimension_numbers<[1], [0], [0], [1], [0, 0, 1, 1], [], []>} : vector<96x18xf32>, vector<18x256xf32>, vector<96x256xf32> -> vector<96x256xf32>
    %210 = vector.shape_cast %209 : vector<96x256xf32> to vector<4x24x256xf32>
    %211 = vector.shape_cast %201 : vector<24x256xf32> to vector<1x24x256xf32>
    %212 = vector.broadcast %211 : vector<1x24x256xf32> to vector<4x24x256xf32>
    %213 = arith.mulf %210, %212 : vector<4x24x256xf32>
    %cst_62 = arith.constant dense<0.000000e+00> : vector<4x256xf32>
    %214 = vector.multi_reduction <add>, %213, %cst_62 [1] : vector<4x24x256xf32> to vector<4x256xf32>
    %215 = vector.broadcast %194 : vector<1x256xf32> to vector<4x256xf32>
    %216 = arith.mulf %214, %215 : vector<4x256xf32>
    %c56 = arith.constant 56 : index
    %c0_63 = arith.constant 0 : index
    %217 = vector.load %arg7[%c56, %c0_63] : memref<72x256xf32, #tpu.memory_space<vmem>>, vector<4x256xf32>
    tpu.vector_store %arg7[%c56, %c0_63], %216 {strides = array<i32>} : memref<72x256xf32, #tpu.memory_space<vmem>>, vector<4x256xf32>,
    %218 = vector.extract_strided_slice %3 {offsets = [8, 0], sizes = [1, 256], strides = [1, 1]} : vector<27x256xf32> to vector<1x256xf32>
    %219 = vector.extract_strided_slice %3 {offsets = [17, 0], sizes = [1, 256], strides = [1, 1]} : vector<27x256xf32> to vector<1x256xf32>
    %220 = vector.extract_strided_slice %3 {offsets = [26, 0], sizes = [1, 256], strides = [1, 1]} : vector<27x256xf32> to vector<1x256xf32>
    %221 = vector.broadcast %218 : vector<1x256xf32> to vector<24x256xf32>
    %222 = arith.subf %5, %221 : vector<24x256xf32>
    %223 = math.absf %222 : vector<24x256xf32>
    %cst_64 = arith.constant 1.000000e+00 : f32
    %224 = vector.broadcast %cst_64 : f32 to vector<24x256xf32>
    %225 = arith.subf %224, %223 : vector<24x256xf32>
    %cst_65 = arith.constant 0.000000e+00 : f32
    %226 = vector.broadcast %cst_65 : f32 to vector<24x256xf32>
    %227 = arith.maximumf %226, %225 : vector<24x256xf32>
    %228 = vector.broadcast %219 : vector<1x256xf32> to vector<18x256xf32>
    %229 = arith.subf %7, %228 : vector<18x256xf32>
    %230 = math.absf %229 : vector<18x256xf32>
    %cst_66 = arith.constant 1.000000e+00 : f32
    %231 = vector.broadcast %cst_66 : f32 to vector<18x256xf32>
    %232 = arith.subf %231, %230 : vector<18x256xf32>
    %cst_67 = arith.constant 0.000000e+00 : f32
    %233 = vector.broadcast %cst_67 : f32 to vector<18x256xf32>
    %234 = arith.maximumf %233, %232 : vector<18x256xf32>
    %cst_68 = arith.constant dense<0.000000e+00> : vector<96x256xf32>
    %235 = tpu.matmul %1, %234, %cst_68 {dimension_numbers = #tpu.dot_dimension_numbers<[1], [0], [0], [1], [0, 0, 1, 1], [], []>} : vector<96x18xf32>, vector<18x256xf32>, vector<96x256xf32> -> vector<96x256xf32>
    %236 = vector.shape_cast %235 : vector<96x256xf32> to vector<4x24x256xf32>
    %237 = vector.shape_cast %227 : vector<24x256xf32> to vector<1x24x256xf32>
    %238 = vector.broadcast %237 : vector<1x24x256xf32> to vector<4x24x256xf32>
    %239 = arith.mulf %236, %238 : vector<4x24x256xf32>
    %cst_69 = arith.constant dense<0.000000e+00> : vector<4x256xf32>
    %240 = vector.multi_reduction <add>, %239, %cst_69 [1] : vector<4x24x256xf32> to vector<4x256xf32>
    %241 = vector.broadcast %220 : vector<1x256xf32> to vector<4x256xf32>
    %242 = arith.mulf %240, %241 : vector<4x256xf32>
    %c64 = arith.constant 64 : index
    %c0_70 = arith.constant 0 : index
    %243 = vector.load %arg7[%c64, %c0_70] : memref<72x256xf32, #tpu.memory_space<vmem>>, vector<4x256xf32>
    tpu.vector_store %arg7[%c64, %c0_70], %242 {strides = array<i32>} : memref<72x256xf32, #tpu.memory_space<vmem>>, vector<4x256xf32>,
    %c0_71 = arith.constant 0 : index
    %c0_72 = arith.constant 0 : index
    %244 = vector.load %arg4[%c0_71, %c0_72] : memref<8x72xf32, #tpu.memory_space<vmem>>, vector<8x72xf32>
    %c0_73 = arith.constant 0 : index
    %c0_74 = arith.constant 0 : index
    %245 = vector.load %arg7[%c0_73, %c0_74] : memref<72x256xf32, #tpu.memory_space<vmem>>, vector<72x256xf32>
    %cst_75 = arith.constant dense<0.000000e+00> : vector<8x256xf32>
    %246 = tpu.matmul %244, %245, %cst_75 {dimension_numbers = #tpu.dot_dimension_numbers<[1], [0], [0], [1], [0, 0, 1, 1], [], []>} : vector<8x72xf32>, vector<72x256xf32>, vector<8x256xf32> -> vector<8x256xf32>
    %c0_76 = arith.constant 0 : index
    %c0_77 = arith.constant 0 : index
    %247 = vector.load %arg5[%c0_76, %c0_77] : memref<8x1xf32, #tpu.memory_space<vmem>>, vector<8x1xf32>
    %248 = vector.broadcast %247 : vector<8x1xf32> to vector<8x256xf32>
    %249 = arith.addf %246, %248 : vector<8x256xf32>
    %c0_78 = arith.constant 0 : index
    %c0_79 = arith.constant 0 : index
    %c0_80 = arith.constant 0 : index
    %250 = vector.load %arg6[%c0_78, %c0_79, %c0_80] : memref<1x8x256xf32, #tpu.memory_space<vmem>>, vector<1x8x256xf32>
    %251 = vector.shape_cast %250 : vector<1x8x256xf32> to vector<8x256xf32>
    %252 = vector.shape_cast %249 : vector<8x256xf32> to vector<1x8x256xf32>
    tpu.vector_store %arg6[%c0_78, %c0_79, %c0_80], %252 {strides = array<i32>} : memref<1x8x256xf32, #tpu.memory_space<vmem>>, vector<1x8x256xf32>,
    return
  }
  func.func @transform_0(%arg0: i32, %arg1: i32) -> (i32, i32, i32) {
    %c0_i32 = arith.constant 0 : i32
    %c0_i32_0 = arith.constant 0 : i32
    %c0_i32_1 = arith.constant 0 : i32
    return %arg0, %c0_i32, %c0_i32_0 : i32, i32, i32
  }
  func.func @transform_1(%arg0: i32, %arg1: i32) -> (i32, i32, i32) {
    %c0_i32 = arith.constant 0 : i32
    %c0_i32_0 = arith.constant 0 : i32
    return %arg0, %c0_i32, %arg1 : i32, i32, i32
  }
  func.func @transform_2(%arg0: i32, %arg1: i32) -> (i32, i32) {
    %c0_i32 = arith.constant 0 : i32
    %c0_i32_0 = arith.constant 0 : i32
    %c0_i32_1 = arith.constant 0 : i32
    return %c0_i32, %c0_i32_0 : i32, i32
  }
  func.func @transform_3(%arg0: i32, %arg1: i32) -> (i32, i32) {
    %c0_i32 = arith.constant 0 : i32
    %c0_i32_0 = arith.constant 0 : i32
    %c0_i32_1 = arith.constant 0 : i32
    return %c0_i32, %c0_i32_0 : i32, i32
  }
  func.func @transform_4(%arg0: i32, %arg1: i32) -> (i32, i32, i32) {
    %c0_i32 = arith.constant 0 : i32
    %c0_i32_0 = arith.constant 0 : i32
    return %arg0, %c0_i32, %arg1 : i32, i32, i32
  }
}

</mosaic_0001>

<llo_original>
// kernel: tpu_custom_call.1
$region0: #{tpu_custom_call.1}
  #allocation0 [shape = 'u32[]', space=smem, size = 0x4, offset = 0x4, fixed_abs, tag = 'smem constant byte address 0x4 - core index']
  #allocation1 [shape = 'u32[144,128]{1,0:T(1,128)}', space=vmem, size = 0x12000, scoped, tag = 'internal scratch']
  #allocation2 [shape = 'f32[72,256]{1,0:T(8,128)}', space=vmem, size = 0x12000, scoped, tag = 'scratch operand']
  %s0 = inlined_call_operand.vmem [shape: f32[2,96,18], index: 0, kind: input, shape index: {}]
  %s1 = inlined_call_operand.vmem [shape: f32[2,27,256], index: 1, kind: input, shape index: {}]
  %s2 = inlined_call_operand.vmem [shape: f32[8,72], index: 2, kind: input, shape index: {}]
  %s3 = inlined_call_operand.vmem [shape: f32[8,1], index: 3, kind: input, shape index: {}]
  %s4 = inlined_call_operand.hbm [shape: f32[2,8,256], index: 4, kind: output, shape index: {}]
  %s5 = sld [smem:[#allocation0]]
  $region49: #{tpu_custom_call.1} parent=0
    _
  %s7 = ssub.s32 1, %s5
  %s8 = scalar_select 0, %s7, %s5
  $region1: #{tpu_custom_call.1} parent=0
    #allocation3 [shape = 'u8[16384]{0}', space=vmem, size = 0x4000, scoped, tag = 'output window, operand 0']
    #allocation4 [shape = 's32[2]{0}', space=sflag, size = 0x8, scoped, tag = 'scoped memory for tpu_custom_call.1']
    %9 = vsyncpa [#allocation4], 0
    %s10 = scalar_lea.sflag [#allocation4], 1
    %11 = vsyncpa %s10, 0
    loop: start=0, step=1, limit=4
    $region2: #{tpu_custom_call.1} parent=1 // loop_pre_header
      _
    $region3: #{tpu_custom_call.1} parent=1 // loop_header
      %s13 = sphi 0, %s17
      %p14 = scmp.ge.s32.totalorder %s13, 4
      %s20 = sphi 0, %s32
      %s21 = sphi 0, %s28
      %s22 = sphi 0, %s20
      %s23 = sphi 0, %s21
      %s24 = sphi 0, %s22
      %s25 = sphi 0, %s23
      %s35 = sphi 0, %s37
      %s38 = sphi 0, %s35
      %s39 = sphi 0, %s38
      %s55 = sphi 0, %s39
      %s63 = sphi 0, %s65
      %s66 = sphi 0, %s63
      %s67 = sphi 0, %s66
      %s83 = sphi 0, %s67
      %s87 = sphi 0, %s87
      %s89 = sphi 0, %s87
      %s90 = sphi 0, %s89
      %s104 = sphi 0, %s90
      %s108 = sphi 0, %s108
      %s110 = sphi 0, %s108
      %s111 = sphi 0, %s110
      %s125 = sphi 0, %s111
      %s133 = sphi 0, %s135
      %s136 = sphi 0, %s133
      %s137 = sphi 0, %s136
      %s153 = sphi 0, %s137
    $region4: #{tpu_custom_call.1} parent=1 // loop_header_branch
      %16 = sbr.rel (%p14) target = $region8
    $region5: #{tpu_custom_call.1} parent=1 // loop_body
      %s18 = ssub.s32 %s13, 1
      %s19 = ssub.s32 %s13, 2
      %s26 = sadd.s32 1, %s21
      %p27 = scmp.ge.s32.totalorder %s26, 1
      %s28 = scalar_select %p27, 0, %s26
      %s29 = sadd.s32 1, %s20
      %s30 = scalar_select %p27, %s29, %s20
      %p31 = scmp.ge.s32.totalorder %s30, 2
      %s32 = scalar_select %p31, 0, %s30
      %s33 = ssub.s32 %s20, %s32
      %p34 = scmp.eq.s32.totalorder %s33, 0
      %s36 = sadd.s32 %s35, 1
      %s37 = scalar_select %p34, %s35, %s36
      %p40 = pneg %p34
      %p41 = scmp.eq.s32.totalorder %s13, 1
      %p42 = por %p40, %p41
      %p43 = scmp.ne.s32.totalorder %s35, %s38
      %p44 = scmp.eq.s32.totalorder %s13, 0
      %p45 = por %p43, %p44
      %p46 = scmp.ne.s32.totalorder %s35, %s38
      %p47 = scmp.eq.s32.totalorder %s18, 1
      %p48 = por %p46, %p47
      %p49 = scmp.ne.s32.totalorder %s38, %s39
      %p50 = scmp.eq.s32.totalorder %s18, 0
      %p51 = por %p49, %p50
      %p52 = scmp.ne.s32.totalorder %s38, %s39
      %p53 = scmp.eq.s32.totalorder %s19, 1
      %p54 = por %p52, %p53
      %p56 = scmp.ne.s32.totalorder %s39, %s55
      %p57 = scmp.eq.s32.totalorder %s19, 0
      %p58 = por %p56, %p57
      %s59 = ssub.s32 %s20, %s32
      %s60 = ssub.s32 %s21, %s28
      %s61 = sor.u32 %s59, %s60
      %p62 = scmp.eq.s32.totalorder %s61, 0
      %s64 = sadd.s32 %s63, 1
      %s65 = scalar_select %p62, %s63, %s64
      %p68 = pneg %p62
      %p69 = scmp.eq.s32.totalorder %s13, 1
      %p70 = por %p68, %p69
      %p71 = scmp.ne.s32.totalorder %s63, %s66
      %p72 = scmp.eq.s32.totalorder %s13, 0
      %p73 = por %p71, %p72
      %p74 = scmp.ne.s32.totalorder %s63, %s66
      %p75 = scmp.eq.s32.totalorder %s18, 1
      %p76 = por %p74, %p75
      %p77 = scmp.ne.s32.totalorder %s66, %s67
      %p78 = scmp.eq.s32.totalorder %s18, 0
      %p79 = por %p77, %p78
      %p80 = scmp.ne.s32.totalorder %s66, %s67
      %p81 = scmp.eq.s32.totalorder %s19, 1
      %p82 = por %p80, %p81
      %p84 = scmp.ne.s32.totalorder %s67, %s83
      %p85 = scmp.eq.s32.totalorder %s19, 0
      %p86 = por %p84, %p85
      %s88 = sadd.s32 %s87, 1
      %p91 = scmp.eq.s32.totalorder %s13, 1
      %p92 = scmp.ne.s32.totalorder %s87, %s89
      %p93 = scmp.eq.s32.totalorder %s13, 0
      %p94 = por %p92, %p93
      %p95 = scmp.ne.s32.totalorder %s87, %s89
      %p96 = scmp.eq.s32.totalorder %s18, 1
      %p97 = por %p95, %p96
      %p98 = scmp.ne.s32.totalorder %s89, %s90
      %p99 = scmp.eq.s32.totalorder %s18, 0
      %p100 = por %p98, %p99
      %p101 = scmp.ne.s32.totalorder %s89, %s90
      %p102 = scmp.eq.s32.totalorder %s19, 1
      %p103 = por %p101, %p102
      %p105 = scmp.ne.s32.totalorder %s90, %s104
      %p106 = scmp.eq.s32.totalorder %s19, 0
      %p107 = por %p105, %p106
      %s109 = sadd.s32 %s108, 1
      %p112 = scmp.eq.s32.totalorder %s13, 1
      %p113 = scmp.ne.s32.totalorder %s108, %s110
      %p114 = scmp.eq.s32.totalorder %s13, 0
      %p115 = por %p113, %p114
      %p116 = scmp.ne.s32.totalorder %s108, %s110
      %p117 = scmp.eq.s32.totalorder %s18, 1
      %p118 = por %p116, %p117
      %p119 = scmp.ne.s32.totalorder %s110, %s111
      %p120 = scmp.eq.s32.totalorder %s18, 0
      %p121 = por %p119, %p120
      %p122 = scmp.ne.s32.totalorder %s110, %s111
      %p123 = scmp.eq.s32.totalorder %s19, 1
      %p124 = por %p122, %p123
      %p126 = scmp.ne.s32.totalorder %s111, %s125
      %p127 = scmp.eq.s32.totalorder %s19, 0
      %p128 = por %p126, %p127
      %s129 = ssub.s32 %s20, %s32
      %s130 = ssub.s32 %s21, %s28
      %s131 = sor.u32 %s129, %s130
      %p132 = scmp.eq.s32.totalorder %s131, 0
      %s134 = sadd.s32 %s133, 1
      %s135 = scalar_select %p132, %s133, %s134
      %p138 = pneg %p132
      %p139 = scmp.eq.s32.totalorder %s13, 1
      %p140 = por %p138, %p139
      %p141 = scmp.ne.s32.totalorder %s133, %s136
      %p142 = scmp.eq.s32.totalorder %s13, 0
      %p143 = por %p141, %p142
      %p144 = scmp.ne.s32.totalorder %s133, %s136
      %p145 = scmp.eq.s32.totalorder %s18, 1
      %p146 = por %p144, %p145
      %p147 = scmp.ne.s32.totalorder %s136, %s137
      %p148 = scmp.eq.s32.totalorder %s18, 0
      %p149 = por %p147, %p148
      %p150 = scmp.ne.s32.totalorder %s136, %s137
      %p151 = scmp.eq.s32.totalorder %s19, 1
      %p152 = por %p150, %p151
      %p154 = scmp.ne.s32.totalorder %s137, %s153
      %p155 = scmp.eq.s32.totalorder %s19, 0
      %p156 = por %p154, %p155
      %p157 = scmp.le.s32.totalorder 1, %s13
      %p158 = scmp.lt.s32.totalorder %s13, 3
      %p159 = pnand %p157, %p158
      %p160 = pneg %p159
      // Predicated region
      $region9: #{tpu_custom_call.1} parent=5 // pred_check
        _
      $region10: #{tpu_custom_call.1} parent=5 // pred_check_branch
        %162 = sbr.rel (%p159) target = $region12
      $region11: #{tpu_custom_call.1} parent=5 // pred_region
        %s163 = ssub.s32 %s13, 1
        // Predicated region
        $region13: #{tpu_custom_call.1} parent=11 // pred_check
          %p164 = pneg %p100
        $region14: #{tpu_custom_call.1} parent=11 // pred_check_branch
          %166 = sbr.rel (%p164) target = $region16
        $region15: #{tpu_custom_call.1} parent=11 // pred_region
          _
        $region16: #{tpu_custom_call.1} parent=11 // pred_fallthru
          _
        // Predicated region
        $region17: #{tpu_custom_call.1} parent=11 // pred_check
          %p167 = pneg %p121
        $region18: #{tpu_custom_call.1} parent=11 // pred_check_branch
          %169 = sbr.rel (%p167) target = $region20
        $region19: #{tpu_custom_call.1} parent=11 // pred_region
          _
        $region20: #{tpu_custom_call.1} parent=11 // pred_fallthru
          _
      $region12: #{tpu_custom_call.1} parent=5 // pred_fallthru
        _
      %p170 = scmp.lt.s32.totalorder %s13, 2
      // Predicated region
      $region21: #{tpu_custom_call.1} parent=5 // pred_check
        %p171 = pneg %p170
      $region22: #{tpu_custom_call.1} parent=5 // pred_check_branch
        %173 = sbr.rel (%p171) target = $region24
      $region23: #{tpu_custom_call.1} parent=5 // pred_region
        // Predicated region
        $region25: #{tpu_custom_call.1} parent=23 // pred_check
          %p174 = pneg %p45
        $region26: #{tpu_custom_call.1} parent=23 // pred_check_branch
          %176 = sbr.rel (%p174) target = $region28
        $region27: #{tpu_custom_call.1} parent=23 // pred_region
          %p177 = scmp.lt.s32.totalorder %s20, 1
          %s178 = scalar_select %p177, %s20, 1
          %s179 = smul.addr %s178, 12
          %s180 = smul.addr %s179, 8
          %s181 = scalar_lea.vmem %s0, %s180
        $region28: #{tpu_custom_call.1} parent=23 // pred_fallthru
          _
        // Predicated region
        $region29: #{tpu_custom_call.1} parent=23 // pred_check
          %p182 = pneg %p73
        $region30: #{tpu_custom_call.1} parent=23 // pred_check_branch
          %184 = sbr.rel (%p182) target = $region32
        $region31: #{tpu_custom_call.1} parent=23 // pred_region
          %s185 = smul.u32 2, %s21
          %p186 = scmp.lt.s32.totalorder %s20, 1
          %s187 = scalar_select %p186, %s20, 1
          %p188 = scmp.lt.s32.totalorder %s185, 1
          %s189 = scalar_select %p188, %s185, 1
          %s190 = smul.addr %s187, 8
          %s191 = sadd.s32 %s189, %s190
          %s192 = smul.addr %s191, 8
          %s193 = scalar_lea.vmem %s1, %s192
          %s194 = smul.u32 2, %s21
        $region32: #{tpu_custom_call.1} parent=23 // pred_fallthru
          _
      $region24: #{tpu_custom_call.1} parent=5 // pred_fallthru
        _
      %p195 = scmp.le.s32.totalorder 1, %s13
      %p196 = scmp.lt.s32.totalorder %s13, 3
      %p197 = pnand %p195, %p196
      %p198 = pneg %p197
      // Predicated region
      $region33: #{tpu_custom_call.1} parent=5 // pred_check
        _
      $region34: #{tpu_custom_call.1} parent=5 // pred_check_branch
        %200 = sbr.rel (%p197) target = $region36
      $region35: #{tpu_custom_call.1} parent=5 // pred_region
        %s201 = ssub.s32 %s13, 1
        %p202 = scmp.lt.s32.totalorder %s22, 1
        %s203 = scalar_select %p202, %s22, 1
        %s204 = smul.addr %s203, 12
        %s205 = smul.addr %s204, 8
        %s206 = scalar_lea.vmem %s0, %s205
        %p207 = pneg %p51
        %p208 = pneg %p48
        %s209 = smul.u32 2, %s23
        %p210 = scmp.lt.s32.totalorder %s22, 1
        %s211 = scalar_select %p210, %s22, 1
        %p212 = scmp.lt.s32.totalorder %s209, 1
        %s213 = scalar_select %p212, %s209, 1
        %s214 = smul.addr %s211, 8
        %s215 = sadd.s32 %s213, %s214
        %s216 = smul.addr %s215, 8
        %s217 = scalar_lea.vmem %s1, %s216
        %p218 = pneg %p79
        %p219 = pneg %p76
        %p220 = pneg %p100
        %p221 = pneg %p97
        %p222 = pneg %p121
        %p223 = pneg %p118
        %p224 = pneg %p149
        %p225 = pneg %p146
        %s226 = sand.u32 %s136, 1
        %s227 = scalar_lea.sflag [#allocation4], %s226
        %s228 = sand.u32 %s136, 1
        %s229 = smul.addr %s228, 16
        %s230 = scalar_lea.vmem [#allocation3], %s229
        %p231 = scmp.lt.s32.totalorder %s22, 1
        %s232 = scalar_select %p231, %s22, 1
        %s233 = smul.addr %s232, 12
        %s234 = smul.addr %s233, 8
        %s235 = scalar_lea.vmem %s0, %s234
        %s236 = smul.u32 2, %s23
        %p237 = scmp.lt.s32.totalorder %s22, 1
        %s238 = scalar_select %p237, %s22, 1
        %p239 = scmp.lt.s32.totalorder %s236, 1
        %s240 = scalar_select %p239, %s236, 1
        %s241 = smul.addr %s238, 8
        %s242 = sadd.s32 %s240, %s241
        %s243 = smul.addr %s242, 8
        %s244 = scalar_lea.vmem %s1, %s243
        %s245 = smul.u32 2, %s23
        %s246 = smul.u32 2, %s23
        %v247 = vld [vmem:[%s235] sm:$0xff]
        %v248 = vld [vmem:[%s235 + $0x8] sm:$0xff]
        %v249 = vld [vmem:[%s235 + $0x10] sm:$0xff]
        %v250 = vld [vmem:[%s235 + $0x18] sm:$0xff]
        %v251 = vld [vmem:[%s235 + $0x20] sm:$0xff]
        %v252 = vld [vmem:[%s235 + $0x28] sm:$0xff]
        %v253 = vld [vmem:[%s235 + $0x30] sm:$0xff]
        %v254 = vld [vmem:[%s235 + $0x38] sm:$0xff]
        %v255 = vld [vmem:[%s235 + $0x40] sm:$0xff]
        %v256 = vld [vmem:[%s235 + $0x48] sm:$0xff]
        %v257 = vld [vmem:[%s235 + $0x50] sm:$0xff]
        %v258 = vld [vmem:[%s235 + $0x58] sm:$0xff]
        %v259 = vld [vmem:[%s244] sm:$0xff]
        %v260 = vld [vmem:[%s244 + $0x8] sm:$0xff]
        %v261 = vld [vmem:[%s244 + $0x10] sm:$0xff]
        %v262 = vld [vmem:[%s244 + $0x18] sm:$0xff]
        %v263 = vld [vmem:[%s244 + $0x20] sm:$0xff]
        %v264 = vld [vmem:[%s244 + $0x28] sm:$0xff]
        %v265 = vld [vmem:[%s244 + $0x30] sm:$0x7]
        %v266 = vld [vmem:[%s244 + $0x38] sm:$0x7]
        %v267 = vlaneseq
        %v268 = vshrl.u32 %v267, 7
        %v269 = vadd.s32 %v268, 8
        %v270 = vadd.s32 %v268, 16
        %v271 = vcvt.s32.f32 %v268
        %v272 = vcvt.s32.f32 %v269
        %v273 = vcvt.s32.f32 %v270
        %274 = vst [vmem:[#allocation2] sm:$0xff] 0.0
        %275 = vst [vmem:[#allocation2 + $0x8] sm:$0xff] 0.0
        %276 = vst [vmem:[#allocation2 + $0x10] sm:$0xff] 0.0
        %277 = vst [vmem:[#allocation2 + $0x18] sm:$0xff] 0.0
        %278 = vst [vmem:[#allocation2 + $0x20] sm:$0xff] 0.0
        %279 = vst [vmem:[#allocation2 + $0x28] sm:$0xff] 0.0
        %280 = vst [vmem:[#allocation2 + $0x30] sm:$0xff] 0.0
        %281 = vst [vmem:[#allocation2 + $0x38] sm:$0xff] 0.0
        %282 = vst [vmem:[#allocation2 + $0x40] sm:$0xff] 0.0
        %283 = vst [vmem:[#allocation2 + $0x48] sm:$0xff] 0.0
        %284 = vst [vmem:[#allocation2 + $0x50] sm:$0xff] 0.0
        %285 = vst [vmem:[#allocation2 + $0x58] sm:$0xff] 0.0
        %286 = vst [vmem:[#allocation2 + $0x60] sm:$0xff] 0.0
        %287 = vst [vmem:[#allocation2 + $0x68] sm:$0xff] 0.0
        %288 = vst [vmem:[#allocation2 + $0x70] sm:$0xff] 0.0
        %289 = vst [vmem:[#allocation2 + $0x78] sm:$0xff] 0.0
        %290 = vst [vmem:[#allocation2 + $0x80] sm:$0xff] 0.0
        %291 = vst [vmem:[#allocation2 + $0x88] sm:$0xff] 0.0
        %v292 = vlaneseq
        %v293 = vshrl.u32 %v292, 7
        %v294 = vsub.s32 0, %v293
        %v295 = vrot.slane %v259, %v294
        %v296 = vlaneseq
        %v297 = vshrl.u32 %v296, 7
        %v298 = vsub.s32 0, %v297
        %v299 = vrot.slane %v260, %v298
        %v300 = vsub.f32 %v271, %v295
        %v301 = vsub.f32 %v271, %v299
        %v302 = vsub.f32 %v272, %v295
        %v303 = vsub.f32 %v272, %v299
        %v304 = vsub.f32 %v273, %v295
        %v305 = vsub.f32 %v273, %v299
        %v306 = vand.u32 2147483647, %v300
        %v307 = vand.u32 2147483647, %v301
        %v308 = vand.u32 2147483647, %v302
        %v309 = vand.u32 2147483647, %v303
        %v310 = vand.u32 2147483647, %v304
        %v311 = vand.u32 2147483647, %v305
        %v312 = vsub.f32 1.0, %v306
        %v313 = vsub.f32 1.0, %v307
        %v314 = vsub.f32 1.0, %v308
        %v315 = vsub.f32 1.0, %v309
        %v316 = vsub.f32 1.0, %v310
        %v317 = vsub.f32 1.0, %v311
        %v318 = vmax.f32 %v312, 0.0
        %v319 = vmax.f32 %v313, 0.0
        %v320 = vmax.f32 %v314, 0.0
        %v321 = vmax.f32 %v315, 0.0
        %v322 = vmax.f32 %v316, 0.0
        %v323 = vmax.f32 %v317, 0.0
        %v324 = vlaneseq
        %v325 = vshrl.u32 %v324, 7
        %v326 = vsub.s32 1, %v325
        %v327 = vrot.slane %v261, %v326
        %v328 = vlaneseq
        %v329 = vshrl.u32 %v328, 7
        %v330 = vsub.s32 1, %v329
        %v331 = vrot.slane %v262, %v330
        %v332 = vsub.f32 %v271, %v327
        %v333 = vsub.f32 %v271, %v331
        %v334 = vsub.f32 %v272, %v327
        %v335 = vsub.f32 %v272, %v331
        %v336 = vsub.f32 %v273, %v327
        %v337 = vsub.f32 %v273, %v331
        %v338 = vand.u32 2147483647, %v332
        %v339 = vand.u32 2147483647, %v333
        %v340 = vand.u32 2147483647, %v334
        %v341 = vand.u32 2147483647, %v335
        %v342 = vand.u32 2147483647, %v336
        %v343 = vand.u32 2147483647, %v337
        %v344 = vsub.f32 1.0, %v338
        %v345 = vsub.f32 1.0, %v339
        %v346 = vsub.f32 1.0, %v340
        %v347 = vsub.f32 1.0, %v341
        %v348 = vsub.f32 1.0, %v342
        %v349 = vsub.f32 1.0, %v343
        %v350 = vmax.f32 %v344, 0.0
        %v351 = vmax.f32 %v345, 0.0
        %v352 = vmax.f32 %v346, 0.0
        %v353 = vmax.f32 %v347, 0.0
        %v354 = vmax.f32 %v348, 0.0
        %v355 = vmax.f32 %v349, 0.0
        %vm356 = vcmask 146432
        %v358 = vsel %vm356, %v247, 0
        %v361 = vsel %vm356, %v248, 0
        %v364 = vsel %vm356, %v249, 0
        %v367 = vsel %vm356, %v250, 0
        %v370 = vsel %vm356, %v251, 0
        %v373 = vsel %vm356, %v252, 0
        %v376 = vsel %vm356, %v253, 0
        %v379 = vsel %vm356, %v254, 0
        %v382 = vsel %vm356, %v255, 0
        %v385 = vsel %vm356, %v256, 0
        %v388 = vsel %vm356, %v257, 0
        %v391 = vsel %vm356, %v258, 0
        %vm393 = vcmask 1041408
        %v395 = vsel %vm393, %v354, 0
        %v398 = vsel %vm393, %v355, 0
        %400 = vmatprep.subr.mxu0 %v351
        %401 = vmatpush1.msra.mxu0 %v350
        %402 = vmatprep.subr.mxu0 %v353
        %403 = vmatpush1.msra.mxu0 %v352
        %404 = vmatprep.subr.mxu0 %v398
        %405 = vmatpush1.msra.mxu0 %v395
        %406 = vmatprep.subr.mxu0 0.0
        %407 = vmatpush1.msra.mxu0 0.0
        %408 = vmatprep.subr.mxu0 0.0
        %409 = vmatpush1.msra.mxu0 0.0
        %410 = vmatprep.subr.mxu0 0.0
        %411 = vmatpush1.msra.mxu0 0.0
        %412 = vmatprep.subr.mxu0 0.0
        %413 = vmatpush1.msra.mxu0 0.0
        %414 = vmatprep.subr.mxu0 0.0
        %415 = vmatpush1.msra.mxu0 0.0
        %416 = vmatprep.subr.mxu0 0.0
        %417 = vmatpush1.msra.mxu0 0.0
        %418 = vmatprep.subr.mxu0 0.0
        %419 = vmatpush1.msra.mxu0 0.0
        %420 = vmatprep.subr.mxu0 0.0
        %421 = vmatpush1.msra.mxu0 0.0
        %422 = vmatprep.subr.mxu0 0.0
        %423 = vmatpush1.msra.mxu0 0.0
        %424 = vmatprep.subr.mxu0 0.0
        %425 = vmatpush1.msra.mxu0 0.0
        %426 = vmatprep.subr.mxu0 0.0
        %427 = vmatpush1.msra.mxu0 0.0
        %428 = vmatprep.subr.mxu0 0.0
        %429 = vmatpush1.msra.mxu0 0.0
        %430 = vmatprep.subr.mxu0 0.0
        %431 = vmatpush1.msra.mxu0 0.0
        %432 = vmatprep.subr.mxu0 0.0
        %433 = vmatpush1.msra.mxu0 0.0
        %434 = vmatprep.subr.mxu0 0.0
        %435 = vmatpush1.msra.mxu0 0.0
        %436 = vmatprep.subr.mxu0 0.0
        %437 = vmatpush1.msra.mxu0 0.0
        %438 = vmatprep.subr.mxu0 0.0
        %439 = vmatpush1.msra.mxu0 0.0
        %440 = vmatprep.subr.mxu0 0.0
        %441 = vmatpush1.msra.mxu0 0.0
        %442 = vmatprep.subr.mxu0 0.0
        %443 = vmatpush1.msra.mxu0 0.0
        %444 = vmatprep.subr.mxu0 0.0
        %445 = vmatpush1.msra.mxu0 0.0
        %446 = vmatprep.subr.mxu0 0.0
        %447 = vmatpush1.msra.mxu0 0.0
        %448 = vmatprep.subr.mxu0 0.0
        %449 = vmatpush1.msra.mxu0 0.0
        %450 = vmatprep.subr.mxu0 0.0
        %451 = vmatpush1.msra.mxu0 0.0
        %452 = vmatprep.subr.mxu0 0.0
        %453 = vmatpush1.msra.mxu0 0.0
        %454 = vmatprep.subr.mxu0 0.0
        %455 = vmatpush1.msra.mxu0 0.0
        %456 = vmatprep.subr.mxu0 0.0
        %457 = vmatpush1.msra.mxu0 0.0
        %458 = vmatprep.subr.mxu0 0.0
        %459 = vmatpush1.msra.mxu0 0.0
        %460 = vmatprep.subr.mxu0 0.0
        %461 = vmatpush1.msra.mxu0 0.0
        %462 = vmatprep.subr.mxu0 0.0
        %463 = vmatpush1.msra.mxu0 0.0
        %464 = vmatprep.mubr.f32.mxu0 0.0
        %465 = vmatmul.mubr.f32.gmra.mrb[0].mxu0 %v358
        %v466 = vpop.f32.mrb[0].mxu0
        %v467 = vadd.f32 0.0, %v466
        %v468 = vpop.f32.mrb[0].mxu0
        %v469 = vadd.f32 0.0, %v468
        %470 = vmatprep.mubr.f32.mxu0 0.0
        %471 = vmatmul.mubr.f32.gmra.mrb[0].mxu0 %v361
        %v472 = vpop.f32.mrb[0].mxu0
        %v473 = vadd.f32 0.0, %v472
        %v474 = vpop.f32.mrb[0].mxu0
        %v475 = vadd.f32 0.0, %v474
        %476 = vmatprep.mubr.f32.mxu0 0.0
        %477 = vmatmul.mubr.f32.gmra.mrb[0].mxu0 %v364
        %v478 = vpop.f32.mrb[0].mxu0
        %v479 = vadd.f32 0.0, %v478
        %v480 = vpop.f32.mrb[0].mxu0
        %v481 = vadd.f32 0.0, %v480
        %482 = vmatprep.mubr.f32.mxu0 0.0
        %483 = vmatmul.mubr.f32.gmra.mrb[0].mxu0 %v367
        %v484 = vpop.f32.mrb[0].mxu0
        %v485 = vadd.f32 0.0, %v484
        %v486 = vpop.f32.mrb[0].mxu0
        %v487 = vadd.f32 0.0, %v486
        %488 = vmatprep.mubr.f32.mxu0 0.0
        %489 = vmatmul.mubr.f32.gmra.mrb[0].mxu0 %v370
        %v490 = vpop.f32.mrb[0].mxu0
        %v491 = vadd.f32 0.0, %v490
        %v492 = vpop.f32.mrb[0].mxu0
        %v493 = vadd.f32 0.0, %v492
        %494 = vmatprep.mubr.f32.mxu0 0.0
        %495 = vmatmul.mubr.f32.gmra.mrb[0].mxu0 %v373
        %v496 = vpop.f32.mrb[0].mxu0
        %v497 = vadd.f32 0.0, %v496
        %v498 = vpop.f32.mrb[0].mxu0
        %v499 = vadd.f32 0.0, %v498
        %500 = vmatprep.mubr.f32.mxu0 0.0
        %501 = vmatmul.mubr.f32.gmra.mrb[0].mxu0 %v376
        %v502 = vpop.f32.mrb[0].mxu0
        %v503 = vadd.f32 0.0, %v502
        %v504 = vpop.f32.mrb[0].mxu0
        %v505 = vadd.f32 0.0, %v504
        %506 = vmatprep.mubr.f32.mxu0 0.0
        %507 = vmatmul.mubr.f32.gmra.mrb[0].mxu0 %v379
        %v508 = vpop.f32.mrb[0].mxu0
        %v509 = vadd.f32 0.0, %v508
        %v510 = vpop.f32.mrb[0].mxu0
        %v511 = vadd.f32 0.0, %v510
        %512 = vmatprep.mubr.f32.mxu0 0.0
        %513 = vmatmul.mubr.f32.gmra.mrb[0].mxu0 %v382
        %v514 = vpop.f32.mrb[0].mxu0
        %v515 = vadd.f32 0.0, %v514
        %v516 = vpop.f32.mrb[0].mxu0
        %v517 = vadd.f32 0.0, %v516
        %518 = vmatprep.mubr.f32.mxu0 0.0
        %519 = vmatmul.mubr.f32.gmra.mrb[0].mxu0 %v385
        %v520 = vpop.f32.mrb[0].mxu0
        %v521 = vadd.f32 0.0, %v520
        %v522 = vpop.f32.mrb[0].mxu0
        %v523 = vadd.f32 0.0, %v522
        %524 = vmatprep.mubr.f32.mxu0 0.0
        %525 = vmatmul.mubr.f32.gmra.mrb[0].mxu0 %v388
        %v526 = vpop.f32.mrb[0].mxu0
        %v527 = vadd.f32 0.0, %v526
        %v528 = vpop.f32.mrb[0].mxu0
        %v529 = vadd.f32 0.0, %v528
        %530 = vmatprep.mubr.f32.mxu0 0.0
        %531 = vmatmul.mubr.f32.gmra.mrb[0].mxu0 %v391
        %v532 = vpop.f32.mrb[0].mxu0
        %v533 = vadd.f32 0.0, %v532
        %v534 = vpop.f32.mrb[0].mxu0
        %v535 = vadd.f32 0.0, %v534
        %536 = vdwg.mxu0
        %v537 = vmul.f32 %v467, %v318
        %v538 = vmul.f32 %v469, %v319
        %v539 = vmul.f32 %v473, %v320
        %v540 = vmul.f32 %v475, %v321
        %v541 = vmul.f32 %v479, %v322
        %v542 = vmul.f32 %v481, %v323
        %v543 = vmul.f32 %v485, %v318
        %v544 = vmul.f32 %v487, %v319
        %v545 = vmul.f32 %v491, %v320
        %v546 = vmul.f32 %v493, %v321
        %v547 = vmul.f32 %v497, %v322
        %v548 = vmul.f32 %v499, %v323
        %v549 = vmul.f32 %v503, %v318
        %v550 = vmul.f32 %v505, %v319
        %v551 = vmul.f32 %v509, %v320
        %v552 = vmul.f32 %v511, %v321
        %v553 = vmul.f32 %v515, %v322
        %v554 = vmul.f32 %v517, %v323
        %v555 = vmul.f32 %v521, %v318
        %v556 = vmul.f32 %v523, %v319
        %v557 = vmul.f32 %v527, %v320
        %v558 = vmul.f32 %v529, %v321
        %v559 = vmul.f32 %v533, %v322
        %v560 = vmul.f32 %v535, %v323
        %v561 = vadd.f32 %v537, %v539
        %v562 = vadd.f32 %v561, %v541
        %v563 = vrot.slane %v562, 4
        %v564 = vadd.f32 %v562, %v563
        %v565 = vrot.slane %v564, 2
        %v566 = vadd.f32 %v564, %v565
        %v567 = vrot.slane %v566, 1
        %v568 = vadd.f32 %v566, %v567
        %v569 = vadd.f32 %v538, %v540
        %v570 = vadd.f32 %v569, %v542
        %v571 = vrot.slane %v570, 4
        %v572 = vadd.f32 %v570, %v571
        %v573 = vrot.slane %v572, 2
        %v574 = vadd.f32 %v572, %v573
        %v575 = vrot.slane %v574, 1
        %v576 = vadd.f32 %v574, %v575
        %v577 = vadd.f32 %v543, %v545
        %v578 = vadd.f32 %v577, %v547
        %v579 = vrot.slane %v578, 4
        %v580 = vadd.f32 %v578, %v579
        %v581 = vrot.slane %v580, 2
        %v582 = vadd.f32 %v580, %v581
        %v583 = vrot.slane %v582, 1
        %v584 = vadd.f32 %v582, %v583
        %v585 = vadd.f32 %v544, %v546
        %v586 = vadd.f32 %v585, %v548
        %v587 = vrot.slane %v586, 4
        %v588 = vadd.f32 %v586, %v587
        %v589 = vrot.slane %v588, 2
        %v590 = vadd.f32 %v588, %v589
        %v591 = vrot.slane %v590, 1
        %v592 = vadd.f32 %v590, %v591
        %v593 = vadd.f32 %v549, %v551
        %v594 = vadd.f32 %v593, %v553
        %v595 = vrot.slane %v594, 4
        %v596 = vadd.f32 %v594, %v595
        %v597 = vrot.slane %v596, 2
        %v598 = vadd.f32 %v596, %v597
        %v599 = vrot.slane %v598, 1
        %v600 = vadd.f32 %v598, %v599
        %v601 = vadd.f32 %v550, %v552
        %v602 = vadd.f32 %v601, %v554
        %v603 = vrot.slane %v602, 4
        %v604 = vadd.f32 %v602, %v603
        %v605 = vrot.slane %v604, 2
        %v606 = vadd.f32 %v604, %v605
        %v607 = vrot.slane %v606, 1
        %v608 = vadd.f32 %v606, %v607
        %v609 = vadd.f32 %v555, %v557
        %v610 = vadd.f32 %v609, %v559
        %v611 = vrot.slane %v610, 4
        %v612 = vadd.f32 %v610, %v611
        %v613 = vrot.slane %v612, 2
        %v614 = vadd.f32 %v612, %v613
        %v615 = vrot.slane %v614, 1
        %v616 = vadd.f32 %v614, %v615
        %v617 = vadd.f32 %v556, %v558
        %v618 = vadd.f32 %v617, %v560
        %v619 = vrot.slane %v618, 4
        %v620 = vadd.f32 %v618, %v619
        %v621 = vrot.slane %v620, 2
        %v622 = vadd.f32 %v620, %v621
        %v623 = vrot.slane %v622, 1
        %v624 = vadd.f32 %v622, %v623
        %v625 = vlaneseq
        %v626 = vshrl.u32 %v625, 7
        %v627 = vsub.s32 2, %v626
        %v628 = vrot.slane %v263, %v627
        %v629 = vlaneseq
        %v630 = vshrl.u32 %v629, 7
        %v631 = vsub.s32 2, %v630
        %v632 = vrot.slane %v264, %v631
        %v633 = vmul.f32 %v568, %v628
        %v634 = vmul.f32 %v576, %v632
        %v635 = vmul.f32 %v584, %v628
        %v636 = vmul.f32 %v592, %v632
        %v637 = vmul.f32 %v600, %v628
        %v638 = vmul.f32 %v608, %v632
        %v639 = vmul.f32 %v616, %v628
        %v640 = vmul.f32 %v624, %v632
        %v649 = vrot.slane %v635, 7
        %vm650 = vcmask 1041409
        %v651 = vsel %vm650, %v649, %v633
        %v652 = vrot.slane %v637, 6
        %vm653 = vcmask 1042434
        %v654 = vsel %vm653, %v652, %v651
        %v655 = vrot.slane %v639, 5
        %vm656 = vcmask 1043459
        %v657 = vsel %vm656, %v655, %v654
        %v658 = vrot.slane %v636, 7
        %v659 = vsel %vm650, %v658, %v634
        %v660 = vrot.slane %v638, 6
        %v661 = vsel %vm653, %v660, %v659
        %v662 = vrot.slane %v640, 5
        %v663 = vsel %vm656, %v662, %v661
        %666 = vst [vmem:[#allocation2] sm:$0xf] %v657
        %667 = vst [vmem:[#allocation2 + $0x8] sm:$0xf] %v663
        %v668 = vlaneseq
        %v669 = vshrl.u32 %v668, 7
        %v670 = vsub.s32 1, %v669
        %v671 = vrot.slane %v259, %v670
        %v672 = vlaneseq
        %v673 = vshrl.u32 %v672, 7
        %v674 = vsub.s32 1, %v673
        %v675 = vrot.slane %v260, %v674
        %v676 = vsub.f32 %v271, %v671
        %v677 = vsub.f32 %v271, %v675
        %v678 = vsub.f32 %v272, %v671
        %v679 = vsub.f32 %v272, %v675
        %v680 = vsub.f32 %v273, %v671
        %v681 = vsub.f32 %v273, %v675
        %v682 = vand.u32 2147483647, %v676
        %v683 = vand.u32 2147483647, %v677
        %v684 = vand.u32 2147483647, %v678
        %v685 = vand.u32 2147483647, %v679
        %v686 = vand.u32 2147483647, %v680
        %v687 = vand.u32 2147483647, %v681
        %v688 = vsub.f32 1.0, %v682
        %v689 = vsub.f32 1.0, %v683
        %v690 = vsub.f32 1.0, %v684
        %v691 = vsub.f32 1.0, %v685
        %v692 = vsub.f32 1.0, %v686
        %v693 = vsub.f32 1.0, %v687
        %v694 = vmax.f32 %v688, 0.0
        %v695 = vmax.f32 %v689, 0.0
        %v696 = vmax.f32 %v690, 0.0
        %v697 = vmax.f32 %v691, 0.0
        %v698 = vmax.f32 %v692, 0.0
        %v699 = vmax.f32 %v693, 0.0
        %v700 = vlaneseq
        %v701 = vshrl.u32 %v700, 7
        %v702 = vsub.s32 2, %v701
        %v703 = vrot.slane %v261, %v702
        %v704 = vlaneseq
        %v705 = vshrl.u32 %v704, 7
        %v706 = vsub.s32 2, %v705
        %v707 = vrot.slane %v262, %v706
        %v708 = vsub.f32 %v271, %v703
        %v709 = vsub.f32 %v271, %v707
        %v710 = vsub.f32 %v272, %v703
        %v711 = vsub.f32 %v272, %v707
        %v712 = vsub.f32 %v273, %v703
        %v713 = vsub.f32 %v273, %v707
        %v714 = vand.u32 2147483647, %v708
        %v715 = vand.u32 2147483647, %v709
        %v716 = vand.u32 2147483647, %v710
        %v717 = vand.u32 2147483647, %v711
        %v718 = vand.u32 2147483647, %v712
        %v719 = vand.u32 2147483647, %v713
        %v720 = vsub.f32 1.0, %v714
        %v721 = vsub.f32 1.0, %v715
        %v722 = vsub.f32 1.0, %v716
        %v723 = vsub.f32 1.0, %v717
        %v724 = vsub.f32 1.0, %v718
        %v725 = vsub.f32 1.0, %v719
        %v726 = vmax.f32 %v720, 0.0
        %v727 = vmax.f32 %v721, 0.0
        %v728 = vmax.f32 %v722, 0.0
        %v729 = vmax.f32 %v723, 0.0
        %v730 = vmax.f32 %v724, 0.0
        %v731 = vmax.f32 %v725, 0.0
        %v733 = vsel %vm393, %v730, 0
        %v736 = vsel %vm393, %v731, 0
        %738 = vmatprep.subr.mxu0 %v727
        %739 = vmatpush1.msra.mxu0 %v726
        %740 = vmatprep.subr.mxu0 %v729
        %741 = vmatpush1.msra.mxu0 %v728
        %742 = vmatprep.subr.mxu0 %v736
        %743 = vmatpush1.msra.mxu0 %v733
        %744 = vmatprep.subr.mxu0 0.0
        %745 = vmatpush1.msra.mxu0 0.0
        %746 = vmatprep.subr.mxu0 0.0
        %747 = vmatpush1.msra.mxu0 0.0
        %748 = vmatprep.subr.mxu0 0.0
        %749 = vmatpush1.msra.mxu0 0.0
        %750 = vmatprep.subr.mxu0 0.0
        %751 = vmatpush1.msra.mxu0 0.0
        %752 = vmatprep.subr.mxu0 0.0
        %753 = vmatpush1.msra.mxu0 0.0
        %754 = vmatprep.subr.mxu0 0.0
        %755 = vmatpush1.msra.mxu0 0.0
        %756 = vmatprep.subr.mxu0 0.0
        %757 = vmatpush1.msra.mxu0 0.0
        %758 = vmatprep.subr.mxu0 0.0
        %759 = vmatpush1.msra.mxu0 0.0
        %760 = vmatprep.subr.mxu0 0.0
        %761 = vmatpush1.msra.mxu0 0.0
        %762 = vmatprep.subr.mxu0 0.0
        %763 = vmatpush1.msra.mxu0 0.0
        %764 = vmatprep.subr.mxu0 0.0
        %765 = vmatpush1.msra.mxu0 0.0
        %766 = vmatprep.subr.mxu0 0.0
        %767 = vmatpush1.msra.mxu0 0.0
        %768 = vmatprep.subr.mxu0 0.0
        %769 = vmatpush1.msra.mxu0 0.0
        %770 = vmatprep.subr.mxu0 0.0
        %771 = vmatpush1.msra.mxu0 0.0
        %772 = vmatprep.subr.mxu0 0.0
        %773 = vmatpush1.msra.mxu0 0.0
        %774 = vmatprep.subr.mxu0 0.0
        %775 = vmatpush1.msra.mxu0 0.0
        %776 = vmatprep.subr.mxu0 0.0
        %777 = vmatpush1.msra.mxu0 0.0
        %778 = vmatprep.subr.mxu0 0.0
        %779 = vmatpush1.msra.mxu0 0.0
        %780 = vmatprep.subr.mxu0 0.0
        %781 = vmatpush1.msra.mxu0 0.0
        %782 = vmatprep.subr.mxu0 0.0
        %783 = vmatpush1.msra.mxu0 0.0
        %784 = vmatprep.subr.mxu0 0.0
        %785 = vmatpush1.msra.mxu0 0.0
        %786 = vmatprep.subr.mxu0 0.0
        %787 = vmatpush1.msra.mxu0 0.0
        %788 = vmatprep.subr.mxu0 0.0
        %789 = vmatpush1.msra.mxu0 0.0
        %790 = vmatprep.subr.mxu0 0.0
        %791 = vmatpush1.msra.mxu0 0.0
        %792 = vmatprep.subr.mxu0 0.0
        %793 = vmatpush1.msra.mxu0 0.0
        %794 = vmatprep.subr.mxu0 0.0
        %795 = vmatpush1.msra.mxu0 0.0
        %796 = vmatprep.subr.mxu0 0.0
        %797 = vmatpush1.msra.mxu0 0.0
        %798 = vmatprep.subr.mxu0 0.0
        %799 = vmatpush1.msra.mxu0 0.0
        %800 = vmatprep.subr.mxu0 0.0
        %801 = vmatpush1.msra.mxu0 0.0
        %802 = vmatprep.mubr.f32.mxu0 0.0
        %803 = vmatmul.mubr.f32.gmra.mrb[0].mxu0 %v358
        %v804 = vpop.f32.mrb[0].mxu0
        %v805 = vadd.f32 0.0, %v804
        %v806 = vpop.f32.mrb[0].mxu0
        %v807 = vadd.f32 0.0, %v806
        %808 = vmatprep.mubr.f32.mxu0 0.0
        %809 = vmatmul.mubr.f32.gmra.mrb[0].mxu0 %v361
        %v810 = vpop.f32.mrb[0].mxu0
        %v811 = vadd.f32 0.0, %v810
        %v812 = vpop.f32.mrb[0].mxu0
        %v813 = vadd.f32 0.0, %v812
        %814 = vmatprep.mubr.f32.mxu0 0.0
        %815 = vmatmul.mubr.f32.gmra.mrb[0].mxu0 %v364
        %v816 = vpop.f32.mrb[0].mxu0
        %v817 = vadd.f32 0.0, %v816
        %v818 = vpop.f32.mrb[0].mxu0
        %v819 = vadd.f32 0.0, %v818
        %820 = vmatprep.mubr.f32.mxu0 0.0
        %821 = vmatmul.mubr.f32.gmra.mrb[0].mxu0 %v367
        %v822 = vpop.f32.mrb[0].mxu0
        %v823 = vadd.f32 0.0, %v822
        %v824 = vpop.f32.mrb[0].mxu0
        %v825 = vadd.f32 0.0, %v824
        %826 = vmatprep.mubr.f32.mxu0 0.0
        %827 = vmatmul.mubr.f32.gmra.mrb[0].mxu0 %v370
        %v828 = vpop.f32.mrb[0].mxu0
        %v829 = vadd.f32 0.0, %v828
        %v830 = vpop.f32.mrb[0].mxu0
        %v831 = vadd.f32 0.0, %v830
        %832 = vmatprep.mubr.f32.mxu0 0.0
        %833 = vmatmul.mubr.f32.gmra.mrb[0].mxu0 %v373
        %v834 = vpop.f32.mrb[0].mxu0
        %v835 = vadd.f32 0.0, %v834
        %v836 = vpop.f32.mrb[0].mxu0
        %v837 = vadd.f32 0.0, %v836
        %838 = vmatprep.mubr.f32.mxu0 0.0
        %839 = vmatmul.mubr.f32.gmra.mrb[0].mxu0 %v376
        %v840 = vpop.f32.mrb[0].mxu0
        %v841 = vadd.f32 0.0, %v840
        %v842 = vpop.f32.mrb[0].mxu0
        %v843 = vadd.f32 0.0, %v842
        %844 = vmatprep.mubr.f32.mxu0 0.0
        %845 = vmatmul.mubr.f32.gmra.mrb[0].mxu0 %v379
        %v846 = vpop.f32.mrb[0].mxu0
        %v847 = vadd.f32 0.0, %v846
        %v848 = vpop.f32.mrb[0].mxu0
        %v849 = vadd.f32 0.0, %v848
        %850 = vmatprep.mubr.f32.mxu0 0.0
        %851 = vmatmul.mubr.f32.gmra.mrb[0].mxu0 %v382
        %v852 = vpop.f32.mrb[0].mxu0
        %v853 = vadd.f32 0.0, %v852
        %v854 = vpop.f32.mrb[0].mxu0
        %v855 = vadd.f32 0.0, %v854
        %856 = vmatprep.mubr.f32.mxu0 0.0
        %857 = vmatmul.mubr.f32.gmra.mrb[0].mxu0 %v385
        %v858 = vpop.f32.mrb[0].mxu0
        %v859 = vadd.f32 0.0, %v858
        %v860 = vpop.f32.mrb[0].mxu0
        %v861 = vadd.f32 0.0, %v860
        %862 = vmatprep.mubr.f32.mxu0 0.0
        %863 = vmatmul.mubr.f32.gmra.mrb[0].mxu0 %v388
        %v864 = vpop.f32.mrb[0].mxu0
        %v865 = vadd.f32 0.0, %v864
        %v866 = vpop.f32.mrb[0].mxu0
        %v867 = vadd.f32 0.0, %v866
        %868 = vmatprep.mubr.f32.mxu0 0.0
        %869 = vmatmul.mubr.f32.gmra.mrb[0].mxu0 %v391
        %v870 = vpop.f32.mrb[0].mxu0
        %v871 = vadd.f32 0.0, %v870
        %v872 = vpop.f32.mrb[0].mxu0
        %v873 = vadd.f32 0.0, %v872
        %874 = vdwg.mxu0
        %v875 = vmul.f32 %v805, %v694
        %v876 = vmul.f32 %v807, %v695
        %v877 = vmul.f32 %v811, %v696
        %v878 = vmul.f32 %v813, %v697
        %v879 = vmul.f32 %v817, %v698
        %v880 = vmul.f32 %v819, %v699
        %v881 = vmul.f32 %v823, %v694
        %v882 = vmul.f32 %v825, %v695
        %v883 = vmul.f32 %v829, %v696
        %v884 = vmul.f32 %v831, %v697
        %v885 = vmul.f32 %v835, %v698
        %v886 = vmul.f32 %v837, %v699
        %v887 = vmul.f32 %v841, %v694
        %v888 = vmul.f32 %v843, %v695
        %v889 = vmul.f32 %v847, %v696
        %v890 = vmul.f32 %v849, %v697
        %v891 = vmul.f32 %v853, %v698
        %v892 = vmul.f32 %v855, %v699
        %v893 = vmul.f32 %v859, %v694
        %v894 = vmul.f32 %v861, %v695
        %v895 = vmul.f32 %v865, %v696
        %v896 = vmul.f32 %v867, %v697
        %v897 = vmul.f32 %v871, %v698
        %v898 = vmul.f32 %v873, %v699
        %v899 = vadd.f32 %v875, %v877
        %v900 = vadd.f32 %v899, %v879
        %v901 = vrot.slane %v900, 4
        %v902 = vadd.f32 %v900, %v901
        %v903 = vrot.slane %v902, 2
        %v904 = vadd.f32 %v902, %v903
        %v905 = vrot.slane %v904, 1
        %v906 = vadd.f32 %v904, %v905
        %v907 = vadd.f32 %v876, %v878
        %v908 = vadd.f32 %v907, %v880
        %v909 = vrot.slane %v908, 4
        %v910 = vadd.f32 %v908, %v909
        %v911 = vrot.slane %v910, 2
        %v912 = vadd.f32 %v910, %v911
        %v913 = vrot.slane %v912, 1
        %v914 = vadd.f32 %v912, %v913
        %v915 = vadd.f32 %v881, %v883
        %v916 = vadd.f32 %v915, %v885
        %v917 = vrot.slane %v916, 4
        %v918 = vadd.f32 %v916, %v917
        %v919 = vrot.slane %v918, 2
        %v920 = vadd.f32 %v918, %v919
        %v921 = vrot.slane %v920, 1
        %v922 = vadd.f32 %v920, %v921
        %v923 = vadd.f32 %v882, %v884
        %v924 = vadd.f32 %v923, %v886
        %v925 = vrot.slane %v924, 4
        %v926 = vadd.f32 %v924, %v925
        %v927 = vrot.slane %v926, 2
        %v928 = vadd.f32 %v926, %v927
        %v929 = vrot.slane %v928, 1
        %v930 = vadd.f32 %v928, %v929
        %v931 = vadd.f32 %v887, %v889
        %v932 = vadd.f32 %v931, %v891
        %v933 = vrot.slane %v932, 4
        %v934 = vadd.f32 %v932, %v933
        %v935 = vrot.slane %v934, 2
        %v936 = vadd.f32 %v934, %v935
        %v937 = vrot.slane %v936, 1
        %v938 = vadd.f32 %v936, %v937
        %v939 = vadd.f32 %v888, %v890
        %v940 = vadd.f32 %v939, %v892
        %v941 = vrot.slane %v940, 4
        %v942 = vadd.f32 %v940, %v941
        %v943 = vrot.slane %v942, 2
        %v944 = vadd.f32 %v942, %v943
        %v945 = vrot.slane %v944, 1
        %v946 = vadd.f32 %v944, %v945
        %v947 = vadd.f32 %v893, %v895
        %v948 = vadd.f32 %v947, %v897
        %v949 = vrot.slane %v948, 4
        %v950 = vadd.f32 %v948, %v949
        %v951 = vrot.slane %v950, 2
        %v952 = vadd.f32 %v950, %v951
        %v953 = vrot.slane %v952, 1
        %v954 = vadd.f32 %v952, %v953
        %v955 = vadd.f32 %v894, %v896
        %v956 = vadd.f32 %v955, %v898
        %v957 = vrot.slane %v956, 4
        %v958 = vadd.f32 %v956, %v957
        %v959 = vrot.slane %v958, 2
        %v960 = vadd.f32 %v958, %v959
        %v961 = vrot.slane %v960, 1
        %v962 = vadd.f32 %v960, %v961
        %v963 = vlaneseq
        %v964 = vshrl.u32 %v963, 7
        %v965 = vsub.s32 3, %v964
        %v966 = vrot.slane %v263, %v965
        %v967 = vlaneseq
        %v968 = vshrl.u32 %v967, 7
        %v969 = vsub.s32 3, %v968
        %v970 = vrot.slane %v264, %v969
        %v971 = vmul.f32 %v906, %v966
        %v972 = vmul.f32 %v914, %v970
        %v973 = vmul.f32 %v922, %v966
        %v974 = vmul.f32 %v930, %v970
        %v975 = vmul.f32 %v938, %v966
        %v976 = vmul.f32 %v946, %v970
        %v977 = vmul.f32 %v954, %v966
        %v978 = vmul.f32 %v962, %v970
        %v987 = vrot.slane %v973, 7
        %v988 = vsel %vm650, %v987, %v971
        %v989 = vrot.slane %v975, 6
        %v990 = vsel %vm653, %v989, %v988
        %v991 = vrot.slane %v977, 5
        %v992 = vsel %vm656, %v991, %v990
        %v993 = vrot.slane %v974, 7
        %v994 = vsel %vm650, %v993, %v972
        %v995 = vrot.slane %v976, 6
        %v996 = vsel %vm653, %v995, %v994
        %v997 = vrot.slane %v978, 5
        %v998 = vsel %vm656, %v997, %v996
        %1001 = vst [vmem:[#allocation2 + $0x10] sm:$0xf] %v992
        %1002 = vst [vmem:[#allocation2 + $0x18] sm:$0xf] %v998
        %v1003 = vlaneseq
        %v1004 = vshrl.u32 %v1003, 7
        %v1005 = vsub.s32 2, %v1004
        %v1006 = vrot.slane %v259, %v1005
        %v1007 = vlaneseq
        %v1008 = vshrl.u32 %v1007, 7
        %v1009 = vsub.s32 2, %v1008
        %v1010 = vrot.slane %v260, %v1009
        %v1011 = vsub.f32 %v271, %v1006
        %v1012 = vsub.f32 %v271, %v1010
        %v1013 = vsub.f32 %v272, %v1006
        %v1014 = vsub.f32 %v272, %v1010
        %v1015 = vsub.f32 %v273, %v1006
        %v1016 = vsub.f32 %v273, %v1010
        %v1017 = vand.u32 2147483647, %v1011
        %v1018 = vand.u32 2147483647, %v1012
        %v1019 = vand.u32 2147483647, %v1013
        %v1020 = vand.u32 2147483647, %v1014
        %v1021 = vand.u32 2147483647, %v1015
        %v1022 = vand.u32 2147483647, %v1016
        %v1023 = vsub.f32 1.0, %v1017
        %v1024 = vsub.f32 1.0, %v1018
        %v1025 = vsub.f32 1.0, %v1019
        %v1026 = vsub.f32 1.0, %v1020
        %v1027 = vsub.f32 1.0, %v1021
        %v1028 = vsub.f32 1.0, %v1022
        %v1029 = vmax.f32 %v1023, 0.0
        %v1030 = vmax.f32 %v1024, 0.0
        %v1031 = vmax.f32 %v1025, 0.0
        %v1032 = vmax.f32 %v1026, 0.0
        %v1033 = vmax.f32 %v1027, 0.0
        %v1034 = vmax.f32 %v1028, 0.0
        %v1035 = vlaneseq
        %v1036 = vshrl.u32 %v1035, 7
        %v1037 = vsub.s32 3, %v1036
        %v1038 = vrot.slane %v261, %v1037
        %v1039 = vlaneseq
        %v1040 = vshrl.u32 %v1039, 7
        %v1041 = vsub.s32 3, %v1040
        %v1042 = vrot.slane %v262, %v1041
        %v1043 = vsub.f32 %v271, %v1038
        %v1044 = vsub.f32 %v271, %v1042
        %v1045 = vsub.f32 %v272, %v1038
        %v1046 = vsub.f32 %v272, %v1042
        %v1047 = vsub.f32 %v273, %v1038
        %v1048 = vsub.f32 %v273, %v1042
        %v1049 = vand.u32 2147483647, %v1043
        %v1050 = vand.u32 2147483647, %v1044
        %v1051 = vand.u32 2147483647, %v1045
        %v1052 = vand.u32 2147483647, %v1046
        %v1053 = vand.u32 2147483647, %v1047
        %v1054 = vand.u32 2147483647, %v1048
        %v1055 = vsub.f32 1.0, %v1049
        %v1056 = vsub.f32 1.0, %v1050
        %v1057 = vsub.f32 1.0, %v1051
        %v1058 = vsub.f32 1.0, %v1052
        %v1059 = vsub.f32 1.0, %v1053
        %v1060 = vsub.f32 1.0, %v1054
        %v1061 = vmax.f32 %v1055, 0.0
        %v1062 = vmax.f32 %v1056, 0.0
        %v1063 = vmax.f32 %v1057, 0.0
        %v1064 = vmax.f32 %v1058, 0.0
        %v1065 = vmax.f32 %v1059, 0.0
        %v1066 = vmax.f32 %v1060, 0.0
        %v1068 = vsel %vm393, %v1065, 0
        %v1071 = vsel %vm393, %v1066, 0
        %1073 = vmatprep.subr.mxu0 %v1062
        %1074 = vmatpush1.msra.mxu0 %v1061
        %1075 = vmatprep.subr.mxu0 %v1064
        %1076 = vmatpush1.msra.mxu0 %v1063
        %1077 = vmatprep.subr.mxu0 %v1071
        %1078 = vmatpush1.msra.mxu0 %v1068
        %1079 = vmatprep.subr.mxu0 0.0
        %1080 = vmatpush1.msra.mxu0 0.0
        %1081 = vmatprep.subr.mxu0 0.0
        %1082 = vmatpush1.msra.mxu0 0.0
        %1083 = vmatprep.subr.mxu0 0.0
        %1084 = vmatpush1.msra.mxu0 0.0
        %1085 = vmatprep.subr.mxu0 0.0
        %1086 = vmatpush1.msra.mxu0 0.0
        %1087 = vmatprep.subr.mxu0 0.0
        %1088 = vmatpush1.msra.mxu0 0.0
        %1089 = vmatprep.subr.mxu0 0.0
        %1090 = vmatpush1.msra.mxu0 0.0
        %1091 = vmatprep.subr.mxu0 0.0
        %1092 = vmatpush1.msra.mxu0 0.0
        %1093 = vmatprep.subr.mxu0 0.0
        %1094 = vmatpush1.msra.mxu0 0.0
        %1095 = vmatprep.subr.mxu0 0.0
        %1096 = vmatpush1.msra.mxu0 0.0
        %1097 = vmatprep.subr.mxu0 0.0
        %1098 = vmatpush1.msra.mxu0 0.0
        %1099 = vmatprep.subr.mxu0 0.0
        %1100 = vmatpush1.msra.mxu0 0.0
        %1101 = vmatprep.subr.mxu0 0.0
        %1102 = vmatpush1.msra.mxu0 0.0
        %1103 = vmatprep.subr.mxu0 0.0
        %1104 = vmatpush1.msra.mxu0 0.0
        %1105 = vmatprep.subr.mxu0 0.0
        %1106 = vmatpush1.msra.mxu0 0.0
        %1107 = vmatprep.subr.mxu0 0.0
        %1108 = vmatpush1.msra.mxu0 0.0
        %1109 = vmatprep.subr.mxu0 0.0
        %1110 = vmatpush1.msra.mxu0 0.0
        %1111 = vmatprep.subr.mxu0 0.0
        %1112 = vmatpush1.msra.mxu0 0.0
        %1113 = vmatprep.subr.mxu0 0.0
        %1114 = vmatpush1.msra.mxu0 0.0
        %1115 = vmatprep.subr.mxu0 0.0
        %1116 = vmatpush1.msra.mxu0 0.0
        %1117 = vmatprep.subr.mxu0 0.0
        %1118 = vmatpush1.msra.mxu0 0.0
        %1119 = vmatprep.subr.mxu0 0.0
        %1120 = vmatpush1.msra.mxu0 0.0
        %1121 = vmatprep.subr.mxu0 0.0
        %1122 = vmatpush1.msra.mxu0 0.0
        %1123 = vmatprep.subr.mxu0 0.0
        %1124 = vmatpush1.msra.mxu0 0.0
        %1125 = vmatprep.subr.mxu0 0.0
        %1126 = vmatpush1.msra.mxu0 0.0
        %1127 = vmatprep.subr.mxu0 0.0
        %1128 = vmatpush1.msra.mxu0 0.0
        %1129 = vmatprep.subr.mxu0 0.0
        %1130 = vmatpush1.msra.mxu0 0.0
        %1131 = vmatprep.subr.mxu0 0.0
        %1132 = vmatpush1.msra.mxu0 0.0
        %1133 = vmatprep.subr.mxu0 0.0
        %1134 = vmatpush1.msra.mxu0 0.0
        %1135 = vmatprep.subr.mxu0 0.0
        %1136 = vmatpush1.msra.mxu0 0.0
        %1137 = vmatprep.mubr.f32.mxu0 0.0
        %1138 = vmatmul.mubr.f32.gmra.mrb[0].mxu0 %v358
        %v1139 = vpop.f32.mrb[0].mxu0
        %v1140 = vadd.f32 0.0, %v1139
        %v1141 = vpop.f32.mrb[0].mxu0
        %v1142 = vadd.f32 0.0, %v1141
        %1143 = vmatprep.mubr.f32.mxu0 0.0
        %1144 = vmatmul.mubr.f32.gmra.mrb[0].mxu0 %v361
        %v1145 = vpop.f32.mrb[0].mxu0
        %v1146 = vadd.f32 0.0, %v1145
        %v1147 = vpop.f32.mrb[0].mxu0
        %v1148 = vadd.f32 0.0, %v1147
        %1149 = vmatprep.mubr.f32.mxu0 0.0
        %1150 = vmatmul.mubr.f32.gmra.mrb[0].mxu0 %v364
        %v1151 = vpop.f32.mrb[0].mxu0
        %v1152 = vadd.f32 0.0, %v1151
        %v1153 = vpop.f32.mrb[0].mxu0
        %v1154 = vadd.f32 0.0, %v1153
        %1155 = vmatprep.mubr.f32.mxu0 0.0
        %1156 = vmatmul.mubr.f32.gmra.mrb[0].mxu0 %v367
        %v1157 = vpop.f32.mrb[0].mxu0
        %v1158 = vadd.f32 0.0, %v1157
        %v1159 = vpop.f32.mrb[0].mxu0
        %v1160 = vadd.f32 0.0, %v1159
        %1161 = vmatprep.mubr.f32.mxu0 0.0
        %1162 = vmatmul.mubr.f32.gmra.mrb[0].mxu0 %v370
        %v1163 = vpop.f32.mrb[0].mxu0
        %v1164 = vadd.f32 0.0, %v1163
        %v1165 = vpop.f32.mrb[0].mxu0
        %v1166 = vadd.f32 0.0, %v1165
        %1167 = vmatprep.mubr.f32.mxu0 0.0
        %1168 = vmatmul.mubr.f32.gmra.mrb[0].mxu0 %v373
        %v1169 = vpop.f32.mrb[0].mxu0
        %v1170 = vadd.f32 0.0, %v1169
        %v1171 = vpop.f32.mrb[0].mxu0
        %v1172 = vadd.f32 0.0, %v1171
        %1173 = vmatprep.mubr.f32.mxu0 0.0
        %1174 = vmatmul.mubr.f32.gmra.mrb[0].mxu0 %v376
        %v1175 = vpop.f32.mrb[0].mxu0
        %v1176 = vadd.f32 0.0, %v1175
        %v1177 = vpop.f32.mrb[0].mxu0
        %v1178 = vadd.f32 0.0, %v1177
        %1179 = vmatprep.mubr.f32.mxu0 0.0
        %1180 = vmatmul.mubr.f32.gmra.mrb[0].mxu0 %v379
        %v1181 = vpop.f32.mrb[0].mxu0
        %v1182 = vadd.f32 0.0, %v1181
        %v1183 = vpop.f32.mrb[0].mxu0
        %v1184 = vadd.f32 0.0, %v1183
        %1185 = vmatprep.mubr.f32.mxu0 0.0
        %1186 = vmatmul.mubr.f32.gmra.mrb[0].mxu0 %v382
        %v1187 = vpop.f32.mrb[0].mxu0
        %v1188 = vadd.f32 0.0, %v1187
        %v1189 = vpop.f32.mrb[0].mxu0
        %v1190 = vadd.f32 0.0, %v1189
        %1191 = vmatprep.mubr.f32.mxu0 0.0
        %1192 = vmatmul.mubr.f32.gmra.mrb[0].mxu0 %v385
        %v1193 = vpop.f32.mrb[0].mxu0
        %v1194 = vadd.f32 0.0, %v1193
        %v1195 = vpop.f32.mrb[0].mxu0
        %v1196 = vadd.f32 0.0, %v1195
        %1197 = vmatprep.mubr.f32.mxu0 0.0
        %1198 = vmatmul.mubr.f32.gmra.mrb[0].mxu0 %v388
        %v1199 = vpop.f32.mrb[0].mxu0
        %v1200 = vadd.f32 0.0, %v1199
        %v1201 = vpop.f32.mrb[0].mxu0
        %v1202 = vadd.f32 0.0, %v1201
        %1203 = vmatprep.mubr.f32.mxu0 0.0
        %1204 = vmatmul.mubr.f32.gmra.mrb[0].mxu0 %v391
        %v1205 = vpop.f32.mrb[0].mxu0
        %v1206 = vadd.f32 0.0, %v1205
        %v1207 = vpop.f32.mrb[0].mxu0
        %v1208 = vadd.f32 0.0, %v1207
        %1209 = vdwg.mxu0
        %v1210 = vmul.f32 %v1140, %v1029
        %v1211 = vmul.f32 %v1142, %v1030
        %v1212 = vmul.f32 %v1146, %v1031
        %v1213 = vmul.f32 %v1148, %v1032
        %v1214 = vmul.f32 %v1152, %v1033
        %v1215 = vmul.f32 %v1154, %v1034
        %v1216 = vmul.f32 %v1158, %v1029
        %v1217 = vmul.f32 %v1160, %v1030
        %v1218 = vmul.f32 %v1164, %v1031
        %v1219 = vmul.f32 %v1166, %v1032
        %v1220 = vmul.f32 %v1170, %v1033
        %v1221 = vmul.f32 %v1172, %v1034
        %v1222 = vmul.f32 %v1176, %v1029
        %v1223 = vmul.f32 %v1178, %v1030
        %v1224 = vmul.f32 %v1182, %v1031
        %v1225 = vmul.f32 %v1184, %v1032
        %v1226 = vmul.f32 %v1188, %v1033
        %v1227 = vmul.f32 %v1190, %v1034
        %v1228 = vmul.f32 %v1194, %v1029
        %v1229 = vmul.f32 %v1196, %v1030
        %v1230 = vmul.f32 %v1200, %v1031
        %v1231 = vmul.f32 %v1202, %v1032
        %v1232 = vmul.f32 %v1206, %v1033
        %v1233 = vmul.f32 %v1208, %v1034
        %v1234 = vadd.f32 %v1210, %v1212
        %v1235 = vadd.f32 %v1234, %v1214
        %v1236 = vrot.slane %v1235, 4
        %v1237 = vadd.f32 %v1235, %v1236
        %v1238 = vrot.slane %v1237, 2
        %v1239 = vadd.f32 %v1237, %v1238
        %v1240 = vrot.slane %v1239, 1
        %v1241 = vadd.f32 %v1239, %v1240
        %v1242 = vadd.f32 %v1211, %v1213
        %v1243 = vadd.f32 %v1242, %v1215
        %v1244 = vrot.slane %v1243, 4
        %v1245 = vadd.f32 %v1243, %v1244
        %v1246 = vrot.slane %v1245, 2
        %v1247 = vadd.f32 %v1245, %v1246
        %v1248 = vrot.slane %v1247, 1
        %v1249 = vadd.f32 %v1247, %v1248
        %v1250 = vadd.f32 %v1216, %v1218
        %v1251 = vadd.f32 %v1250, %v1220
        %v1252 = vrot.slane %v1251, 4
        %v1253 = vadd.f32 %v1251, %v1252
        %v1254 = vrot.slane %v1253, 2
        %v1255 = vadd.f32 %v1253, %v1254
        %v1256 = vrot.slane %v1255, 1
        %v1257 = vadd.f32 %v1255, %v1256
        %v1258 = vadd.f32 %v1217, %v1219
        %v1259 = vadd.f32 %v1258, %v1221
        %v1260 = vrot.slane %v1259, 4
        %v1261 = vadd.f32 %v1259, %v1260
        %v1262 = vrot.slane %v1261, 2
        %v1263 = vadd.f32 %v1261, %v1262
        %v1264 = vrot.slane %v1263, 1
        %v1265 = vadd.f32 %v1263, %v1264
        %v1266 = vadd.f32 %v1222, %v1224
        %v1267 = vadd.f32 %v1266, %v1226
        %v1268 = vrot.slane %v1267, 4
        %v1269 = vadd.f32 %v1267, %v1268
        %v1270 = vrot.slane %v1269, 2
        %v1271 = vadd.f32 %v1269, %v1270
        %v1272 = vrot.slane %v1271, 1
        %v1273 = vadd.f32 %v1271, %v1272
        %v1274 = vadd.f32 %v1223, %v1225
        %v1275 = vadd.f32 %v1274, %v1227
        %v1276 = vrot.slane %v1275, 4
        %v1277 = vadd.f32 %v1275, %v1276
        %v1278 = vrot.slane %v1277, 2
        %v1279 = vadd.f32 %v1277, %v1278
        %v1280 = vrot.slane %v1279, 1
        %v1281 = vadd.f32 %v1279, %v1280
        %v1282 = vadd.f32 %v1228, %v1230
        %v1283 = vadd.f32 %v1282, %v1232
        %v1284 = vrot.slane %v1283, 4
        %v1285 = vadd.f32 %v1283, %v1284
        %v1286 = vrot.slane %v1285, 2
        %v1287 = vadd.f32 %v1285, %v1286
        %v1288 = vrot.slane %v1287, 1
        %v1289 = vadd.f32 %v1287, %v1288
        %v1290 = vadd.f32 %v1229, %v1231
        %v1291 = vadd.f32 %v1290, %v1233
        %v1292 = vrot.slane %v1291, 4
        %v1293 = vadd.f32 %v1291, %v1292
        %v1294 = vrot.slane %v1293, 2
        %v1295 = vadd.f32 %v1293, %v1294
        %v1296 = vrot.slane %v1295, 1
        %v1297 = vadd.f32 %v1295, %v1296
        %v1298 = vlaneseq
        %v1299 = vshrl.u32 %v1298, 7
        %v1300 = vsub.s32 4, %v1299
        %v1301 = vrot.slane %v263, %v1300
        %v1302 = vlaneseq
        %v1303 = vshrl.u32 %v1302, 7
        %v1304 = vsub.s32 4, %v1303
        %v1305 = vrot.slane %v264, %v1304
        %v1306 = vmul.f32 %v1241, %v1301
        %v1307 = vmul.f32 %v1249, %v1305
        %v1308 = vmul.f32 %v1257, %v1301
        %v1309 = vmul.f32 %v1265, %v1305
        %v1310 = vmul.f32 %v1273, %v1301
        %v1311 = vmul.f32 %v1281, %v1305
        %v1312 = vmul.f32 %v1289, %v1301
        %v1313 = vmul.f32 %v1297, %v1305
        %v1322 = vrot.slane %v1308, 7
        %v1323 = vsel %vm650, %v1322, %v1306
        %v1324 = vrot.slane %v1310, 6
        %v1325 = vsel %vm653, %v1324, %v1323
        %v1326 = vrot.slane %v1312, 5
        %v1327 = vsel %vm656, %v1326, %v1325
        %v1328 = vrot.slane %v1309, 7
        %v1329 = vsel %vm650, %v1328, %v1307
        %v1330 = vrot.slane %v1311, 6
        %v1331 = vsel %vm653, %v1330, %v1329
        %v1332 = vrot.slane %v1313, 5
        %v1333 = vsel %vm656, %v1332, %v1331
        %1336 = vst [vmem:[#allocation2 + $0x20] sm:$0xf] %v1327
        %1337 = vst [vmem:[#allocation2 + $0x28] sm:$0xf] %v1333
        %v1338 = vlaneseq
        %v1339 = vshrl.u32 %v1338, 7
        %v1340 = vsub.s32 3, %v1339
        %v1341 = vrot.slane %v259, %v1340
        %v1342 = vlaneseq
        %v1343 = vshrl.u32 %v1342, 7
        %v1344 = vsub.s32 3, %v1343
        %v1345 = vrot.slane %v260, %v1344
        %v1346 = vsub.f32 %v271, %v1341
        %v1347 = vsub.f32 %v271, %v1345
        %v1348 = vsub.f32 %v272, %v1341
        %v1349 = vsub.f32 %v272, %v1345
        %v1350 = vsub.f32 %v273, %v1341
        %v1351 = vsub.f32 %v273, %v1345
        %v1352 = vand.u32 2147483647, %v1346
        %v1353 = vand.u32 2147483647, %v1347
        %v1354 = vand.u32 2147483647, %v1348
        %v1355 = vand.u32 2147483647, %v1349
        %v1356 = vand.u32 2147483647, %v1350
        %v1357 = vand.u32 2147483647, %v1351
        %v1358 = vsub.f32 1.0, %v1352
        %v1359 = vsub.f32 1.0, %v1353
        %v1360 = vsub.f32 1.0, %v1354
        %v1361 = vsub.f32 1.0, %v1355
        %v1362 = vsub.f32 1.0, %v1356
        %v1363 = vsub.f32 1.0, %v1357
        %v1364 = vmax.f32 %v1358, 0.0
        %v1365 = vmax.f32 %v1359, 0.0
        %v1366 = vmax.f32 %v1360, 0.0
        %v1367 = vmax.f32 %v1361, 0.0
        %v1368 = vmax.f32 %v1362, 0.0
        %v1369 = vmax.f32 %v1363, 0.0
        %v1370 = vlaneseq
        %v1371 = vshrl.u32 %v1370, 7
        %v1372 = vsub.s32 4, %v1371
        %v1373 = vrot.slane %v261, %v1372
        %v1374 = vlaneseq
        %v1375 = vshrl.u32 %v1374, 7
        %v1376 = vsub.s32 4, %v1375
        %v1377 = vrot.slane %v262, %v1376
        %v1378 = vsub.f32 %v271, %v1373
        %v1379 = vsub.f32 %v271, %v1377
        %v1380 = vsub.f32 %v272, %v1373
        %v1381 = vsub.f32 %v272, %v1377
        %v1382 = vsub.f32 %v273, %v1373
        %v1383 = vsub.f32 %v273, %v1377
        %v1384 = vand.u32 2147483647, %v1378
        %v1385 = vand.u32 2147483647, %v1379
        %v1386 = vand.u32 2147483647, %v1380
        %v1387 = vand.u32 2147483647, %v1381
        %v1388 = vand.u32 2147483647, %v1382
        %v1389 = vand.u32 2147483647, %v1383
        %v1390 = vsub.f32 1.0, %v1384
        %v1391 = vsub.f32 1.0, %v1385
        %v1392 = vsub.f32 1.0, %v1386
        %v1393 = vsub.f32 1.0, %v1387
        %v1394 = vsub.f32 1.0, %v1388
        %v1395 = vsub.f32 1.0, %v1389
        %v1396 = vmax.f32 %v1390, 0.0
        %v1397 = vmax.f32 %v1391, 0.0
        %v1398 = vmax.f32 %v1392, 0.0
        %v1399 = vmax.f32 %v1393, 0.0
        %v1400 = vmax.f32 %v1394, 0.0
        %v1401 = vmax.f32 %v1395, 0.0
        %v1403 = vsel %vm393, %v1400, 0
        %v1406 = vsel %vm393, %v1401, 0
        %1408 = vmatprep.subr.mxu0 %v1397
        %1409 = vmatpush1.msra.mxu0 %v1396
        %1410 = vmatprep.subr.mxu0 %v1399
        %1411 = vmatpush1.msra.mxu0 %v1398
        %1412 = vmatprep.subr.mxu0 %v1406
        %1413 = vmatpush1.msra.mxu0 %v1403
        %1414 = vmatprep.subr.mxu0 0.0
        %1415 = vmatpush1.msra.mxu0 0.0
        %1416 = vmatprep.subr.mxu0 0.0
        %1417 = vmatpush1.msra.mxu0 0.0
        %1418 = vmatprep.subr.mxu0 0.0
        %1419 = vmatpush1.msra.mxu0 0.0
        %1420 = vmatprep.subr.mxu0 0.0
        %1421 = vmatpush1.msra.mxu0 0.0
        %1422 = vmatprep.subr.mxu0 0.0
        %1423 = vmatpush1.msra.mxu0 0.0
        %1424 = vmatprep.subr.mxu0 0.0
        %1425 = vmatpush1.msra.mxu0 0.0
        %1426 = vmatprep.subr.mxu0 0.0
        %1427 = vmatpush1.msra.mxu0 0.0
        %1428 = vmatprep.subr.mxu0 0.0
        %1429 = vmatpush1.msra.mxu0 0.0
        %1430 = vmatprep.subr.mxu0 0.0
        %1431 = vmatpush1.msra.mxu0 0.0
        %1432 = vmatprep.subr.mxu0 0.0
        %1433 = vmatpush1.msra.mxu0 0.0
        %1434 = vmatprep.subr.mxu0 0.0
        %1435 = vmatpush1.msra.mxu0 0.0
        %1436 = vmatprep.subr.mxu0 0.0
        %1437 = vmatpush1.msra.mxu0 0.0
        %1438 = vmatprep.subr.mxu0 0.0
        %1439 = vmatpush1.msra.mxu0 0.0
        %1440 = vmatprep.subr.mxu0 0.0
        %1441 = vmatpush1.msra.mxu0 0.0
        %1442 = vmatprep.subr.mxu0 0.0
        %1443 = vmatpush1.msra.mxu0 0.0
        %1444 = vmatprep.subr.mxu0 0.0
        %1445 = vmatpush1.msra.mxu0 0.0
        %1446 = vmatprep.subr.mxu0 0.0
        %1447 = vmatpush1.msra.mxu0 0.0
        %1448 = vmatprep.subr.mxu0 0.0
        %1449 = vmatpush1.msra.mxu0 0.0
        %1450 = vmatprep.subr.mxu0 0.0
        %1451 = vmatpush1.msra.mxu0 0.0
        %1452 = vmatprep.subr.mxu0 0.0
        %1453 = vmatpush1.msra.mxu0 0.0
        %1454 = vmatprep.subr.mxu0 0.0
        %1455 = vmatpush1.msra.mxu0 0.0
        %1456 = vmatprep.subr.mxu0 0.0
        %1457 = vmatpush1.msra.mxu0 0.0
        %1458 = vmatprep.subr.mxu0 0.0
        %1459 = vmatpush1.msra.mxu0 0.0
        %1460 = vmatprep.subr.mxu0 0.0
        %1461 = vmatpush1.msra.mxu0 0.0
        %1462 = vmatprep.subr.mxu0 0.0
        %1463 = vmatpush1.msra.mxu0 0.0
        %1464 = vmatprep.subr.mxu0 0.0
        %1465 = vmatpush1.msra.mxu0 0.0
        %1466 = vmatprep.subr.mxu0 0.0
        %1467 = vmatpush1.msra.mxu0 0.0
        %1468 = vmatprep.subr.mxu0 0.0
        %1469 = vmatpush1.msra.mxu0 0.0
        %1470 = vmatprep.subr.mxu0 0.0
        %1471 = vmatpush1.msra.mxu0 0.0
        %1472 = vmatprep.mubr.f32.mxu0 0.0
        %1473 = vmatmul.mubr.f32.gmra.mrb[0].mxu0 %v358
        %v1474 = vpop.f32.mrb[0].mxu0
        %v1475 = vadd.f32 0.0, %v1474
        %v1476 = vpop.f32.mrb[0].mxu0
        %v1477 = vadd.f32 0.0, %v1476
        %1478 = vmatprep.mubr.f32.mxu0 0.0
        %1479 = vmatmul.mubr.f32.gmra.mrb[0].mxu0 %v361
        %v1480 = vpop.f32.mrb[0].mxu0
        %v1481 = vadd.f32 0.0, %v1480
        %v1482 = vpop.f32.mrb[0].mxu0
        %v1483 = vadd.f32 0.0, %v1482
        %1484 = vmatprep.mubr.f32.mxu0 0.0
        %1485 = vmatmul.mubr.f32.gmra.mrb[0].mxu0 %v364
        %v1486 = vpop.f32.mrb[0].mxu0
        %v1487 = vadd.f32 0.0, %v1486
        %v1488 = vpop.f32.mrb[0].mxu0
        %v1489 = vadd.f32 0.0, %v1488
        %1490 = vmatprep.mubr.f32.mxu0 0.0
        %1491 = vmatmul.mubr.f32.gmra.mrb[0].mxu0 %v367
        %v1492 = vpop.f32.mrb[0].mxu0
        %v1493 = vadd.f32 0.0, %v1492
        %v1494 = vpop.f32.mrb[0].mxu0
        %v1495 = vadd.f32 0.0, %v1494
        %1496 = vmatprep.mubr.f32.mxu0 0.0
        %1497 = vmatmul.mubr.f32.gmra.mrb[0].mxu0 %v370
        %v1498 = vpop.f32.mrb[0].mxu0
        %v1499 = vadd.f32 0.0, %v1498
        %v1500 = vpop.f32.mrb[0].mxu0
        %v1501 = vadd.f32 0.0, %v1500
        %1502 = vmatprep.mubr.f32.mxu0 0.0
        %1503 = vmatmul.mubr.f32.gmra.mrb[0].mxu0 %v373
        %v1504 = vpop.f32.mrb[0].mxu0
        %v1505 = vadd.f32 0.0, %v1504
        %v1506 = vpop.f32.mrb[0].mxu0
        %v1507 = vadd.f32 0.0, %v1506
        %1508 = vmatprep.mubr.f32.mxu0 0.0
        %1509 = vmatmul.mubr.f32.gmra.mrb[0].mxu0 %v376
        %v1510 = vpop.f32.mrb[0].mxu0
        %v1511 = vadd.f32 0.0, %v1510
        %v1512 = vpop.f32.mrb[0].mxu0
        %v1513 = vadd.f32 0.0, %v1512
        %1514 = vmatprep.mubr.f32.mxu0 0.0
        %1515 = vmatmul.mubr.f32.gmra.mrb[0].mxu0 %v379
        %v1516 = vpop.f32.mrb[0].mxu0
        %v1517 = vadd.f32 0.0, %v1516
        %v1518 = vpop.f32.mrb[0].mxu0
        %v1519 = vadd.f32 0.0, %v1518
        %1520 = vmatprep.mubr.f32.mxu0 0.0
        %1521 = vmatmul.mubr.f32.gmra.mrb[0].mxu0 %v382
        %v1522 = vpop.f32.mrb[0].mxu0
        %v1523 = vadd.f32 0.0, %v1522
        %v1524 = vpop.f32.mrb[0].mxu0
        %v1525 = vadd.f32 0.0, %v1524
        %1526 = vmatprep.mubr.f32.mxu0 0.0
        %1527 = vmatmul.mubr.f32.gmra.mrb[0].mxu0 %v385
        %v1528 = vpop.f32.mrb[0].mxu0
        %v1529 = vadd.f32 0.0, %v1528
        %v1530 = vpop.f32.mrb[0].mxu0
        %v1531 = vadd.f32 0.0, %v1530
        %1532 = vmatprep.mubr.f32.mxu0 0.0
        %1533 = vmatmul.mubr.f32.gmra.mrb[0].mxu0 %v388
        %v1534 = vpop.f32.mrb[0].mxu0
        %v1535 = vadd.f32 0.0, %v1534
        %v1536 = vpop.f32.mrb[0].mxu0
        %v1537 = vadd.f32 0.0, %v1536
        %1538 = vmatprep.mubr.f32.mxu0 0.0
        %1539 = vmatmul.mubr.f32.gmra.mrb[0].mxu0 %v391
        %v1540 = vpop.f32.mrb[0].mxu0
        %v1541 = vadd.f32 0.0, %v1540
        %v1542 = vpop.f32.mrb[0].mxu0
        %v1543 = vadd.f32 0.0, %v1542
        %1544 = vdwg.mxu0
        %v1545 = vmul.f32 %v1475, %v1364
        %v1546 = vmul.f32 %v1477, %v1365
        %v1547 = vmul.f32 %v1481, %v1366
        %v1548 = vmul.f32 %v1483, %v1367
        %v1549 = vmul.f32 %v1487, %v1368
        %v1550 = vmul.f32 %v1489, %v1369
        %v1551 = vmul.f32 %v1493, %v1364
        %v1552 = vmul.f32 %v1495, %v1365
        %v1553 = vmul.f32 %v1499, %v1366
        %v1554 = vmul.f32 %v1501, %v1367
        %v1555 = vmul.f32 %v1505, %v1368
        %v1556 = vmul.f32 %v1507, %v1369
        %v1557 = vmul.f32 %v1511, %v1364
        %v1558 = vmul.f32 %v1513, %v1365
        %v1559 = vmul.f32 %v1517, %v1366
        %v1560 = vmul.f32 %v1519, %v1367
        %v1561 = vmul.f32 %v1523, %v1368
        %v1562 = vmul.f32 %v1525, %v1369
        %v1563 = vmul.f32 %v1529, %v1364
        %v1564 = vmul.f32 %v1531, %v1365
        %v1565 = vmul.f32 %v1535, %v1366
        %v1566 = vmul.f32 %v1537, %v1367
        %v1567 = vmul.f32 %v1541, %v1368
        %v1568 = vmul.f32 %v1543, %v1369
        %v1569 = vadd.f32 %v1545, %v1547
        %v1570 = vadd.f32 %v1569, %v1549
        %v1571 = vrot.slane %v1570, 4
        %v1572 = vadd.f32 %v1570, %v1571
        %v1573 = vrot.slane %v1572, 2
        %v1574 = vadd.f32 %v1572, %v1573
        %v1575 = vrot.slane %v1574, 1
        %v1576 = vadd.f32 %v1574, %v1575
        %v1577 = vadd.f32 %v1546, %v1548
        %v1578 = vadd.f32 %v1577, %v1550
        %v1579 = vrot.slane %v1578, 4
        %v1580 = vadd.f32 %v1578, %v1579
        %v1581 = vrot.slane %v1580, 2
        %v1582 = vadd.f32 %v1580, %v1581
        %v1583 = vrot.slane %v1582, 1
        %v1584 = vadd.f32 %v1582, %v1583
        %v1585 = vadd.f32 %v1551, %v1553
        %v1586 = vadd.f32 %v1585, %v1555
        %v1587 = vrot.slane %v1586, 4
        %v1588 = vadd.f32 %v1586, %v1587
        %v1589 = vrot.slane %v1588, 2
        %v1590 = vadd.f32 %v1588, %v1589
        %v1591 = vrot.slane %v1590, 1
        %v1592 = vadd.f32 %v1590, %v1591
        %v1593 = vadd.f32 %v1552, %v1554
        %v1594 = vadd.f32 %v1593, %v1556
        %v1595 = vrot.slane %v1594, 4
        %v1596 = vadd.f32 %v1594, %v1595
        %v1597 = vrot.slane %v1596, 2
        %v1598 = vadd.f32 %v1596, %v1597
        %v1599 = vrot.slane %v1598, 1
        %v1600 = vadd.f32 %v1598, %v1599
        %v1601 = vadd.f32 %v1557, %v1559
        %v1602 = vadd.f32 %v1601, %v1561
        %v1603 = vrot.slane %v1602, 4
        %v1604 = vadd.f32 %v1602, %v1603
        %v1605 = vrot.slane %v1604, 2
        %v1606 = vadd.f32 %v1604, %v1605
        %v1607 = vrot.slane %v1606, 1
        %v1608 = vadd.f32 %v1606, %v1607
        %v1609 = vadd.f32 %v1558, %v1560
        %v1610 = vadd.f32 %v1609, %v1562
        %v1611 = vrot.slane %v1610, 4
        %v1612 = vadd.f32 %v1610, %v1611
        %v1613 = vrot.slane %v1612, 2
        %v1614 = vadd.f32 %v1612, %v1613
        %v1615 = vrot.slane %v1614, 1
        %v1616 = vadd.f32 %v1614, %v1615
        %v1617 = vadd.f32 %v1563, %v1565
        %v1618 = vadd.f32 %v1617, %v1567
        %v1619 = vrot.slane %v1618, 4
        %v1620 = vadd.f32 %v1618, %v1619
        %v1621 = vrot.slane %v1620, 2
        %v1622 = vadd.f32 %v1620, %v1621
        %v1623 = vrot.slane %v1622, 1
        %v1624 = vadd.f32 %v1622, %v1623
        %v1625 = vadd.f32 %v1564, %v1566
        %v1626 = vadd.f32 %v1625, %v1568
        %v1627 = vrot.slane %v1626, 4
        %v1628 = vadd.f32 %v1626, %v1627
        %v1629 = vrot.slane %v1628, 2
        %v1630 = vadd.f32 %v1628, %v1629
        %v1631 = vrot.slane %v1630, 1
        %v1632 = vadd.f32 %v1630, %v1631
        %v1633 = vlaneseq
        %v1634 = vshrl.u32 %v1633, 7
        %v1635 = vsub.s32 5, %v1634
        %v1636 = vrot.slane %v263, %v1635
        %v1637 = vlaneseq
        %v1638 = vshrl.u32 %v1637, 7
        %v1639 = vsub.s32 5, %v1638
        %v1640 = vrot.slane %v264, %v1639
        %v1641 = vmul.f32 %v1576, %v1636
        %v1642 = vmul.f32 %v1584, %v1640
        %v1643 = vmul.f32 %v1592, %v1636
        %v1644 = vmul.f32 %v1600, %v1640
        %v1645 = vmul.f32 %v1608, %v1636
        %v1646 = vmul.f32 %v1616, %v1640
        %v1647 = vmul.f32 %v1624, %v1636
        %v1648 = vmul.f32 %v1632, %v1640
        %v1657 = vrot.slane %v1643, 7
        %v1658 = vsel %vm650, %v1657, %v1641
        %v1659 = vrot.slane %v1645, 6
        %v1660 = vsel %vm653, %v1659, %v1658
        %v1661 = vrot.slane %v1647, 5
        %v1662 = vsel %vm656, %v1661, %v1660
        %v1663 = vrot.slane %v1644, 7
        %v1664 = vsel %vm650, %v1663, %v1642
        %v1665 = vrot.slane %v1646, 6
        %v1666 = vsel %vm653, %v1665, %v1664
        %v1667 = vrot.slane %v1648, 5
        %v1668 = vsel %vm656, %v1667, %v1666
        %1671 = vst [vmem:[#allocation2 + $0x30] sm:$0xf] %v1662
        %1672 = vst [vmem:[#allocation2 + $0x38] sm:$0xf] %v1668
        %v1673 = vlaneseq
        %v1674 = vshrl.u32 %v1673, 7
        %v1675 = vsub.s32 4, %v1674
        %v1676 = vrot.slane %v259, %v1675
        %v1677 = vlaneseq
        %v1678 = vshrl.u32 %v1677, 7
        %v1679 = vsub.s32 4, %v1678
        %v1680 = vrot.slane %v260, %v1679
        %v1681 = vsub.f32 %v271, %v1676
        %v1682 = vsub.f32 %v271, %v1680
        %v1683 = vsub.f32 %v272, %v1676
        %v1684 = vsub.f32 %v272, %v1680
        %v1685 = vsub.f32 %v273, %v1676
        %v1686 = vsub.f32 %v273, %v1680
        %v1687 = vand.u32 2147483647, %v1681
        %v1688 = vand.u32 2147483647, %v1682
        %v1689 = vand.u32 2147483647, %v1683
        %v1690 = vand.u32 2147483647, %v1684
        %v1691 = vand.u32 2147483647, %v1685
        %v1692 = vand.u32 2147483647, %v1686
        %v1693 = vsub.f32 1.0, %v1687
        %v1694 = vsub.f32 1.0, %v1688
        %v1695 = vsub.f32 1.0, %v1689
        %v1696 = vsub.f32 1.0, %v1690
        %v1697 = vsub.f32 1.0, %v1691
        %v1698 = vsub.f32 1.0, %v1692
        %v1699 = vmax.f32 %v1693, 0.0
        %v1700 = vmax.f32 %v1694, 0.0
        %v1701 = vmax.f32 %v1695, 0.0
        %v1702 = vmax.f32 %v1696, 0.0
        %v1703 = vmax.f32 %v1697, 0.0
        %v1704 = vmax.f32 %v1698, 0.0
        %v1705 = vlaneseq
        %v1706 = vshrl.u32 %v1705, 7
        %v1707 = vsub.s32 5, %v1706
        %v1708 = vrot.slane %v261, %v1707
        %v1709 = vlaneseq
        %v1710 = vshrl.u32 %v1709, 7
        %v1711 = vsub.s32 5, %v1710
        %v1712 = vrot.slane %v262, %v1711
        %v1713 = vsub.f32 %v271, %v1708
        %v1714 = vsub.f32 %v271, %v1712
        %v1715 = vsub.f32 %v272, %v1708
        %v1716 = vsub.f32 %v272, %v1712
        %v1717 = vsub.f32 %v273, %v1708
        %v1718 = vsub.f32 %v273, %v1712
        %v1719 = vand.u32 2147483647, %v1713
        %v1720 = vand.u32 2147483647, %v1714
        %v1721 = vand.u32 2147483647, %v1715
        %v1722 = vand.u32 2147483647, %v1716
        %v1723 = vand.u32 2147483647, %v1717
        %v1724 = vand.u32 2147483647, %v1718
        %v1725 = vsub.f32 1.0, %v1719
        %v1726 = vsub.f32 1.0, %v1720
        %v1727 = vsub.f32 1.0, %v1721
        %v1728 = vsub.f32 1.0, %v1722
        %v1729 = vsub.f32 1.0, %v1723
        %v1730 = vsub.f32 1.0, %v1724
        %v1731 = vmax.f32 %v1725, 0.0
        %v1732 = vmax.f32 %v1726, 0.0
        %v1733 = vmax.f32 %v1727, 0.0
        %v1734 = vmax.f32 %v1728, 0.0
        %v1735 = vmax.f32 %v1729, 0.0
        %v1736 = vmax.f32 %v1730, 0.0
        %v1738 = vsel %vm393, %v1735, 0
        %v1741 = vsel %vm393, %v1736, 0
        %1743 = vmatprep.subr.mxu0 %v1732
        %1744 = vmatpush1.msra.mxu0 %v1731
        %1745 = vmatprep.subr.mxu0 %v1734
        %1746 = vmatpush1.msra.mxu0 %v1733
        %1747 = vmatprep.subr.mxu0 %v1741
        %1748 = vmatpush1.msra.mxu0 %v1738
        %1749 = vmatprep.subr.mxu0 0.0
        %1750 = vmatpush1.msra.mxu0 0.0
        %1751 = vmatprep.subr.mxu0 0.0
        %1752 = vmatpush1.msra.mxu0 0.0
        %1753 = vmatprep.subr.mxu0 0.0
        %1754 = vmatpush1.msra.mxu0 0.0
        %1755 = vmatprep.subr.mxu0 0.0
        %1756 = vmatpush1.msra.mxu0 0.0
        %1757 = vmatprep.subr.mxu0 0.0
        %1758 = vmatpush1.msra.mxu0 0.0
        %1759 = vmatprep.subr.mxu0 0.0
        %1760 = vmatpush1.msra.mxu0 0.0
        %1761 = vmatprep.subr.mxu0 0.0
        %1762 = vmatpush1.msra.mxu0 0.0
        %1763 = vmatprep.subr.mxu0 0.0
        %1764 = vmatpush1.msra.mxu0 0.0
        %1765 = vmatprep.subr.mxu0 0.0
        %1766 = vmatpush1.msra.mxu0 0.0
        %1767 = vmatprep.subr.mxu0 0.0
        %1768 = vmatpush1.msra.mxu0 0.0
        %1769 = vmatprep.subr.mxu0 0.0
        %1770 = vmatpush1.msra.mxu0 0.0
        %1771 = vmatprep.subr.mxu0 0.0
        %1772 = vmatpush1.msra.mxu0 0.0
        %1773 = vmatprep.subr.mxu0 0.0
        %1774 = vmatpush1.msra.mxu0 0.0
        %1775 = vmatprep.subr.mxu0 0.0
        %1776 = vmatpush1.msra.mxu0 0.0
        %1777 = vmatprep.subr.mxu0 0.0
        %1778 = vmatpush1.msra.mxu0 0.0
        %1779 = vmatprep.subr.mxu0 0.0
        %1780 = vmatpush1.msra.mxu0 0.0
        %1781 = vmatprep.subr.mxu0 0.0
        %1782 = vmatpush1.msra.mxu0 0.0
        %1783 = vmatprep.subr.mxu0 0.0
        %1784 = vmatpush1.msra.mxu0 0.0
        %1785 = vmatprep.subr.mxu0 0.0
        %1786 = vmatpush1.msra.mxu0 0.0
        %1787 = vmatprep.subr.mxu0 0.0
        %1788 = vmatpush1.msra.mxu0 0.0
        %1789 = vmatprep.subr.mxu0 0.0
        %1790 = vmatpush1.msra.mxu0 0.0
        %1791 = vmatprep.subr.mxu0 0.0
        %1792 = vmatpush1.msra.mxu0 0.0
        %1793 = vmatprep.subr.mxu0 0.0
        %1794 = vmatpush1.msra.mxu0 0.0
        %1795 = vmatprep.subr.mxu0 0.0
        %1796 = vmatpush1.msra.mxu0 0.0
        %1797 = vmatprep.subr.mxu0 0.0
        %1798 = vmatpush1.msra.mxu0 0.0
        %1799 = vmatprep.subr.mxu0 0.0
        %1800 = vmatpush1.msra.mxu0 0.0
        %1801 = vmatprep.subr.mxu0 0.0
        %1802 = vmatpush1.msra.mxu0 0.0
        %1803 = vmatprep.subr.mxu0 0.0
        %1804 = vmatpush1.msra.mxu0 0.0
        %1805 = vmatprep.subr.mxu0 0.0
        %1806 = vmatpush1.msra.mxu0 0.0
        %1807 = vmatprep.mubr.f32.mxu0 0.0
        %1808 = vmatmul.mubr.f32.gmra.mrb[0].mxu0 %v358
        %v1809 = vpop.f32.mrb[0].mxu0
        %v1810 = vadd.f32 0.0, %v1809
        %v1811 = vpop.f32.mrb[0].mxu0
        %v1812 = vadd.f32 0.0, %v1811
        %1813 = vmatprep.mubr.f32.mxu0 0.0
        %1814 = vmatmul.mubr.f32.gmra.mrb[0].mxu0 %v361
        %v1815 = vpop.f32.mrb[0].mxu0
        %v1816 = vadd.f32 0.0, %v1815
        %v1817 = vpop.f32.mrb[0].mxu0
        %v1818 = vadd.f32 0.0, %v1817
        %1819 = vmatprep.mubr.f32.mxu0 0.0
        %1820 = vmatmul.mubr.f32.gmra.mrb[0].mxu0 %v364
        %v1821 = vpop.f32.mrb[0].mxu0
        %v1822 = vadd.f32 0.0, %v1821
        %v1823 = vpop.f32.mrb[0].mxu0
        %v1824 = vadd.f32 0.0, %v1823
        %1825 = vmatprep.mubr.f32.mxu0 0.0
        %1826 = vmatmul.mubr.f32.gmra.mrb[0].mxu0 %v367
        %v1827 = vpop.f32.mrb[0].mxu0
        %v1828 = vadd.f32 0.0, %v1827
        %v1829 = vpop.f32.mrb[0].mxu0
        %v1830 = vadd.f32 0.0, %v1829
        %1831 = vmatprep.mubr.f32.mxu0 0.0
        %1832 = vmatmul.mubr.f32.gmra.mrb[0].mxu0 %v370
        %v1833 = vpop.f32.mrb[0].mxu0
        %v1834 = vadd.f32 0.0, %v1833
        %v1835 = vpop.f32.mrb[0].mxu0
        %v1836 = vadd.f32 0.0, %v1835
        %1837 = vmatprep.mubr.f32.mxu0 0.0
        %1838 = vmatmul.mubr.f32.gmra.mrb[0].mxu0 %v373
        %v1839 = vpop.f32.mrb[0].mxu0
        %v1840 = vadd.f32 0.0, %v1839
        %v1841 = vpop.f32.mrb[0].mxu0
        %v1842 = vadd.f32 0.0, %v1841
        %1843 = vmatprep.mubr.f32.mxu0 0.0
        %1844 = vmatmul.mubr.f32.gmra.mrb[0].mxu0 %v376
        %v1845 = vpop.f32.mrb[0].mxu0
        %v1846 = vadd.f32 0.0, %v1845
        %v1847 = vpop.f32.mrb[0].mxu0
        %v1848 = vadd.f32 0.0, %v1847
        %1849 = vmatprep.mubr.f32.mxu0 0.0
        %1850 = vmatmul.mubr.f32.gmra.mrb[0].mxu0 %v379
        %v1851 = vpop.f32.mrb[0].mxu0
        %v1852 = vadd.f32 0.0, %v1851
        %v1853 = vpop.f32.mrb[0].mxu0
        %v1854 = vadd.f32 0.0, %v1853
        %1855 = vmatprep.mubr.f32.mxu0 0.0
        %1856 = vmatmul.mubr.f32.gmra.mrb[0].mxu0 %v382
        %v1857 = vpop.f32.mrb[0].mxu0
        %v1858 = vadd.f32 0.0, %v1857
        %v1859 = vpop.f32.mrb[0].mxu0
        %v1860 = vadd.f32 0.0, %v1859
        %1861 = vmatprep.mubr.f32.mxu0 0.0
        %1862 = vmatmul.mubr.f32.gmra.mrb[0].mxu0 %v385
        %v1863 = vpop.f32.mrb[0].mxu0
        %v1864 = vadd.f32 0.0, %v1863
        %v1865 = vpop.f32.mrb[0].mxu0
        %v1866 = vadd.f32 0.0, %v1865
        %1867 = vmatprep.mubr.f32.mxu0 0.0
        %1868 = vmatmul.mubr.f32.gmra.mrb[0].mxu0 %v388
        %v1869 = vpop.f32.mrb[0].mxu0
        %v1870 = vadd.f32 0.0, %v1869
        %v1871 = vpop.f32.mrb[0].mxu0
        %v1872 = vadd.f32 0.0, %v1871
        %1873 = vmatprep.mubr.f32.mxu0 0.0
        %1874 = vmatmul.mubr.f32.gmra.mrb[0].mxu0 %v391
        %v1875 = vpop.f32.mrb[0].mxu0
        %v1876 = vadd.f32 0.0, %v1875
        %v1877 = vpop.f32.mrb[0].mxu0
        %v1878 = vadd.f32 0.0, %v1877
        %1879 = vdwg.mxu0
        %v1880 = vmul.f32 %v1810, %v1699
        %v1881 = vmul.f32 %v1812, %v1700
        %v1882 = vmul.f32 %v1816, %v1701
        %v1883 = vmul.f32 %v1818, %v1702
        %v1884 = vmul.f32 %v1822, %v1703
        %v1885 = vmul.f32 %v1824, %v1704
        %v1886 = vmul.f32 %v1828, %v1699
        %v1887 = vmul.f32 %v1830, %v1700
        %v1888 = vmul.f32 %v1834, %v1701
        %v1889 = vmul.f32 %v1836, %v1702
        %v1890 = vmul.f32 %v1840, %v1703
        %v1891 = vmul.f32 %v1842, %v1704
        %v1892 = vmul.f32 %v1846, %v1699
        %v1893 = vmul.f32 %v1848, %v1700
        %v1894 = vmul.f32 %v1852, %v1701
        %v1895 = vmul.f32 %v1854, %v1702
        %v1896 = vmul.f32 %v1858, %v1703
        %v1897 = vmul.f32 %v1860, %v1704
        %v1898 = vmul.f32 %v1864, %v1699
        %v1899 = vmul.f32 %v1866, %v1700
        %v1900 = vmul.f32 %v1870, %v1701
        %v1901 = vmul.f32 %v1872, %v1702
        %v1902 = vmul.f32 %v1876, %v1703
        %v1903 = vmul.f32 %v1878, %v1704
        %v1904 = vadd.f32 %v1880, %v1882
        %v1905 = vadd.f32 %v1904, %v1884
        %v1906 = vrot.slane %v1905, 4
        %v1907 = vadd.f32 %v1905, %v1906
        %v1908 = vrot.slane %v1907, 2
        %v1909 = vadd.f32 %v1907, %v1908
        %v1910 = vrot.slane %v1909, 1
        %v1911 = vadd.f32 %v1909, %v1910
        %v1912 = vadd.f32 %v1881, %v1883
        %v1913 = vadd.f32 %v1912, %v1885
        %v1914 = vrot.slane %v1913, 4
        %v1915 = vadd.f32 %v1913, %v1914
        %v1916 = vrot.slane %v1915, 2
        %v1917 = vadd.f32 %v1915, %v1916
        %v1918 = vrot.slane %v1917, 1
        %v1919 = vadd.f32 %v1917, %v1918
        %v1920 = vadd.f32 %v1886, %v1888
        %v1921 = vadd.f32 %v1920, %v1890
        %v1922 = vrot.slane %v1921, 4
        %v1923 = vadd.f32 %v1921, %v1922
        %v1924 = vrot.slane %v1923, 2
        %v1925 = vadd.f32 %v1923, %v1924
        %v1926 = vrot.slane %v1925, 1
        %v1927 = vadd.f32 %v1925, %v1926
        %v1928 = vadd.f32 %v1887, %v1889
        %v1929 = vadd.f32 %v1928, %v1891
        %v1930 = vrot.slane %v1929, 4
        %v1931 = vadd.f32 %v1929, %v1930
        %v1932 = vrot.slane %v1931, 2
        %v1933 = vadd.f32 %v1931, %v1932
        %v1934 = vrot.slane %v1933, 1
        %v1935 = vadd.f32 %v1933, %v1934
        %v1936 = vadd.f32 %v1892, %v1894
        %v1937 = vadd.f32 %v1936, %v1896
        %v1938 = vrot.slane %v1937, 4
        %v1939 = vadd.f32 %v1937, %v1938
        %v1940 = vrot.slane %v1939, 2
        %v1941 = vadd.f32 %v1939, %v1940
        %v1942 = vrot.slane %v1941, 1
        %v1943 = vadd.f32 %v1941, %v1942
        %v1944 = vadd.f32 %v1893, %v1895
        %v1945 = vadd.f32 %v1944, %v1897
        %v1946 = vrot.slane %v1945, 4
        %v1947 = vadd.f32 %v1945, %v1946
        %v1948 = vrot.slane %v1947, 2
        %v1949 = vadd.f32 %v1947, %v1948
        %v1950 = vrot.slane %v1949, 1
        %v1951 = vadd.f32 %v1949, %v1950
        %v1952 = vadd.f32 %v1898, %v1900
        %v1953 = vadd.f32 %v1952, %v1902
        %v1954 = vrot.slane %v1953, 4
        %v1955 = vadd.f32 %v1953, %v1954
        %v1956 = vrot.slane %v1955, 2
        %v1957 = vadd.f32 %v1955, %v1956
        %v1958 = vrot.slane %v1957, 1
        %v1959 = vadd.f32 %v1957, %v1958
        %v1960 = vadd.f32 %v1899, %v1901
        %v1961 = vadd.f32 %v1960, %v1903
        %v1962 = vrot.slane %v1961, 4
        %v1963 = vadd.f32 %v1961, %v1962
        %v1964 = vrot.slane %v1963, 2
        %v1965 = vadd.f32 %v1963, %v1964
        %v1966 = vrot.slane %v1965, 1
        %v1967 = vadd.f32 %v1965, %v1966
        %v1968 = vlaneseq
        %v1969 = vshrl.u32 %v1968, 7
        %v1970 = vsub.s32 6, %v1969
        %v1971 = vrot.slane %v263, %v1970
        %v1972 = vlaneseq
        %v1973 = vshrl.u32 %v1972, 7
        %v1974 = vsub.s32 6, %v1973
        %v1975 = vrot.slane %v264, %v1974
        %v1976 = vmul.f32 %v1911, %v1971
        %v1977 = vmul.f32 %v1919, %v1975
        %v1978 = vmul.f32 %v1927, %v1971
        %v1979 = vmul.f32 %v1935, %v1975
        %v1980 = vmul.f32 %v1943, %v1971
        %v1981 = vmul.f32 %v1951, %v1975
        %v1982 = vmul.f32 %v1959, %v1971
        %v1983 = vmul.f32 %v1967, %v1975
        %v1992 = vrot.slane %v1978, 7
        %v1993 = vsel %vm650, %v1992, %v1976
        %v1994 = vrot.slane %v1980, 6
        %v1995 = vsel %vm653, %v1994, %v1993
        %v1996 = vrot.slane %v1982, 5
        %v1997 = vsel %vm656, %v1996, %v1995
        %v1998 = vrot.slane %v1979, 7
        %v1999 = vsel %vm650, %v1998, %v1977
        %v2000 = vrot.slane %v1981, 6
        %v2001 = vsel %vm653, %v2000, %v1999
        %v2002 = vrot.slane %v1983, 5
        %v2003 = vsel %vm656, %v2002, %v2001
        %2006 = vst [vmem:[#allocation2 + $0x40] sm:$0xf] %v1997
        %2007 = vst [vmem:[#allocation2 + $0x48] sm:$0xf] %v2003
        %v2008 = vlaneseq
        %v2009 = vshrl.u32 %v2008, 7
        %v2010 = vsub.s32 5, %v2009
        %v2011 = vrot.slane %v259, %v2010
        %v2012 = vlaneseq
        %v2013 = vshrl.u32 %v2012, 7
        %v2014 = vsub.s32 5, %v2013
        %v2015 = vrot.slane %v260, %v2014
        %v2016 = vsub.f32 %v271, %v2011
        %v2017 = vsub.f32 %v271, %v2015
        %v2018 = vsub.f32 %v272, %v2011
        %v2019 = vsub.f32 %v272, %v2015
        %v2020 = vsub.f32 %v273, %v2011
        %v2021 = vsub.f32 %v273, %v2015
        %v2022 = vand.u32 2147483647, %v2016
        %v2023 = vand.u32 2147483647, %v2017
        %v2024 = vand.u32 2147483647, %v2018
        %v2025 = vand.u32 2147483647, %v2019
        %v2026 = vand.u32 2147483647, %v2020
        %v2027 = vand.u32 2147483647, %v2021
        %v2028 = vsub.f32 1.0, %v2022
        %v2029 = vsub.f32 1.0, %v2023
        %v2030 = vsub.f32 1.0, %v2024
        %v2031 = vsub.f32 1.0, %v2025
        %v2032 = vsub.f32 1.0, %v2026
        %v2033 = vsub.f32 1.0, %v2027
        %v2034 = vmax.f32 %v2028, 0.0
        %v2035 = vmax.f32 %v2029, 0.0
        %v2036 = vmax.f32 %v2030, 0.0
        %v2037 = vmax.f32 %v2031, 0.0
        %v2038 = vmax.f32 %v2032, 0.0
        %v2039 = vmax.f32 %v2033, 0.0
        %v2040 = vlaneseq
        %v2041 = vshrl.u32 %v2040, 7
        %v2042 = vsub.s32 6, %v2041
        %v2043 = vrot.slane %v261, %v2042
        %v2044 = vlaneseq
        %v2045 = vshrl.u32 %v2044, 7
        %v2046 = vsub.s32 6, %v2045
        %v2047 = vrot.slane %v262, %v2046
        %v2048 = vsub.f32 %v271, %v2043
        %v2049 = vsub.f32 %v271, %v2047
        %v2050 = vsub.f32 %v272, %v2043
        %v2051 = vsub.f32 %v272, %v2047
        %v2052 = vsub.f32 %v273, %v2043
        %v2053 = vsub.f32 %v273, %v2047
        %v2054 = vand.u32 2147483647, %v2048
        %v2055 = vand.u32 2147483647, %v2049
        %v2056 = vand.u32 2147483647, %v2050
        %v2057 = vand.u32 2147483647, %v2051
        %v2058 = vand.u32 2147483647, %v2052
        %v2059 = vand.u32 2147483647, %v2053
        %v2060 = vsub.f32 1.0, %v2054
        %v2061 = vsub.f32 1.0, %v2055
        %v2062 = vsub.f32 1.0, %v2056
        %v2063 = vsub.f32 1.0, %v2057
        %v2064 = vsub.f32 1.0, %v2058
        %v2065 = vsub.f32 1.0, %v2059
        %v2066 = vmax.f32 %v2060, 0.0
        %v2067 = vmax.f32 %v2061, 0.0
        %v2068 = vmax.f32 %v2062, 0.0
        %v2069 = vmax.f32 %v2063, 0.0
        %v2070 = vmax.f32 %v2064, 0.0
        %v2071 = vmax.f32 %v2065, 0.0
        %v2073 = vsel %vm393, %v2070, 0
        %v2076 = vsel %vm393, %v2071, 0
        %2078 = vmatprep.subr.mxu0 %v2067
        %2079 = vmatpush1.msra.mxu0 %v2066
        %2080 = vmatprep.subr.mxu0 %v2069
        %2081 = vmatpush1.msra.mxu0 %v2068
        %2082 = vmatprep.subr.mxu0 %v2076
        %2083 = vmatpush1.msra.mxu0 %v2073
        %2084 = vmatprep.subr.mxu0 0.0
        %2085 = vmatpush1.msra.mxu0 0.0
        %2086 = vmatprep.subr.mxu0 0.0
        %2087 = vmatpush1.msra.mxu0 0.0
        %2088 = vmatprep.subr.mxu0 0.0
        %2089 = vmatpush1.msra.mxu0 0.0
        %2090 = vmatprep.subr.mxu0 0.0
        %2091 = vmatpush1.msra.mxu0 0.0
        %2092 = vmatprep.subr.mxu0 0.0
        %2093 = vmatpush1.msra.mxu0 0.0
        %2094 = vmatprep.subr.mxu0 0.0
        %2095 = vmatpush1.msra.mxu0 0.0
        %2096 = vmatprep.subr.mxu0 0.0
        %2097 = vmatpush1.msra.mxu0 0.0
        %2098 = vmatprep.subr.mxu0 0.0
        %2099 = vmatpush1.msra.mxu0 0.0
        %2100 = vmatprep.subr.mxu0 0.0
        %2101 = vmatpush1.msra.mxu0 0.0
        %2102 = vmatprep.subr.mxu0 0.0
        %2103 = vmatpush1.msra.mxu0 0.0
        %2104 = vmatprep.subr.mxu0 0.0
        %2105 = vmatpush1.msra.mxu0 0.0
        %2106 = vmatprep.subr.mxu0 0.0
        %2107 = vmatpush1.msra.mxu0 0.0
        %2108 = vmatprep.subr.mxu0 0.0
        %2109 = vmatpush1.msra.mxu0 0.0
        %2110 = vmatprep.subr.mxu0 0.0
        %2111 = vmatpush1.msra.mxu0 0.0
        %2112 = vmatprep.subr.mxu0 0.0
        %2113 = vmatpush1.msra.mxu0 0.0
        %2114 = vmatprep.subr.mxu0 0.0
        %2115 = vmatpush1.msra.mxu0 0.0
        %2116 = vmatprep.subr.mxu0 0.0
        %2117 = vmatpush1.msra.mxu0 0.0
        %2118 = vmatprep.subr.mxu0 0.0
        %2119 = vmatpush1.msra.mxu0 0.0
        %2120 = vmatprep.subr.mxu0 0.0
        %2121 = vmatpush1.msra.mxu0 0.0
        %2122 = vmatprep.subr.mxu0 0.0
        %2123 = vmatpush1.msra.mxu0 0.0
        %2124 = vmatprep.subr.mxu0 0.0
        %2125 = vmatpush1.msra.mxu0 0.0
        %2126 = vmatprep.subr.mxu0 0.0
        %2127 = vmatpush1.msra.mxu0 0.0
        %2128 = vmatprep.subr.mxu0 0.0
        %2129 = vmatpush1.msra.mxu0 0.0
        %2130 = vmatprep.subr.mxu0 0.0
        %2131 = vmatpush1.msra.mxu0 0.0
        %2132 = vmatprep.subr.mxu0 0.0
        %2133 = vmatpush1.msra.mxu0 0.0
        %2134 = vmatprep.subr.mxu0 0.0
        %2135 = vmatpush1.msra.mxu0 0.0
        %2136 = vmatprep.subr.mxu0 0.0
        %2137 = vmatpush1.msra.mxu0 0.0
        %2138 = vmatprep.subr.mxu0 0.0
        %2139 = vmatpush1.msra.mxu0 0.0
        %2140 = vmatprep.subr.mxu0 0.0
        %2141 = vmatpush1.msra.mxu0 0.0
        %2142 = vmatprep.mubr.f32.mxu0 0.0
        %2143 = vmatmul.mubr.f32.gmra.mrb[0].mxu0 %v358
        %v2144 = vpop.f32.mrb[0].mxu0
        %v2145 = vadd.f32 0.0, %v2144
        %v2146 = vpop.f32.mrb[0].mxu0
        %v2147 = vadd.f32 0.0, %v2146
        %2148 = vmatprep.mubr.f32.mxu0 0.0
        %2149 = vmatmul.mubr.f32.gmra.mrb[0].mxu0 %v361
        %v2150 = vpop.f32.mrb[0].mxu0
        %v2151 = vadd.f32 0.0, %v2150
        %v2152 = vpop.f32.mrb[0].mxu0
        %v2153 = vadd.f32 0.0, %v2152
        %2154 = vmatprep.mubr.f32.mxu0 0.0
        %2155 = vmatmul.mubr.f32.gmra.mrb[0].mxu0 %v364
        %v2156 = vpop.f32.mrb[0].mxu0
        %v2157 = vadd.f32 0.0, %v2156
        %v2158 = vpop.f32.mrb[0].mxu0
        %v2159 = vadd.f32 0.0, %v2158
        %2160 = vmatprep.mubr.f32.mxu0 0.0
        %2161 = vmatmul.mubr.f32.gmra.mrb[0].mxu0 %v367
        %v2162 = vpop.f32.mrb[0].mxu0
        %v2163 = vadd.f32 0.0, %v2162
        %v2164 = vpop.f32.mrb[0].mxu0
        %v2165 = vadd.f32 0.0, %v2164
        %2166 = vmatprep.mubr.f32.mxu0 0.0
        %2167 = vmatmul.mubr.f32.gmra.mrb[0].mxu0 %v370
        %v2168 = vpop.f32.mrb[0].mxu0
        %v2169 = vadd.f32 0.0, %v2168
        %v2170 = vpop.f32.mrb[0].mxu0
        %v2171 = vadd.f32 0.0, %v2170
        %2172 = vmatprep.mubr.f32.mxu0 0.0
        %2173 = vmatmul.mubr.f32.gmra.mrb[0].mxu0 %v373
        %v2174 = vpop.f32.mrb[0].mxu0
        %v2175 = vadd.f32 0.0, %v2174
        %v2176 = vpop.f32.mrb[0].mxu0
        %v2177 = vadd.f32 0.0, %v2176
        %2178 = vmatprep.mubr.f32.mxu0 0.0
        %2179 = vmatmul.mubr.f32.gmra.mrb[0].mxu0 %v376
        %v2180 = vpop.f32.mrb[0].mxu0
        %v2181 = vadd.f32 0.0, %v2180
        %v2182 = vpop.f32.mrb[0].mxu0
        %v2183 = vadd.f32 0.0, %v2182
        %2184 = vmatprep.mubr.f32.mxu0 0.0
        %2185 = vmatmul.mubr.f32.gmra.mrb[0].mxu0 %v379
        %v2186 = vpop.f32.mrb[0].mxu0
        %v2187 = vadd.f32 0.0, %v2186
        %v2188 = vpop.f32.mrb[0].mxu0
        %v2189 = vadd.f32 0.0, %v2188
        %2190 = vmatprep.mubr.f32.mxu0 0.0
        %2191 = vmatmul.mubr.f32.gmra.mrb[0].mxu0 %v382
        %v2192 = vpop.f32.mrb[0].mxu0
        %v2193 = vadd.f32 0.0, %v2192
        %v2194 = vpop.f32.mrb[0].mxu0
        %v2195 = vadd.f32 0.0, %v2194
        %2196 = vmatprep.mubr.f32.mxu0 0.0
        %2197 = vmatmul.mubr.f32.gmra.mrb[0].mxu0 %v385
        %v2198 = vpop.f32.mrb[0].mxu0
        %v2199 = vadd.f32 0.0, %v2198
        %v2200 = vpop.f32.mrb[0].mxu0
        %v2201 = vadd.f32 0.0, %v2200
        %2202 = vmatprep.mubr.f32.mxu0 0.0
        %2203 = vmatmul.mubr.f32.gmra.mrb[0].mxu0 %v388
        %v2204 = vpop.f32.mrb[0].mxu0
        %v2205 = vadd.f32 0.0, %v2204
        %v2206 = vpop.f32.mrb[0].mxu0
        %v2207 = vadd.f32 0.0, %v2206
        %2208 = vmatprep.mubr.f32.mxu0 0.0
        %2209 = vmatmul.mubr.f32.gmra.mrb[0].mxu0 %v391
        %v2210 = vpop.f32.mrb[0].mxu0
        %v2211 = vadd.f32 0.0, %v2210
        %v2212 = vpop.f32.mrb[0].mxu0
        %v2213 = vadd.f32 0.0, %v2212
        %2214 = vdwg.mxu0
        %v2215 = vmul.f32 %v2145, %v2034
        %v2216 = vmul.f32 %v2147, %v2035
        %v2217 = vmul.f32 %v2151, %v2036
        %v2218 = vmul.f32 %v2153, %v2037
        %v2219 = vmul.f32 %v2157, %v2038
        %v2220 = vmul.f32 %v2159, %v2039
        %v2221 = vmul.f32 %v2163, %v2034
        %v2222 = vmul.f32 %v2165, %v2035
        %v2223 = vmul.f32 %v2169, %v2036
        %v2224 = vmul.f32 %v2171, %v2037
        %v2225 = vmul.f32 %v2175, %v2038
        %v2226 = vmul.f32 %v2177, %v2039
        %v2227 = vmul.f32 %v2181, %v2034
        %v2228 = vmul.f32 %v2183, %v2035
        %v2229 = vmul.f32 %v2187, %v2036
        %v2230 = vmul.f32 %v2189, %v2037
        %v2231 = vmul.f32 %v2193, %v2038
        %v2232 = vmul.f32 %v2195, %v2039
        %v2233 = vmul.f32 %v2199, %v2034
        %v2234 = vmul.f32 %v2201, %v2035
        %v2235 = vmul.f32 %v2205, %v2036
        %v2236 = vmul.f32 %v2207, %v2037
        %v2237 = vmul.f32 %v2211, %v2038
        %v2238 = vmul.f32 %v2213, %v2039
        %v2239 = vadd.f32 %v2215, %v2217
        %v2240 = vadd.f32 %v2239, %v2219
        %v2241 = vrot.slane %v2240, 4
        %v2242 = vadd.f32 %v2240, %v2241
        %v2243 = vrot.slane %v2242, 2
        %v2244 = vadd.f32 %v2242, %v2243
        %v2245 = vrot.slane %v2244, 1
        %v2246 = vadd.f32 %v2244, %v2245
        %v2247 = vadd.f32 %v2216, %v2218
        %v2248 = vadd.f32 %v2247, %v2220
        %v2249 = vrot.slane %v2248, 4
        %v2250 = vadd.f32 %v2248, %v2249
        %v2251 = vrot.slane %v2250, 2
        %v2252 = vadd.f32 %v2250, %v2251
        %v2253 = vrot.slane %v2252, 1
        %v2254 = vadd.f32 %v2252, %v2253
        %v2255 = vadd.f32 %v2221, %v2223
        %v2256 = vadd.f32 %v2255, %v2225
        %v2257 = vrot.slane %v2256, 4
        %v2258 = vadd.f32 %v2256, %v2257
        %v2259 = vrot.slane %v2258, 2
        %v2260 = vadd.f32 %v2258, %v2259
        %v2261 = vrot.slane %v2260, 1
        %v2262 = vadd.f32 %v2260, %v2261
        %v2263 = vadd.f32 %v2222, %v2224
        %v2264 = vadd.f32 %v2263, %v2226
        %v2265 = vrot.slane %v2264, 4
        %v2266 = vadd.f32 %v2264, %v2265
        %v2267 = vrot.slane %v2266, 2
        %v2268 = vadd.f32 %v2266, %v2267
        %v2269 = vrot.slane %v2268, 1
        %v2270 = vadd.f32 %v2268, %v2269
        %v2271 = vadd.f32 %v2227, %v2229
        %v2272 = vadd.f32 %v2271, %v2231
        %v2273 = vrot.slane %v2272, 4
        %v2274 = vadd.f32 %v2272, %v2273
        %v2275 = vrot.slane %v2274, 2
        %v2276 = vadd.f32 %v2274, %v2275
        %v2277 = vrot.slane %v2276, 1
        %v2278 = vadd.f32 %v2276, %v2277
        %v2279 = vadd.f32 %v2228, %v2230
        %v2280 = vadd.f32 %v2279, %v2232
        %v2281 = vrot.slane %v2280, 4
        %v2282 = vadd.f32 %v2280, %v2281
        %v2283 = vrot.slane %v2282, 2
        %v2284 = vadd.f32 %v2282, %v2283
        %v2285 = vrot.slane %v2284, 1
        %v2286 = vadd.f32 %v2284, %v2285
        %v2287 = vadd.f32 %v2233, %v2235
        %v2288 = vadd.f32 %v2287, %v2237
        %v2289 = vrot.slane %v2288, 4
        %v2290 = vadd.f32 %v2288, %v2289
        %v2291 = vrot.slane %v2290, 2
        %v2292 = vadd.f32 %v2290, %v2291
        %v2293 = vrot.slane %v2292, 1
        %v2294 = vadd.f32 %v2292, %v2293
        %v2295 = vadd.f32 %v2234, %v2236
        %v2296 = vadd.f32 %v2295, %v2238
        %v2297 = vrot.slane %v2296, 4
        %v2298 = vadd.f32 %v2296, %v2297
        %v2299 = vrot.slane %v2298, 2
        %v2300 = vadd.f32 %v2298, %v2299
        %v2301 = vrot.slane %v2300, 1
        %v2302 = vadd.f32 %v2300, %v2301
        %v2303 = vlaneseq
        %v2304 = vshrl.u32 %v2303, 7
        %v2305 = vsub.s32 7, %v2304
        %v2306 = vrot.slane %v263, %v2305
        %v2307 = vlaneseq
        %v2308 = vshrl.u32 %v2307, 7
        %v2309 = vsub.s32 7, %v2308
        %v2310 = vrot.slane %v264, %v2309
        %v2311 = vmul.f32 %v2246, %v2306
        %v2312 = vmul.f32 %v2254, %v2310
        %v2313 = vmul.f32 %v2262, %v2306
        %v2314 = vmul.f32 %v2270, %v2310
        %v2315 = vmul.f32 %v2278, %v2306
        %v2316 = vmul.f32 %v2286, %v2310
        %v2317 = vmul.f32 %v2294, %v2306
        %v2318 = vmul.f32 %v2302, %v2310
        %v2327 = vrot.slane %v2313, 7
        %v2328 = vsel %vm650, %v2327, %v2311
        %v2329 = vrot.slane %v2315, 6
        %v2330 = vsel %vm653, %v2329, %v2328
        %v2331 = vrot.slane %v2317, 5
        %v2332 = vsel %vm656, %v2331, %v2330
        %v2333 = vrot.slane %v2314, 7
        %v2334 = vsel %vm650, %v2333, %v2312
        %v2335 = vrot.slane %v2316, 6
        %v2336 = vsel %vm653, %v2335, %v2334
        %v2337 = vrot.slane %v2318, 5
        %v2338 = vsel %vm656, %v2337, %v2336
        %2341 = vst [vmem:[#allocation2 + $0x50] sm:$0xf] %v2332
        %2342 = vst [vmem:[#allocation2 + $0x58] sm:$0xf] %v2338
        %v2343 = vlaneseq
        %v2344 = vshrl.u32 %v2343, 7
        %v2345 = vsub.s32 6, %v2344
        %v2346 = vrot.slane %v259, %v2345
        %v2347 = vlaneseq
        %v2348 = vshrl.u32 %v2347, 7
        %v2349 = vsub.s32 6, %v2348
        %v2350 = vrot.slane %v260, %v2349
        %v2351 = vsub.f32 %v271, %v2346
        %v2352 = vsub.f32 %v271, %v2350
        %v2353 = vsub.f32 %v272, %v2346
        %v2354 = vsub.f32 %v272, %v2350
        %v2355 = vsub.f32 %v273, %v2346
        %v2356 = vsub.f32 %v273, %v2350
        %v2357 = vand.u32 2147483647, %v2351
        %v2358 = vand.u32 2147483647, %v2352
        %v2359 = vand.u32 2147483647, %v2353
        %v2360 = vand.u32 2147483647, %v2354
        %v2361 = vand.u32 2147483647, %v2355
        %v2362 = vand.u32 2147483647, %v2356
        %v2363 = vsub.f32 1.0, %v2357
        %v2364 = vsub.f32 1.0, %v2358
        %v2365 = vsub.f32 1.0, %v2359
        %v2366 = vsub.f32 1.0, %v2360
        %v2367 = vsub.f32 1.0, %v2361
        %v2368 = vsub.f32 1.0, %v2362
        %v2369 = vmax.f32 %v2363, 0.0
        %v2370 = vmax.f32 %v2364, 0.0
        %v2371 = vmax.f32 %v2365, 0.0
        %v2372 = vmax.f32 %v2366, 0.0
        %v2373 = vmax.f32 %v2367, 0.0
        %v2374 = vmax.f32 %v2368, 0.0
        %v2375 = vlaneseq
        %v2376 = vshrl.u32 %v2375, 7
        %v2377 = vsub.s32 7, %v2376
        %v2378 = vrot.slane %v261, %v2377
        %v2379 = vlaneseq
        %v2380 = vshrl.u32 %v2379, 7
        %v2381 = vsub.s32 7, %v2380
        %v2382 = vrot.slane %v262, %v2381
        %v2383 = vsub.f32 %v271, %v2378
        %v2384 = vsub.f32 %v271, %v2382
        %v2385 = vsub.f32 %v272, %v2378
        %v2386 = vsub.f32 %v272, %v2382
        %v2387 = vsub.f32 %v273, %v2378
        %v2388 = vsub.f32 %v273, %v2382
        %v2389 = vand.u32 2147483647, %v2383
        %v2390 = vand.u32 2147483647, %v2384
        %v2391 = vand.u32 2147483647, %v2385
        %v2392 = vand.u32 2147483647, %v2386
        %v2393 = vand.u32 2147483647, %v2387
        %v2394 = vand.u32 2147483647, %v2388
        %v2395 = vsub.f32 1.0, %v2389
        %v2396 = vsub.f32 1.0, %v2390
        %v2397 = vsub.f32 1.0, %v2391
        %v2398 = vsub.f32 1.0, %v2392
        %v2399 = vsub.f32 1.0, %v2393
        %v2400 = vsub.f32 1.0, %v2394
        %v2401 = vmax.f32 %v2395, 0.0
        %v2402 = vmax.f32 %v2396, 0.0
        %v2403 = vmax.f32 %v2397, 0.0
        %v2404 = vmax.f32 %v2398, 0.0
        %v2405 = vmax.f32 %v2399, 0.0
        %v2406 = vmax.f32 %v2400, 0.0
        %v2408 = vsel %vm393, %v2405, 0
        %v2411 = vsel %vm393, %v2406, 0
        %2413 = vmatprep.subr.mxu0 %v2402
        %2414 = vmatpush1.msra.mxu0 %v2401
        %2415 = vmatprep.subr.mxu0 %v2404
        %2416 = vmatpush1.msra.mxu0 %v2403
        %2417 = vmatprep.subr.mxu0 %v2411
        %2418 = vmatpush1.msra.mxu0 %v2408
        %2419 = vmatprep.subr.mxu0 0.0
        %2420 = vmatpush1.msra.mxu0 0.0
        %2421 = vmatprep.subr.mxu0 0.0
        %2422 = vmatpush1.msra.mxu0 0.0
        %2423 = vmatprep.subr.mxu0 0.0
        %2424 = vmatpush1.msra.mxu0 0.0
        %2425 = vmatprep.subr.mxu0 0.0
        %2426 = vmatpush1.msra.mxu0 0.0
        %2427 = vmatprep.subr.mxu0 0.0
        %2428 = vmatpush1.msra.mxu0 0.0
        %2429 = vmatprep.subr.mxu0 0.0
        %2430 = vmatpush1.msra.mxu0 0.0
        %2431 = vmatprep.subr.mxu0 0.0
        %2432 = vmatpush1.msra.mxu0 0.0
        %2433 = vmatprep.subr.mxu0 0.0
        %2434 = vmatpush1.msra.mxu0 0.0
        %2435 = vmatprep.subr.mxu0 0.0
        %2436 = vmatpush1.msra.mxu0 0.0
        %2437 = vmatprep.subr.mxu0 0.0
        %2438 = vmatpush1.msra.mxu0 0.0
        %2439 = vmatprep.subr.mxu0 0.0
        %2440 = vmatpush1.msra.mxu0 0.0
        %2441 = vmatprep.subr.mxu0 0.0
        %2442 = vmatpush1.msra.mxu0 0.0
        %2443 = vmatprep.subr.mxu0 0.0
        %2444 = vmatpush1.msra.mxu0 0.0
        %2445 = vmatprep.subr.mxu0 0.0
        %2446 = vmatpush1.msra.mxu0 0.0
        %2447 = vmatprep.subr.mxu0 0.0
        %2448 = vmatpush1.msra.mxu0 0.0
        %2449 = vmatprep.subr.mxu0 0.0
        %2450 = vmatpush1.msra.mxu0 0.0
        %2451 = vmatprep.subr.mxu0 0.0
        %2452 = vmatpush1.msra.mxu0 0.0
        %2453 = vmatprep.subr.mxu0 0.0
        %2454 = vmatpush1.msra.mxu0 0.0
        %2455 = vmatprep.subr.mxu0 0.0
        %2456 = vmatpush1.msra.mxu0 0.0
        %2457 = vmatprep.subr.mxu0 0.0
        %2458 = vmatpush1.msra.mxu0 0.0
        %2459 = vmatprep.subr.mxu0 0.0
        %2460 = vmatpush1.msra.mxu0 0.0
        %2461 = vmatprep.subr.mxu0 0.0
        %2462 = vmatpush1.msra.mxu0 0.0
        %2463 = vmatprep.subr.mxu0 0.0
        %2464 = vmatpush1.msra.mxu0 0.0
        %2465 = vmatprep.subr.mxu0 0.0
        %2466 = vmatpush1.msra.mxu0 0.0
        %2467 = vmatprep.subr.mxu0 0.0
        %2468 = vmatpush1.msra.mxu0 0.0
        %2469 = vmatprep.subr.mxu0 0.0
        %2470 = vmatpush1.msra.mxu0 0.0
        %2471 = vmatprep.subr.mxu0 0.0
        %2472 = vmatpush1.msra.mxu0 0.0
        %2473 = vmatprep.subr.mxu0 0.0
        %2474 = vmatpush1.msra.mxu0 0.0
        %2475 = vmatprep.subr.mxu0 0.0
        %2476 = vmatpush1.msra.mxu0 0.0
        %2477 = vmatprep.mubr.f32.mxu0 0.0
        %2478 = vmatmul.mubr.f32.gmra.mrb[0].mxu0 %v358
        %v2479 = vpop.f32.mrb[0].mxu0
        %v2480 = vadd.f32 0.0, %v2479
        %v2481 = vpop.f32.mrb[0].mxu0
        %v2482 = vadd.f32 0.0, %v2481
        %2483 = vmatprep.mubr.f32.mxu0 0.0
        %2484 = vmatmul.mubr.f32.gmra.mrb[0].mxu0 %v361
        %v2485 = vpop.f32.mrb[0].mxu0
        %v2486 = vadd.f32 0.0, %v2485
        %v2487 = vpop.f32.mrb[0].mxu0
        %v2488 = vadd.f32 0.0, %v2487
        %2489 = vmatprep.mubr.f32.mxu0 0.0
        %2490 = vmatmul.mubr.f32.gmra.mrb[0].mxu0 %v364
        %v2491 = vpop.f32.mrb[0].mxu0
        %v2492 = vadd.f32 0.0, %v2491
        %v2493 = vpop.f32.mrb[0].mxu0
        %v2494 = vadd.f32 0.0, %v2493
        %2495 = vmatprep.mubr.f32.mxu0 0.0
        %2496 = vmatmul.mubr.f32.gmra.mrb[0].mxu0 %v367
        %v2497 = vpop.f32.mrb[0].mxu0
        %v2498 = vadd.f32 0.0, %v2497
        %v2499 = vpop.f32.mrb[0].mxu0
        %v2500 = vadd.f32 0.0, %v2499
        %2501 = vmatprep.mubr.f32.mxu0 0.0
        %2502 = vmatmul.mubr.f32.gmra.mrb[0].mxu0 %v370
        %v2503 = vpop.f32.mrb[0].mxu0
        %v2504 = vadd.f32 0.0, %v2503
        %v2505 = vpop.f32.mrb[0].mxu0
        %v2506 = vadd.f32 0.0, %v2505
        %2507 = vmatprep.mubr.f32.mxu0 0.0
        %2508 = vmatmul.mubr.f32.gmra.mrb[0].mxu0 %v373
        %v2509 = vpop.f32.mrb[0].mxu0
        %v2510 = vadd.f32 0.0, %v2509
        %v2511 = vpop.f32.mrb[0].mxu0
        %v2512 = vadd.f32 0.0, %v2511
        %2513 = vmatprep.mubr.f32.mxu0 0.0
        %2514 = vmatmul.mubr.f32.gmra.mrb[0].mxu0 %v376
        %v2515 = vpop.f32.mrb[0].mxu0
        %v2516 = vadd.f32 0.0, %v2515
        %v2517 = vpop.f32.mrb[0].mxu0
        %v2518 = vadd.f32 0.0, %v2517
        %2519 = vmatprep.mubr.f32.mxu0 0.0
        %2520 = vmatmul.mubr.f32.gmra.mrb[0].mxu0 %v379
        %v2521 = vpop.f32.mrb[0].mxu0
        %v2522 = vadd.f32 0.0, %v2521
        %v2523 = vpop.f32.mrb[0].mxu0
        %v2524 = vadd.f32 0.0, %v2523
        %2525 = vmatprep.mubr.f32.mxu0 0.0
        %2526 = vmatmul.mubr.f32.gmra.mrb[0].mxu0 %v382
        %v2527 = vpop.f32.mrb[0].mxu0
        %v2528 = vadd.f32 0.0, %v2527
        %v2529 = vpop.f32.mrb[0].mxu0
        %v2530 = vadd.f32 0.0, %v2529
        %2531 = vmatprep.mubr.f32.mxu0 0.0
        %2532 = vmatmul.mubr.f32.gmra.mrb[0].mxu0 %v385
        %v2533 = vpop.f32.mrb[0].mxu0
        %v2534 = vadd.f32 0.0, %v2533
        %v2535 = vpop.f32.mrb[0].mxu0
        %v2536 = vadd.f32 0.0, %v2535
        %2537 = vmatprep.mubr.f32.mxu0 0.0
        %2538 = vmatmul.mubr.f32.gmra.mrb[0].mxu0 %v388
        %v2539 = vpop.f32.mrb[0].mxu0
        %v2540 = vadd.f32 0.0, %v2539
        %v2541 = vpop.f32.mrb[0].mxu0
        %v2542 = vadd.f32 0.0, %v2541
        %2543 = vmatprep.mubr.f32.mxu0 0.0
        %2544 = vmatmul.mubr.f32.gmra.mrb[0].mxu0 %v391
        %v2545 = vpop.f32.mrb[0].mxu0
        %v2546 = vadd.f32 0.0, %v2545
        %v2547 = vpop.f32.mrb[0].mxu0
        %v2548 = vadd.f32 0.0, %v2547
        %2549 = vdwg.mxu0
        %v2550 = vmul.f32 %v2480, %v2369
        %v2551 = vmul.f32 %v2482, %v2370
        %v2552 = vmul.f32 %v2486, %v2371
        %v2553 = vmul.f32 %v2488, %v2372
        %v2554 = vmul.f32 %v2492, %v2373
        %v2555 = vmul.f32 %v2494, %v2374
        %v2556 = vmul.f32 %v2498, %v2369
        %v2557 = vmul.f32 %v2500, %v2370
        %v2558 = vmul.f32 %v2504, %v2371
        %v2559 = vmul.f32 %v2506, %v2372
        %v2560 = vmul.f32 %v2510, %v2373
        %v2561 = vmul.f32 %v2512, %v2374
        %v2562 = vmul.f32 %v2516, %v2369
        %v2563 = vmul.f32 %v2518, %v2370
        %v2564 = vmul.f32 %v2522, %v2371
        %v2565 = vmul.f32 %v2524, %v2372
        %v2566 = vmul.f32 %v2528, %v2373
        %v2567 = vmul.f32 %v2530, %v2374
        %v2568 = vmul.f32 %v2534, %v2369
        %v2569 = vmul.f32 %v2536, %v2370
        %v2570 = vmul.f32 %v2540, %v2371
        %v2571 = vmul.f32 %v2542, %v2372
        %v2572 = vmul.f32 %v2546, %v2373
        %v2573 = vmul.f32 %v2548, %v2374
        %v2574 = vadd.f32 %v2550, %v2552
        %v2575 = vadd.f32 %v2574, %v2554
        %v2576 = vrot.slane %v2575, 4
        %v2577 = vadd.f32 %v2575, %v2576
        %v2578 = vrot.slane %v2577, 2
        %v2579 = vadd.f32 %v2577, %v2578
        %v2580 = vrot.slane %v2579, 1
        %v2581 = vadd.f32 %v2579, %v2580
        %v2582 = vadd.f32 %v2551, %v2553
        %v2583 = vadd.f32 %v2582, %v2555
        %v2584 = vrot.slane %v2583, 4
        %v2585 = vadd.f32 %v2583, %v2584
        %v2586 = vrot.slane %v2585, 2
        %v2587 = vadd.f32 %v2585, %v2586
        %v2588 = vrot.slane %v2587, 1
        %v2589 = vadd.f32 %v2587, %v2588
        %v2590 = vadd.f32 %v2556, %v2558
        %v2591 = vadd.f32 %v2590, %v2560
        %v2592 = vrot.slane %v2591, 4
        %v2593 = vadd.f32 %v2591, %v2592
        %v2594 = vrot.slane %v2593, 2
        %v2595 = vadd.f32 %v2593, %v2594
        %v2596 = vrot.slane %v2595, 1
        %v2597 = vadd.f32 %v2595, %v2596
        %v2598 = vadd.f32 %v2557, %v2559
        %v2599 = vadd.f32 %v2598, %v2561
        %v2600 = vrot.slane %v2599, 4
        %v2601 = vadd.f32 %v2599, %v2600
        %v2602 = vrot.slane %v2601, 2
        %v2603 = vadd.f32 %v2601, %v2602
        %v2604 = vrot.slane %v2603, 1
        %v2605 = vadd.f32 %v2603, %v2604
        %v2606 = vadd.f32 %v2562, %v2564
        %v2607 = vadd.f32 %v2606, %v2566
        %v2608 = vrot.slane %v2607, 4
        %v2609 = vadd.f32 %v2607, %v2608
        %v2610 = vrot.slane %v2609, 2
        %v2611 = vadd.f32 %v2609, %v2610
        %v2612 = vrot.slane %v2611, 1
        %v2613 = vadd.f32 %v2611, %v2612
        %v2614 = vadd.f32 %v2563, %v2565
        %v2615 = vadd.f32 %v2614, %v2567
        %v2616 = vrot.slane %v2615, 4
        %v2617 = vadd.f32 %v2615, %v2616
        %v2618 = vrot.slane %v2617, 2
        %v2619 = vadd.f32 %v2617, %v2618
        %v2620 = vrot.slane %v2619, 1
        %v2621 = vadd.f32 %v2619, %v2620
        %v2622 = vadd.f32 %v2568, %v2570
        %v2623 = vadd.f32 %v2622, %v2572
        %v2624 = vrot.slane %v2623, 4
        %v2625 = vadd.f32 %v2623, %v2624
        %v2626 = vrot.slane %v2625, 2
        %v2627 = vadd.f32 %v2625, %v2626
        %v2628 = vrot.slane %v2627, 1
        %v2629 = vadd.f32 %v2627, %v2628
        %v2630 = vadd.f32 %v2569, %v2571
        %v2631 = vadd.f32 %v2630, %v2573
        %v2632 = vrot.slane %v2631, 4
        %v2633 = vadd.f32 %v2631, %v2632
        %v2634 = vrot.slane %v2633, 2
        %v2635 = vadd.f32 %v2633, %v2634
        %v2636 = vrot.slane %v2635, 1
        %v2637 = vadd.f32 %v2635, %v2636
        %v2638 = vlaneseq
        %v2639 = vshrl.u32 %v2638, 7
        %v2640 = vsub.s32 0, %v2639
        %v2641 = vrot.slane %v265, %v2640
        %v2642 = vlaneseq
        %v2643 = vshrl.u32 %v2642, 7
        %v2644 = vsub.s32 0, %v2643
        %v2645 = vrot.slane %v266, %v2644
        %v2646 = vmul.f32 %v2581, %v2641
        %v2647 = vmul.f32 %v2589, %v2645
        %v2648 = vmul.f32 %v2597, %v2641
        %v2649 = vmul.f32 %v2605, %v2645
        %v2650 = vmul.f32 %v2613, %v2641
        %v2651 = vmul.f32 %v2621, %v2645
        %v2652 = vmul.f32 %v2629, %v2641
        %v2653 = vmul.f32 %v2637, %v2645
        %v2662 = vrot.slane %v2648, 7
        %v2663 = vsel %vm650, %v2662, %v2646
        %v2664 = vrot.slane %v2650, 6
        %v2665 = vsel %vm653, %v2664, %v2663
        %v2666 = vrot.slane %v2652, 5
        %v2667 = vsel %vm656, %v2666, %v2665
        %v2668 = vrot.slane %v2649, 7
        %v2669 = vsel %vm650, %v2668, %v2647
        %v2670 = vrot.slane %v2651, 6
        %v2671 = vsel %vm653, %v2670, %v2669
        %v2672 = vrot.slane %v2653, 5
        %v2673 = vsel %vm656, %v2672, %v2671
        %2676 = vst [vmem:[#allocation2 + $0x60] sm:$0xf] %v2667
        %2677 = vst [vmem:[#allocation2 + $0x68] sm:$0xf] %v2673
        %v2678 = vlaneseq
        %v2679 = vshrl.u32 %v2678, 7
        %v2680 = vsub.s32 7, %v2679
        %v2681 = vrot.slane %v259, %v2680
        %v2682 = vlaneseq
        %v2683 = vshrl.u32 %v2682, 7
        %v2684 = vsub.s32 7, %v2683
        %v2685 = vrot.slane %v260, %v2684
        %v2686 = vsub.f32 %v271, %v2681
        %v2687 = vsub.f32 %v271, %v2685
        %v2688 = vsub.f32 %v272, %v2681
        %v2689 = vsub.f32 %v272, %v2685
        %v2690 = vsub.f32 %v273, %v2681
        %v2691 = vsub.f32 %v273, %v2685
        %v2692 = vand.u32 2147483647, %v2686
        %v2693 = vand.u32 2147483647, %v2687
        %v2694 = vand.u32 2147483647, %v2688
        %v2695 = vand.u32 2147483647, %v2689
        %v2696 = vand.u32 2147483647, %v2690
        %v2697 = vand.u32 2147483647, %v2691
        %v2698 = vsub.f32 1.0, %v2692
        %v2699 = vsub.f32 1.0, %v2693
        %v2700 = vsub.f32 1.0, %v2694
        %v2701 = vsub.f32 1.0, %v2695
        %v2702 = vsub.f32 1.0, %v2696
        %v2703 = vsub.f32 1.0, %v2697
        %v2704 = vmax.f32 %v2698, 0.0
        %v2705 = vmax.f32 %v2699, 0.0
        %v2706 = vmax.f32 %v2700, 0.0
        %v2707 = vmax.f32 %v2701, 0.0
        %v2708 = vmax.f32 %v2702, 0.0
        %v2709 = vmax.f32 %v2703, 0.0
        %v2710 = vlaneseq
        %v2711 = vshrl.u32 %v2710, 7
        %v2712 = vsub.s32 0, %v2711
        %v2713 = vrot.slane %v263, %v2712
        %v2714 = vlaneseq
        %v2715 = vshrl.u32 %v2714, 7
        %v2716 = vsub.s32 0, %v2715
        %v2717 = vrot.slane %v264, %v2716
        %v2718 = vsub.f32 %v271, %v2713
        %v2719 = vsub.f32 %v271, %v2717
        %v2720 = vsub.f32 %v272, %v2713
        %v2721 = vsub.f32 %v272, %v2717
        %v2722 = vsub.f32 %v273, %v2713
        %v2723 = vsub.f32 %v273, %v2717
        %v2724 = vand.u32 2147483647, %v2718
        %v2725 = vand.u32 2147483647, %v2719
        %v2726 = vand.u32 2147483647, %v2720
        %v2727 = vand.u32 2147483647, %v2721
        %v2728 = vand.u32 2147483647, %v2722
        %v2729 = vand.u32 2147483647, %v2723
        %v2730 = vsub.f32 1.0, %v2724
        %v2731 = vsub.f32 1.0, %v2725
        %v2732 = vsub.f32 1.0, %v2726
        %v2733 = vsub.f32 1.0, %v2727
        %v2734 = vsub.f32 1.0, %v2728
        %v2735 = vsub.f32 1.0, %v2729
        %v2736 = vmax.f32 %v2730, 0.0
        %v2737 = vmax.f32 %v2731, 0.0
        %v2738 = vmax.f32 %v2732, 0.0
        %v2739 = vmax.f32 %v2733, 0.0
        %v2740 = vmax.f32 %v2734, 0.0
        %v2741 = vmax.f32 %v2735, 0.0
        %v2743 = vsel %vm393, %v2740, 0
        %v2746 = vsel %vm393, %v2741, 0
        %2748 = vmatprep.subr.mxu0 %v2737
        %2749 = vmatpush1.msra.mxu0 %v2736
        %2750 = vmatprep.subr.mxu0 %v2739
        %2751 = vmatpush1.msra.mxu0 %v2738
        %2752 = vmatprep.subr.mxu0 %v2746
        %2753 = vmatpush1.msra.mxu0 %v2743
        %2754 = vmatprep.subr.mxu0 0.0
        %2755 = vmatpush1.msra.mxu0 0.0
        %2756 = vmatprep.subr.mxu0 0.0
        %2757 = vmatpush1.msra.mxu0 0.0
        %2758 = vmatprep.subr.mxu0 0.0
        %2759 = vmatpush1.msra.mxu0 0.0
        %2760 = vmatprep.subr.mxu0 0.0
        %2761 = vmatpush1.msra.mxu0 0.0
        %2762 = vmatprep.subr.mxu0 0.0
        %2763 = vmatpush1.msra.mxu0 0.0
        %2764 = vmatprep.subr.mxu0 0.0
        %2765 = vmatpush1.msra.mxu0 0.0
        %2766 = vmatprep.subr.mxu0 0.0
        %2767 = vmatpush1.msra.mxu0 0.0
        %2768 = vmatprep.subr.mxu0 0.0
        %2769 = vmatpush1.msra.mxu0 0.0
        %2770 = vmatprep.subr.mxu0 0.0
        %2771 = vmatpush1.msra.mxu0 0.0
        %2772 = vmatprep.subr.mxu0 0.0
        %2773 = vmatpush1.msra.mxu0 0.0
        %2774 = vmatprep.subr.mxu0 0.0
        %2775 = vmatpush1.msra.mxu0 0.0
        %2776 = vmatprep.subr.mxu0 0.0
        %2777 = vmatpush1.msra.mxu0 0.0
        %2778 = vmatprep.subr.mxu0 0.0
        %2779 = vmatpush1.msra.mxu0 0.0
        %2780 = vmatprep.subr.mxu0 0.0
        %2781 = vmatpush1.msra.mxu0 0.0
        %2782 = vmatprep.subr.mxu0 0.0
        %2783 = vmatpush1.msra.mxu0 0.0
        %2784 = vmatprep.subr.mxu0 0.0
        %2785 = vmatpush1.msra.mxu0 0.0
        %2786 = vmatprep.subr.mxu0 0.0
        %2787 = vmatpush1.msra.mxu0 0.0
        %2788 = vmatprep.subr.mxu0 0.0
        %2789 = vmatpush1.msra.mxu0 0.0
        %2790 = vmatprep.subr.mxu0 0.0
        %2791 = vmatpush1.msra.mxu0 0.0
        %2792 = vmatprep.subr.mxu0 0.0
        %2793 = vmatpush1.msra.mxu0 0.0
        %2794 = vmatprep.subr.mxu0 0.0
        %2795 = vmatpush1.msra.mxu0 0.0
        %2796 = vmatprep.subr.mxu0 0.0
        %2797 = vmatpush1.msra.mxu0 0.0
        %2798 = vmatprep.subr.mxu0 0.0
        %2799 = vmatpush1.msra.mxu0 0.0
        %2800 = vmatprep.subr.mxu0 0.0
        %2801 = vmatpush1.msra.mxu0 0.0
        %2802 = vmatprep.subr.mxu0 0.0
        %2803 = vmatpush1.msra.mxu0 0.0
        %2804 = vmatprep.subr.mxu0 0.0
        %2805 = vmatpush1.msra.mxu0 0.0
        %2806 = vmatprep.subr.mxu0 0.0
        %2807 = vmatpush1.msra.mxu0 0.0
        %2808 = vmatprep.subr.mxu0 0.0
        %2809 = vmatpush1.msra.mxu0 0.0
        %2810 = vmatprep.subr.mxu0 0.0
        %2811 = vmatpush1.msra.mxu0 0.0
        %2812 = vmatprep.mubr.f32.mxu0 0.0
        %2813 = vmatmul.mubr.f32.gmra.mrb[0].mxu0 %v358
        %v2814 = vpop.f32.mrb[0].mxu0
        %v2815 = vadd.f32 0.0, %v2814
        %v2816 = vpop.f32.mrb[0].mxu0
        %v2817 = vadd.f32 0.0, %v2816
        %2818 = vmatprep.mubr.f32.mxu0 0.0
        %2819 = vmatmul.mubr.f32.gmra.mrb[0].mxu0 %v361
        %v2820 = vpop.f32.mrb[0].mxu0
        %v2821 = vadd.f32 0.0, %v2820
        %v2822 = vpop.f32.mrb[0].mxu0
        %v2823 = vadd.f32 0.0, %v2822
        %2824 = vmatprep.mubr.f32.mxu0 0.0
        %2825 = vmatmul.mubr.f32.gmra.mrb[0].mxu0 %v364
        %v2826 = vpop.f32.mrb[0].mxu0
        %v2827 = vadd.f32 0.0, %v2826
        %v2828 = vpop.f32.mrb[0].mxu0
        %v2829 = vadd.f32 0.0, %v2828
        %2830 = vmatprep.mubr.f32.mxu0 0.0
        %2831 = vmatmul.mubr.f32.gmra.mrb[0].mxu0 %v367
        %v2832 = vpop.f32.mrb[0].mxu0
        %v2833 = vadd.f32 0.0, %v2832
        %v2834 = vpop.f32.mrb[0].mxu0
        %v2835 = vadd.f32 0.0, %v2834
        %2836 = vmatprep.mubr.f32.mxu0 0.0
        %2837 = vmatmul.mubr.f32.gmra.mrb[0].mxu0 %v370
        %v2838 = vpop.f32.mrb[0].mxu0
        %v2839 = vadd.f32 0.0, %v2838
        %v2840 = vpop.f32.mrb[0].mxu0
        %v2841 = vadd.f32 0.0, %v2840
        %2842 = vmatprep.mubr.f32.mxu0 0.0
        %2843 = vmatmul.mubr.f32.gmra.mrb[0].mxu0 %v373
        %v2844 = vpop.f32.mrb[0].mxu0
        %v2845 = vadd.f32 0.0, %v2844
        %v2846 = vpop.f32.mrb[0].mxu0
        %v2847 = vadd.f32 0.0, %v2846
        %2848 = vmatprep.mubr.f32.mxu0 0.0
        %2849 = vmatmul.mubr.f32.gmra.mrb[0].mxu0 %v376
        %v2850 = vpop.f32.mrb[0].mxu0
        %v2851 = vadd.f32 0.0, %v2850
        %v2852 = vpop.f32.mrb[0].mxu0
        %v2853 = vadd.f32 0.0, %v2852
        %2854 = vmatprep.mubr.f32.mxu0 0.0
        %2855 = vmatmul.mubr.f32.gmra.mrb[0].mxu0 %v379
        %v2856 = vpop.f32.mrb[0].mxu0
        %v2857 = vadd.f32 0.0, %v2856
        %v2858 = vpop.f32.mrb[0].mxu0
        %v2859 = vadd.f32 0.0, %v2858
        %2860 = vmatprep.mubr.f32.mxu0 0.0
        %2861 = vmatmul.mubr.f32.gmra.mrb[0].mxu0 %v382
        %v2862 = vpop.f32.mrb[0].mxu0
        %v2863 = vadd.f32 0.0, %v2862
        %v2864 = vpop.f32.mrb[0].mxu0
        %v2865 = vadd.f32 0.0, %v2864
        %2866 = vmatprep.mubr.f32.mxu0 0.0
        %2867 = vmatmul.mubr.f32.gmra.mrb[0].mxu0 %v385
        %v2868 = vpop.f32.mrb[0].mxu0
        %v2869 = vadd.f32 0.0, %v2868
        %v2870 = vpop.f32.mrb[0].mxu0
        %v2871 = vadd.f32 0.0, %v2870
        %2872 = vmatprep.mubr.f32.mxu0 0.0
        %2873 = vmatmul.mubr.f32.gmra.mrb[0].mxu0 %v388
        %v2874 = vpop.f32.mrb[0].mxu0
        %v2875 = vadd.f32 0.0, %v2874
        %v2876 = vpop.f32.mrb[0].mxu0
        %v2877 = vadd.f32 0.0, %v2876
        %2878 = vmatprep.mubr.f32.mxu0 0.0
        %2879 = vmatmul.mubr.f32.gmra.mrb[0].mxu0 %v391
        %v2880 = vpop.f32.mrb[0].mxu0
        %v2881 = vadd.f32 0.0, %v2880
        %v2882 = vpop.f32.mrb[0].mxu0
        %v2883 = vadd.f32 0.0, %v2882
        %2884 = vdwg.mxu0
        %v2885 = vmul.f32 %v2815, %v2704
        %v2886 = vmul.f32 %v2817, %v2705
        %v2887 = vmul.f32 %v2821, %v2706
        %v2888 = vmul.f32 %v2823, %v2707
        %v2889 = vmul.f32 %v2827, %v2708
        %v2890 = vmul.f32 %v2829, %v2709
        %v2891 = vmul.f32 %v2833, %v2704
        %v2892 = vmul.f32 %v2835, %v2705
        %v2893 = vmul.f32 %v2839, %v2706
        %v2894 = vmul.f32 %v2841, %v2707
        %v2895 = vmul.f32 %v2845, %v2708
        %v2896 = vmul.f32 %v2847, %v2709
        %v2897 = vmul.f32 %v2851, %v2704
        %v2898 = vmul.f32 %v2853, %v2705
        %v2899 = vmul.f32 %v2857, %v2706
        %v2900 = vmul.f32 %v2859, %v2707
        %v2901 = vmul.f32 %v2863, %v2708
        %v2902 = vmul.f32 %v2865, %v2709
        %v2903 = vmul.f32 %v2869, %v2704
        %v2904 = vmul.f32 %v2871, %v2705
        %v2905 = vmul.f32 %v2875, %v2706
        %v2906 = vmul.f32 %v2877, %v2707
        %v2907 = vmul.f32 %v2881, %v2708
        %v2908 = vmul.f32 %v2883, %v2709
        %v2909 = vadd.f32 %v2885, %v2887
        %v2910 = vadd.f32 %v2909, %v2889
        %v2911 = vrot.slane %v2910, 4
        %v2912 = vadd.f32 %v2910, %v2911
        %v2913 = vrot.slane %v2912, 2
        %v2914 = vadd.f32 %v2912, %v2913
        %v2915 = vrot.slane %v2914, 1
        %v2916 = vadd.f32 %v2914, %v2915
        %v2917 = vadd.f32 %v2886, %v2888
        %v2918 = vadd.f32 %v2917, %v2890
        %v2919 = vrot.slane %v2918, 4
        %v2920 = vadd.f32 %v2918, %v2919
        %v2921 = vrot.slane %v2920, 2
        %v2922 = vadd.f32 %v2920, %v2921
        %v2923 = vrot.slane %v2922, 1
        %v2924 = vadd.f32 %v2922, %v2923
        %v2925 = vadd.f32 %v2891, %v2893
        %v2926 = vadd.f32 %v2925, %v2895
        %v2927 = vrot.slane %v2926, 4
        %v2928 = vadd.f32 %v2926, %v2927
        %v2929 = vrot.slane %v2928, 2
        %v2930 = vadd.f32 %v2928, %v2929
        %v2931 = vrot.slane %v2930, 1
        %v2932 = vadd.f32 %v2930, %v2931
        %v2933 = vadd.f32 %v2892, %v2894
        %v2934 = vadd.f32 %v2933, %v2896
        %v2935 = vrot.slane %v2934, 4
        %v2936 = vadd.f32 %v2934, %v2935
        %v2937 = vrot.slane %v2936, 2
        %v2938 = vadd.f32 %v2936, %v2937
        %v2939 = vrot.slane %v2938, 1
        %v2940 = vadd.f32 %v2938, %v2939
        %v2941 = vadd.f32 %v2897, %v2899
        %v2942 = vadd.f32 %v2941, %v2901
        %v2943 = vrot.slane %v2942, 4
        %v2944 = vadd.f32 %v2942, %v2943
        %v2945 = vrot.slane %v2944, 2
        %v2946 = vadd.f32 %v2944, %v2945
        %v2947 = vrot.slane %v2946, 1
        %v2948 = vadd.f32 %v2946, %v2947
        %v2949 = vadd.f32 %v2898, %v2900
        %v2950 = vadd.f32 %v2949, %v2902
        %v2951 = vrot.slane %v2950, 4
        %v2952 = vadd.f32 %v2950, %v2951
        %v2953 = vrot.slane %v2952, 2
        %v2954 = vadd.f32 %v2952, %v2953
        %v2955 = vrot.slane %v2954, 1
        %v2956 = vadd.f32 %v2954, %v2955
        %v2957 = vadd.f32 %v2903, %v2905
        %v2958 = vadd.f32 %v2957, %v2907
        %v2959 = vrot.slane %v2958, 4
        %v2960 = vadd.f32 %v2958, %v2959
        %v2961 = vrot.slane %v2960, 2
        %v2962 = vadd.f32 %v2960, %v2961
        %v2963 = vrot.slane %v2962, 1
        %v2964 = vadd.f32 %v2962, %v2963
        %v2965 = vadd.f32 %v2904, %v2906
        %v2966 = vadd.f32 %v2965, %v2908
        %v2967 = vrot.slane %v2966, 4
        %v2968 = vadd.f32 %v2966, %v2967
        %v2969 = vrot.slane %v2968, 2
        %v2970 = vadd.f32 %v2968, %v2969
        %v2971 = vrot.slane %v2970, 1
        %v2972 = vadd.f32 %v2970, %v2971
        %v2973 = vlaneseq
        %v2974 = vshrl.u32 %v2973, 7
        %v2975 = vsub.s32 1, %v2974
        %v2976 = vrot.slane %v265, %v2975
        %v2977 = vlaneseq
        %v2978 = vshrl.u32 %v2977, 7
        %v2979 = vsub.s32 1, %v2978
        %v2980 = vrot.slane %v266, %v2979
        %v2981 = vmul.f32 %v2916, %v2976
        %v2982 = vmul.f32 %v2924, %v2980
        %v2983 = vmul.f32 %v2932, %v2976
        %v2984 = vmul.f32 %v2940, %v2980
        %v2985 = vmul.f32 %v2948, %v2976
        %v2986 = vmul.f32 %v2956, %v2980
        %v2987 = vmul.f32 %v2964, %v2976
        %v2988 = vmul.f32 %v2972, %v2980
        %v2997 = vrot.slane %v2983, 7
        %v2998 = vsel %vm650, %v2997, %v2981
        %v2999 = vrot.slane %v2985, 6
        %v3000 = vsel %vm653, %v2999, %v2998
        %v3001 = vrot.slane %v2987, 5
        %v3002 = vsel %vm656, %v3001, %v3000
        %v3003 = vrot.slane %v2984, 7
        %v3004 = vsel %vm650, %v3003, %v2982
        %v3005 = vrot.slane %v2986, 6
        %v3006 = vsel %vm653, %v3005, %v3004
        %v3007 = vrot.slane %v2988, 5
        %v3008 = vsel %vm656, %v3007, %v3006
        %3011 = vst [vmem:[#allocation2 + $0x70] sm:$0xf] %v3002
        %3012 = vst [vmem:[#allocation2 + $0x78] sm:$0xf] %v3008
        %v3013 = vlaneseq
        %v3014 = vshrl.u32 %v3013, 7
        %v3015 = vsub.s32 0, %v3014
        %v3016 = vrot.slane %v261, %v3015
        %v3017 = vlaneseq
        %v3018 = vshrl.u32 %v3017, 7
        %v3019 = vsub.s32 0, %v3018
        %v3020 = vrot.slane %v262, %v3019
        %v3021 = vsub.f32 %v271, %v3016
        %v3022 = vsub.f32 %v271, %v3020
        %v3023 = vsub.f32 %v272, %v3016
        %v3024 = vsub.f32 %v272, %v3020
        %v3025 = vsub.f32 %v273, %v3016
        %v3026 = vsub.f32 %v273, %v3020
        %v3027 = vand.u32 2147483647, %v3021
        %v3028 = vand.u32 2147483647, %v3022
        %v3029 = vand.u32 2147483647, %v3023
        %v3030 = vand.u32 2147483647, %v3024
        %v3031 = vand.u32 2147483647, %v3025
        %v3032 = vand.u32 2147483647, %v3026
        %v3033 = vsub.f32 1.0, %v3027
        %v3034 = vsub.f32 1.0, %v3028
        %v3035 = vsub.f32 1.0, %v3029
        %v3036 = vsub.f32 1.0, %v3030
        %v3037 = vsub.f32 1.0, %v3031
        %v3038 = vsub.f32 1.0, %v3032
        %v3039 = vmax.f32 %v3033, 0.0
        %v3040 = vmax.f32 %v3034, 0.0
        %v3041 = vmax.f32 %v3035, 0.0
        %v3042 = vmax.f32 %v3036, 0.0
        %v3043 = vmax.f32 %v3037, 0.0
        %v3044 = vmax.f32 %v3038, 0.0
        %v3045 = vlaneseq
        %v3046 = vshrl.u32 %v3045, 7
        %v3047 = vsub.s32 1, %v3046
        %v3048 = vrot.slane %v263, %v3047
        %v3049 = vlaneseq
        %v3050 = vshrl.u32 %v3049, 7
        %v3051 = vsub.s32 1, %v3050
        %v3052 = vrot.slane %v264, %v3051
        %v3053 = vsub.f32 %v271, %v3048
        %v3054 = vsub.f32 %v271, %v3052
        %v3055 = vsub.f32 %v272, %v3048
        %v3056 = vsub.f32 %v272, %v3052
        %v3057 = vsub.f32 %v273, %v3048
        %v3058 = vsub.f32 %v273, %v3052
        %v3059 = vand.u32 2147483647, %v3053
        %v3060 = vand.u32 2147483647, %v3054
        %v3061 = vand.u32 2147483647, %v3055
        %v3062 = vand.u32 2147483647, %v3056
        %v3063 = vand.u32 2147483647, %v3057
        %v3064 = vand.u32 2147483647, %v3058
        %v3065 = vsub.f32 1.0, %v3059
        %v3066 = vsub.f32 1.0, %v3060
        %v3067 = vsub.f32 1.0, %v3061
        %v3068 = vsub.f32 1.0, %v3062
        %v3069 = vsub.f32 1.0, %v3063
        %v3070 = vsub.f32 1.0, %v3064
        %v3071 = vmax.f32 %v3065, 0.0
        %v3072 = vmax.f32 %v3066, 0.0
        %v3073 = vmax.f32 %v3067, 0.0
        %v3074 = vmax.f32 %v3068, 0.0
        %v3075 = vmax.f32 %v3069, 0.0
        %v3076 = vmax.f32 %v3070, 0.0
        %v3078 = vsel %vm393, %v3075, 0
        %v3081 = vsel %vm393, %v3076, 0
        %3083 = vmatprep.subr.mxu0 %v3072
        %3084 = vmatpush1.msra.mxu0 %v3071
        %3085 = vmatprep.subr.mxu0 %v3074
        %3086 = vmatpush1.msra.mxu0 %v3073
        %3087 = vmatprep.subr.mxu0 %v3081
        %3088 = vmatpush1.msra.mxu0 %v3078
        %3089 = vmatprep.subr.mxu0 0.0
        %3090 = vmatpush1.msra.mxu0 0.0
        %3091 = vmatprep.subr.mxu0 0.0
        %3092 = vmatpush1.msra.mxu0 0.0
        %3093 = vmatprep.subr.mxu0 0.0
        %3094 = vmatpush1.msra.mxu0 0.0
        %3095 = vmatprep.subr.mxu0 0.0
        %3096 = vmatpush1.msra.mxu0 0.0
        %3097 = vmatprep.subr.mxu0 0.0
        %3098 = vmatpush1.msra.mxu0 0.0
        %3099 = vmatprep.subr.mxu0 0.0
        %3100 = vmatpush1.msra.mxu0 0.0
        %3101 = vmatprep.subr.mxu0 0.0
        %3102 = vmatpush1.msra.mxu0 0.0
        %3103 = vmatprep.subr.mxu0 0.0
        %3104 = vmatpush1.msra.mxu0 0.0
        %3105 = vmatprep.subr.mxu0 0.0
        %3106 = vmatpush1.msra.mxu0 0.0
        %3107 = vmatprep.subr.mxu0 0.0
        %3108 = vmatpush1.msra.mxu0 0.0
        %3109 = vmatprep.subr.mxu0 0.0
        %3110 = vmatpush1.msra.mxu0 0.0
        %3111 = vmatprep.subr.mxu0 0.0
        %3112 = vmatpush1.msra.mxu0 0.0
        %3113 = vmatprep.subr.mxu0 0.0
        %3114 = vmatpush1.msra.mxu0 0.0
        %3115 = vmatprep.subr.mxu0 0.0
        %3116 = vmatpush1.msra.mxu0 0.0
        %3117 = vmatprep.subr.mxu0 0.0
        %3118 = vmatpush1.msra.mxu0 0.0
        %3119 = vmatprep.subr.mxu0 0.0
        %3120 = vmatpush1.msra.mxu0 0.0
        %3121 = vmatprep.subr.mxu0 0.0
        %3122 = vmatpush1.msra.mxu0 0.0
        %3123 = vmatprep.subr.mxu0 0.0
        %3124 = vmatpush1.msra.mxu0 0.0
        %3125 = vmatprep.subr.mxu0 0.0
        %3126 = vmatpush1.msra.mxu0 0.0
        %3127 = vmatprep.subr.mxu0 0.0
        %3128 = vmatpush1.msra.mxu0 0.0
        %3129 = vmatprep.subr.mxu0 0.0
        %3130 = vmatpush1.msra.mxu0 0.0
        %3131 = vmatprep.subr.mxu0 0.0
        %3132 = vmatpush1.msra.mxu0 0.0
        %3133 = vmatprep.subr.mxu0 0.0
        %3134 = vmatpush1.msra.mxu0 0.0
        %3135 = vmatprep.subr.mxu0 0.0
        %3136 = vmatpush1.msra.mxu0 0.0
        %3137 = vmatprep.subr.mxu0 0.0
        %3138 = vmatpush1.msra.mxu0 0.0
        %3139 = vmatprep.subr.mxu0 0.0
        %3140 = vmatpush1.msra.mxu0 0.0
        %3141 = vmatprep.subr.mxu0 0.0
        %3142 = vmatpush1.msra.mxu0 0.0
        %3143 = vmatprep.subr.mxu0 0.0
        %3144 = vmatpush1.msra.mxu0 0.0
        %3145 = vmatprep.subr.mxu0 0.0
        %3146 = vmatpush1.msra.mxu0 0.0
        %3147 = vmatprep.mubr.f32.mxu0 0.0
        %3148 = vmatmul.mubr.f32.gmra.mrb[0].mxu0 %v358
        %v3149 = vpop.f32.mrb[0].mxu0
        %v3150 = vadd.f32 0.0, %v3149
        %v3151 = vpop.f32.mrb[0].mxu0
        %v3152 = vadd.f32 0.0, %v3151
        %3153 = vmatprep.mubr.f32.mxu0 0.0
        %3154 = vmatmul.mubr.f32.gmra.mrb[0].mxu0 %v361
        %v3155 = vpop.f32.mrb[0].mxu0
        %v3156 = vadd.f32 0.0, %v3155
        %v3157 = vpop.f32.mrb[0].mxu0
        %v3158 = vadd.f32 0.0, %v3157
        %3159 = vmatprep.mubr.f32.mxu0 0.0
        %3160 = vmatmul.mubr.f32.gmra.mrb[0].mxu0 %v364
        %v3161 = vpop.f32.mrb[0].mxu0
        %v3162 = vadd.f32 0.0, %v3161
        %v3163 = vpop.f32.mrb[0].mxu0
        %v3164 = vadd.f32 0.0, %v3163
        %3165 = vmatprep.mubr.f32.mxu0 0.0
        %3166 = vmatmul.mubr.f32.gmra.mrb[0].mxu0 %v367
        %v3167 = vpop.f32.mrb[0].mxu0
        %v3168 = vadd.f32 0.0, %v3167
        %v3169 = vpop.f32.mrb[0].mxu0
        %v3170 = vadd.f32 0.0, %v3169
        %3171 = vmatprep.mubr.f32.mxu0 0.0
        %3172 = vmatmul.mubr.f32.gmra.mrb[0].mxu0 %v370
        %v3173 = vpop.f32.mrb[0].mxu0
        %v3174 = vadd.f32 0.0, %v3173
        %v3175 = vpop.f32.mrb[0].mxu0
        %v3176 = vadd.f32 0.0, %v3175
        %3177 = vmatprep.mubr.f32.mxu0 0.0
        %3178 = vmatmul.mubr.f32.gmra.mrb[0].mxu0 %v373
        %v3179 = vpop.f32.mrb[0].mxu0
        %v3180 = vadd.f32 0.0, %v3179
        %v3181 = vpop.f32.mrb[0].mxu0
        %v3182 = vadd.f32 0.0, %v3181
        %3183 = vmatprep.mubr.f32.mxu0 0.0
        %3184 = vmatmul.mubr.f32.gmra.mrb[0].mxu0 %v376
        %v3185 = vpop.f32.mrb[0].mxu0
        %v3186 = vadd.f32 0.0, %v3185
        %v3187 = vpop.f32.mrb[0].mxu0
        %v3188 = vadd.f32 0.0, %v3187
        %3189 = vmatprep.mubr.f32.mxu0 0.0
        %3190 = vmatmul.mubr.f32.gmra.mrb[0].mxu0 %v379
        %v3191 = vpop.f32.mrb[0].mxu0
        %v3192 = vadd.f32 0.0, %v3191
        %v3193 = vpop.f32.mrb[0].mxu0
        %v3194 = vadd.f32 0.0, %v3193
        %3195 = vmatprep.mubr.f32.mxu0 0.0
        %3196 = vmatmul.mubr.f32.gmra.mrb[0].mxu0 %v382
        %v3197 = vpop.f32.mrb[0].mxu0
        %v3198 = vadd.f32 0.0, %v3197
        %v3199 = vpop.f32.mrb[0].mxu0
        %v3200 = vadd.f32 0.0, %v3199
        %3201 = vmatprep.mubr.f32.mxu0 0.0
        %3202 = vmatmul.mubr.f32.gmra.mrb[0].mxu0 %v385
        %v3203 = vpop.f32.mrb[0].mxu0
        %v3204 = vadd.f32 0.0, %v3203
        %v3205 = vpop.f32.mrb[0].mxu0
        %v3206 = vadd.f32 0.0, %v3205
        %3207 = vmatprep.mubr.f32.mxu0 0.0
        %3208 = vmatmul.mubr.f32.gmra.mrb[0].mxu0 %v388
        %v3209 = vpop.f32.mrb[0].mxu0
        %v3210 = vadd.f32 0.0, %v3209
        %v3211 = vpop.f32.mrb[0].mxu0
        %v3212 = vadd.f32 0.0, %v3211
        %3213 = vmatprep.mubr.f32.mxu0 0.0
        %3214 = vmatmul.mubr.f32.gmra.mrb[0].mxu0 %v391
        %v3215 = vpop.f32.mrb[0].mxu0
        %v3216 = vadd.f32 0.0, %v3215
        %v3217 = vpop.f32.mrb[0].mxu0
        %v3218 = vadd.f32 0.0, %v3217
        %3219 = vdwg.mxu0
        %v3220 = vmul.f32 %v3150, %v3039
        %v3221 = vmul.f32 %v3152, %v3040
        %v3222 = vmul.f32 %v3156, %v3041
        %v3223 = vmul.f32 %v3158, %v3042
        %v3224 = vmul.f32 %v3162, %v3043
        %v3225 = vmul.f32 %v3164, %v3044
        %v3226 = vmul.f32 %v3168, %v3039
        %v3227 = vmul.f32 %v3170, %v3040
        %v3228 = vmul.f32 %v3174, %v3041
        %v3229 = vmul.f32 %v3176, %v3042
        %v3230 = vmul.f32 %v3180, %v3043
        %v3231 = vmul.f32 %v3182, %v3044
        %v3232 = vmul.f32 %v3186, %v3039
        %v3233 = vmul.f32 %v3188, %v3040
        %v3234 = vmul.f32 %v3192, %v3041
        %v3235 = vmul.f32 %v3194, %v3042
        %v3236 = vmul.f32 %v3198, %v3043
        %v3237 = vmul.f32 %v3200, %v3044
        %v3238 = vmul.f32 %v3204, %v3039
        %v3239 = vmul.f32 %v3206, %v3040
        %v3240 = vmul.f32 %v3210, %v3041
        %v3241 = vmul.f32 %v3212, %v3042
        %v3242 = vmul.f32 %v3216, %v3043
        %v3243 = vmul.f32 %v3218, %v3044
        %v3244 = vadd.f32 %v3220, %v3222
        %v3245 = vadd.f32 %v3244, %v3224
        %v3246 = vrot.slane %v3245, 4
        %v3247 = vadd.f32 %v3245, %v3246
        %v3248 = vrot.slane %v3247, 2
        %v3249 = vadd.f32 %v3247, %v3248
        %v3250 = vrot.slane %v3249, 1
        %v3251 = vadd.f32 %v3249, %v3250
        %v3252 = vadd.f32 %v3221, %v3223
        %v3253 = vadd.f32 %v3252, %v3225
        %v3254 = vrot.slane %v3253, 4
        %v3255 = vadd.f32 %v3253, %v3254
        %v3256 = vrot.slane %v3255, 2
        %v3257 = vadd.f32 %v3255, %v3256
        %v3258 = vrot.slane %v3257, 1
        %v3259 = vadd.f32 %v3257, %v3258
        %v3260 = vadd.f32 %v3226, %v3228
        %v3261 = vadd.f32 %v3260, %v3230
        %v3262 = vrot.slane %v3261, 4
        %v3263 = vadd.f32 %v3261, %v3262
        %v3264 = vrot.slane %v3263, 2
        %v3265 = vadd.f32 %v3263, %v3264
        %v3266 = vrot.slane %v3265, 1
        %v3267 = vadd.f32 %v3265, %v3266
        %v3268 = vadd.f32 %v3227, %v3229
        %v3269 = vadd.f32 %v3268, %v3231
        %v3270 = vrot.slane %v3269, 4
        %v3271 = vadd.f32 %v3269, %v3270
        %v3272 = vrot.slane %v3271, 2
        %v3273 = vadd.f32 %v3271, %v3272
        %v3274 = vrot.slane %v3273, 1
        %v3275 = vadd.f32 %v3273, %v3274
        %v3276 = vadd.f32 %v3232, %v3234
        %v3277 = vadd.f32 %v3276, %v3236
        %v3278 = vrot.slane %v3277, 4
        %v3279 = vadd.f32 %v3277, %v3278
        %v3280 = vrot.slane %v3279, 2
        %v3281 = vadd.f32 %v3279, %v3280
        %v3282 = vrot.slane %v3281, 1
        %v3283 = vadd.f32 %v3281, %v3282
        %v3284 = vadd.f32 %v3233, %v3235
        %v3285 = vadd.f32 %v3284, %v3237
        %v3286 = vrot.slane %v3285, 4
        %v3287 = vadd.f32 %v3285, %v3286
        %v3288 = vrot.slane %v3287, 2
        %v3289 = vadd.f32 %v3287, %v3288
        %v3290 = vrot.slane %v3289, 1
        %v3291 = vadd.f32 %v3289, %v3290
        %v3292 = vadd.f32 %v3238, %v3240
        %v3293 = vadd.f32 %v3292, %v3242
        %v3294 = vrot.slane %v3293, 4
        %v3295 = vadd.f32 %v3293, %v3294
        %v3296 = vrot.slane %v3295, 2
        %v3297 = vadd.f32 %v3295, %v3296
        %v3298 = vrot.slane %v3297, 1
        %v3299 = vadd.f32 %v3297, %v3298
        %v3300 = vadd.f32 %v3239, %v3241
        %v3301 = vadd.f32 %v3300, %v3243
        %v3302 = vrot.slane %v3301, 4
        %v3303 = vadd.f32 %v3301, %v3302
        %v3304 = vrot.slane %v3303, 2
        %v3305 = vadd.f32 %v3303, %v3304
        %v3306 = vrot.slane %v3305, 1
        %v3307 = vadd.f32 %v3305, %v3306
        %v3308 = vlaneseq
        %v3309 = vshrl.u32 %v3308, 7
        %v3310 = vsub.s32 2, %v3309
        %v3311 = vrot.slane %v265, %v3310
        %v3312 = vlaneseq
        %v3313 = vshrl.u32 %v3312, 7
        %v3314 = vsub.s32 2, %v3313
        %v3315 = vrot.slane %v266, %v3314
        %v3316 = vmul.f32 %v3251, %v3311
        %v3317 = vmul.f32 %v3259, %v3315
        %v3318 = vmul.f32 %v3267, %v3311
        %v3319 = vmul.f32 %v3275, %v3315
        %v3320 = vmul.f32 %v3283, %v3311
        %v3321 = vmul.f32 %v3291, %v3315
        %v3322 = vmul.f32 %v3299, %v3311
        %v3323 = vmul.f32 %v3307, %v3315
        %v3332 = vrot.slane %v3318, 7
        %v3333 = vsel %vm650, %v3332, %v3316
        %v3334 = vrot.slane %v3320, 6
        %v3335 = vsel %vm653, %v3334, %v3333
        %v3336 = vrot.slane %v3322, 5
        %v3337 = vsel %vm656, %v3336, %v3335
        %v3338 = vrot.slane %v3319, 7
        %v3339 = vsel %vm650, %v3338, %v3317
        %v3340 = vrot.slane %v3321, 6
        %v3341 = vsel %vm653, %v3340, %v3339
        %v3342 = vrot.slane %v3323, 5
        %v3343 = vsel %vm656, %v3342, %v3341
        %3346 = vst [vmem:[#allocation2 + $0x80] sm:$0xf] %v3337
        %3347 = vst [vmem:[#allocation2 + $0x88] sm:$0xf] %v3343
        %v3348 = vld [vmem:[%s2] sm:$0xff]
        %v3349 = vld [vmem:[#allocation2] sm:$0xff]
        %v3350 = vld [vmem:[#allocation2 + $0x8] sm:$0xff]
        %v3351 = vld [vmem:[#allocation2 + $0x10] sm:$0xff]
        %v3352 = vld [vmem:[#allocation2 + $0x18] sm:$0xff]
        %v3353 = vld [vmem:[#allocation2 + $0x20] sm:$0xff]
        %v3354 = vld [vmem:[#allocation2 + $0x28] sm:$0xff]
        %v3355 = vld [vmem:[#allocation2 + $0x30] sm:$0xff]
        %v3356 = vld [vmem:[#allocation2 + $0x38] sm:$0xff]
        %v3357 = vld [vmem:[#allocation2 + $0x40] sm:$0xff]
        %v3358 = vld [vmem:[#allocation2 + $0x48] sm:$0xff]
        %v3359 = vld [vmem:[#allocation2 + $0x50] sm:$0xff]
        %v3360 = vld [vmem:[#allocation2 + $0x58] sm:$0xff]
        %v3361 = vld [vmem:[#allocation2 + $0x60] sm:$0xff]
        %v3362 = vld [vmem:[#allocation2 + $0x68] sm:$0xff]
        %v3363 = vld [vmem:[#allocation2 + $0x70] sm:$0xff]
        %v3364 = vld [vmem:[#allocation2 + $0x78] sm:$0xff]
        %v3365 = vld [vmem:[#allocation2 + $0x80] sm:$0xff]
        %v3366 = vld [vmem:[#allocation2 + $0x88] sm:$0xff]
        %v3367 = vld [vmem:[%s3] sm:$0xff]
        %3369 = vset.pattern.permute.xlu0 0
        %3370 = vperm.xlu0 %3369, %v3367
        %v3371 = vpop.permute.xlu0 %3370
        %vm3373 = vcmask 588800
        %v3375 = vsel %vm3373, %v3348, 0
        %3377 = vmatprep.subr.mxu0 %v3350
        %3378 = vmatpush1.msra.mxu0 %v3349
        %3379 = vmatprep.subr.mxu0 %v3352
        %3380 = vmatpush1.msra.mxu0 %v3351
        %3381 = vmatprep.subr.mxu0 %v3354
        %3382 = vmatpush1.msra.mxu0 %v3353
        %3383 = vmatprep.subr.mxu0 %v3356
        %3384 = vmatpush1.msra.mxu0 %v3355
        %3385 = vmatprep.subr.mxu0 %v3358
        %3386 = vmatpush1.msra.mxu0 %v3357
        %3387 = vmatprep.subr.mxu0 %v3360
        %3388 = vmatpush1.msra.mxu0 %v3359
        %3389 = vmatprep.subr.mxu0 %v3362
        %3390 = vmatpush1.msra.mxu0 %v3361
        %3391 = vmatprep.subr.mxu0 %v3364
        %3392 = vmatpush1.msra.mxu0 %v3363
        %3393 = vmatprep.subr.mxu0 %v3366
        %3394 = vmatpush1.msra.mxu0 %v3365
        %3395 = vmatprep.subr.mxu0 0.0
        %3396 = vmatpush1.msra.mxu0 0.0
        %3397 = vmatprep.subr.mxu0 0.0
        %3398 = vmatpush1.msra.mxu0 0.0
        %3399 = vmatprep.subr.mxu0 0.0
        %3400 = vmatpush1.msra.mxu0 0.0
        %3401 = vmatprep.subr.mxu0 0.0
        %3402 = vmatpush1.msra.mxu0 0.0
        %3403 = vmatprep.subr.mxu0 0.0
        %3404 = vmatpush1.msra.mxu0 0.0
        %3405 = vmatprep.subr.mxu0 0.0
        %3406 = vmatpush1.msra.mxu0 0.0
        %3407 = vmatprep.subr.mxu0 0.0
        %3408 = vmatpush1.msra.mxu0 0.0
        %3409 = vmatprep.subr.mxu0 0.0
        %3410 = vmatpush1.msra.mxu0 0.0
        %3411 = vmatprep.subr.mxu0 0.0
        %3412 = vmatpush1.msra.mxu0 0.0
        %3413 = vmatprep.subr.mxu0 0.0
        %3414 = vmatpush1.msra.mxu0 0.0
        %3415 = vmatprep.subr.mxu0 0.0
        %3416 = vmatpush1.msra.mxu0 0.0
        %3417 = vmatprep.subr.mxu0 0.0
        %3418 = vmatpush1.msra.mxu0 0.0
        %3419 = vmatprep.subr.mxu0 0.0
        %3420 = vmatpush1.msra.mxu0 0.0
        %3421 = vmatprep.subr.mxu0 0.0
        %3422 = vmatpush1.msra.mxu0 0.0
        %3423 = vmatprep.subr.mxu0 0.0
        %3424 = vmatpush1.msra.mxu0 0.0
        %3425 = vmatprep.subr.mxu0 0.0
        %3426 = vmatpush1.msra.mxu0 0.0
        %3427 = vmatprep.subr.mxu0 0.0
        %3428 = vmatpush1.msra.mxu0 0.0
        %3429 = vmatprep.subr.mxu0 0.0
        %3430 = vmatpush1.msra.mxu0 0.0
        %3431 = vmatprep.subr.mxu0 0.0
        %3432 = vmatpush1.msra.mxu0 0.0
        %3433 = vmatprep.subr.mxu0 0.0
        %3434 = vmatpush1.msra.mxu0 0.0
        %3435 = vmatprep.subr.mxu0 0.0
        %3436 = vmatpush1.msra.mxu0 0.0
        %3437 = vmatprep.subr.mxu0 0.0
        %3438 = vmatpush1.msra.mxu0 0.0
        %3439 = vmatprep.subr.mxu0 0.0
        %3440 = vmatpush1.msra.mxu0 0.0
        %3441 = vmatprep.mubr.f32.mxu0 0.0
        %3442 = vmatmul.mubr.f32.gmra.mrb[0].mxu0 %v3375
        %v3443 = vpop.f32.mrb[0].mxu0
        %v3444 = vadd.f32 %v3371, %v3443
        %v3445 = vpop.f32.mrb[0].mxu0
        %v3446 = vadd.f32 %v3371, %v3445
        %3447 = vdwg.mxu0
        %3448 = vst [vmem:[%s230] sm:$0xff] %v3444
        %3449 = vst [vmem:[%s230 + $0x8] sm:$0xff] %v3446
        %s3450 = sand.u32 %s136, 1
        %s3451 = scalar_lea.sflag [#allocation4], %s3450
        %s3452 = sand.u32 %s136, 1
        %s3453 = smul.addr %s3452, 16
        %s3454 = scalar_lea.vmem [#allocation3], %s3453
        // Predicated region
        $region37: #{tpu_custom_call.1} parent=35 // pred_check
          %p3455 = pneg %p146
        $region38: #{tpu_custom_call.1} parent=35 // pred_check_branch
          %3457 = sbr.rel (%p3455) target = $region40
        $region39: #{tpu_custom_call.1} parent=35 // pred_region
          %s3458 = smul.u32 2, %s23
          %s3460 = ssub.s32 256, 256
          %3461 = vsyncadd %s3451, %s3460
          %s3462 = smul.addr %s22, 2
          %s3463 = sadd.s32 %s3458, %s3462
          %s3464 = smul.addr %s3463, 128
          %s3465 = scalar_lea.hbm %s4, %s3464
          %s3467 = sshll.u32 %s3454, 4
          %s3468 = int_to_ptr.vmem [resolvable:$true] %s3467
          %3470 = dma.vmem_to_hbm [thread:$0]  %s3468, 256, %s3465, %s3451
        $region40: #{tpu_custom_call.1} parent=35 // pred_fallthru
          _
      $region36: #{tpu_custom_call.1} parent=5 // pred_fallthru
        _
      %p3471 = scmp.le.s32.totalorder 2, %s13
      // Predicated region
      $region41: #{tpu_custom_call.1} parent=5 // pred_check
        %p3472 = pneg %p3471
      $region42: #{tpu_custom_call.1} parent=5 // pred_check_branch
        %3474 = sbr.rel (%p3472) target = $region44
      $region43: #{tpu_custom_call.1} parent=5 // pred_region
        %s3475 = ssub.s32 %s13, 2
        // Predicated region
        $region45: #{tpu_custom_call.1} parent=43 // pred_check
          %p3476 = pneg %p152
        $region46: #{tpu_custom_call.1} parent=43 // pred_check_branch
          %3478 = sbr.rel (%p3476) target = $region48
        $region47: #{tpu_custom_call.1} parent=43 // pred_region
          %s3479 = sand.u32 %s137, 1
          %s3480 = scalar_lea.sflag [#allocation4], %s3479
          %s3481 = sand.u32 %s137, 1
          %s3482 = smul.addr %s3481, 16
          %s3483 = scalar_lea.vmem [#allocation3], %s3482
          %3484 = dma.done %s3480, 256
        $region48: #{tpu_custom_call.1} parent=43 // pred_fallthru
          _
      $region44: #{tpu_custom_call.1} parent=5 // pred_fallthru
        _
    $region6: #{tpu_custom_call.1} parent=1 // loop_footer
      %s17 = sadd.s32 1, %s13
    $region7: #{tpu_custom_call.1} parent=1 // loop_footer_branch
      %12 = sbr.rel target = $region3
    $region8: #{tpu_custom_call.1} parent=1 // loop_exit
      _
    %3485 = vsyncpa [#allocation4], 1
    %s3486 = scalar_lea.sflag [#allocation4], 1
    %3487 = vsyncpa %s3486, 1

</llo_original>
